<compile_context>
chip_gen: v7x
topology: tpu7x:2x2x1
jax: 0.10.0
libtpu: 0.0.40
codegen_flags: <defaults>
</compile_context>

<pallas_src>
import functools

import jax
import jax.numpy as jnp
from jax.experimental import pallas as pl
from jax.experimental.pallas import tpu as pltpu

NUM_LAYERS = 4


def _lstm_stack_kernel(len_ref, x_ref, wih_ref, whh_ref, b_ref,
                       h_out_ref, hn_ref, cn_ref, x0_ref):
    """One time-chunk of the 4-layer LSTM stack.

    len_ref  : (B, 1) int32     per-sequence lengths (resident)
    x_ref    : (Tc*B, H) bf16   embedded tokens for this chunk, time-major rows
    wih_ref  : (L, H, 4H) bf16  input->gate weights
    whh_ref  : (L, H, 4H) bf16  hidden->gate weights
    b_ref    : (L, 1, 4H) f32   summed biases (b_ih + b_hh)
    h_out_ref: (Tc, B, H) f32   top-layer hidden states for this chunk
    hn_ref   : (L, B, H) f32    final hidden state (accumulator, resident)
    cn_ref   : (L, B, H) f32    final cell state   (accumulator, resident)
    x0_ref   : (Tc*B, 4H) f32   scratch: layer-0 gate pre-activations
    """
    Tc, B, H = h_out_ref.shape
    G = 4 * H
    L = hn_ref.shape[0]
    step = pl.program_id(0)

    # Recurrent state lives in the VMEM-resident output accumulators (same
    # block index for every grid step -> single HBM writeback at the end).
    @pl.when(step == 0)
    def _():
        hn_ref[...] = jnp.zeros_like(hn_ref)
        cn_ref[...] = jnp.zeros_like(cn_ref)

    lens = len_ref[...]                                    # (B, 1) int32
    t_base = step * Tc

    # Layer-0 input projection for the whole chunk: ONE large-M MXU matmul
    # (Tc*B, H) @ (H, 4H), bf16 operands, f32 accumulation, bias folded in.
    # It is off the serial recurrence; only h @ W_hh remains per step for l=0.
    x0_ref[...] = (jnp.dot(x_ref[...], wih_ref[0],
                           preferred_element_type=jnp.float32) + b_ref[0])

    # Hoist weight loads and bias broadcasts out of the serial time loop
    # (JAX does not CSE broadcasts).
    whh = [whh_ref[l] for l in range(L)]                   # (H, 4H) bf16
    wih_rest = [wih_ref[l] for l in range(1, L)]           # (H, 4H) bf16
    bias_rest = [jnp.broadcast_to(b_ref[l], (B, G)) for l in range(1, L)]

    def sigm(v):
        # 1 EUP push (tanh) instead of 2 (exp + reciprocal) per gate.
        return 0.5 * (jnp.tanh(0.5 * v) + 1.0)

    def step_fn(t, carry):
        h_st, c_st = carry
        # one mask broadcast per timestep, reused by every jnp.where below
        mask = jnp.broadcast_to(lens > (t_base + t), (B, H))
        row = pl.multiple_of(t * B, 8)
        x_gates = x0_ref[pl.ds(row, B), :]                 # (B, 4H) f32
        new_h, new_c = [], []
        for l in range(L):
            h_prev, c_prev = h_st[l], c_st[l]
            if l == 0:
                gates = x_gates + jnp.dot(h_prev.astype(jnp.bfloat16), whh[0],
                                          preferred_element_type=jnp.float32)
            else:
                # two accumulating MXU dots instead of a lane-axis concat
                gates = (jnp.dot(new_h[l - 1].astype(jnp.bfloat16),
                                 wih_rest[l - 1],
                                 preferred_element_type=jnp.float32)
                         + jnp.dot(h_prev.astype(jnp.bfloat16), whh[l],
                                   preferred_element_type=jnp.float32)
                         + bias_rest[l - 1])
            # PyTorch gate order: i, f, g, o
            # TODO(synk): pad H to a multiple of 128 in production so these lane
            #             slices are free vreg selections instead of relayouts.
            i_g = sigm(gates[:, 0 * H:1 * H])
            f_g = sigm(gates[:, 1 * H:2 * H])
            g_g = jnp.tanh(gates[:, 2 * H:3 * H])
            o_g = sigm(gates[:, 3 * H:4 * H])
            c_new = f_g * c_prev + i_g * g_g
            h_new = o_g * jnp.tanh(c_new)
            # packed-sequence semantics: padded steps never update the state
            new_h.append(jnp.where(mask, h_new, h_prev))
            new_c.append(jnp.where(mask, c_new, c_prev))
        # pad_packed_sequence zero-pads the output past each sequence's length
        h_out_ref[t] = jnp.where(mask, new_h[L - 1], 0.0)
        return tuple(new_h), tuple(new_c)

    carry0 = (tuple(hn_ref[l] for l in range(L)),
              tuple(cn_ref[l] for l in range(L)))
    h_fin, c_fin = jax.lax.fori_loop(0, Tc, step_fn, carry0,
                                     unroll=min(Tc, 8))
    for l in range(L):
        hn_ref[l] = h_fin[l]
        cn_ref[l] = c_fin[l]


def _pick_t_chunk(T, B, H, act_budget_bytes=4 << 20):
    """Largest time-chunk whose (double-buffered) activation tiles fit budget."""
    per_t = 2 * (B * H * 2) + 2 * (B * H * 4) + B * 4 * H * 4
    return int(max(1, min(T, act_budget_bytes // max(per_t, 1))))


def encoder_forward(x_tokens, emb_table, w_ih, w_hh, bias, *, t_chunk=None):
    """x_tokens: (T, B) int32 token ids with trailing 0-padding.

    Returns (h, (h_n, c_n)):
      h   : (T, B, H) top-layer hidden states, zero past each length
            (callers wanting exact pad_packed_sequence length semantics may
             slice to max(lengths)).
      h_n : (L, B, H) final hidden state per layer (at last valid step)
      c_n : (L, B, H) final cell  state per layer
    """
    T, B = x_tokens.shape
    H = emb_table.shape[1]
    L = w_ih.shape[0]
    G = 4 * H

    # len_source_sequences = (x.t() > 0).sum(dim=-1)
    lengths = jnp.sum((x_tokens > 0).astype(jnp.int32), axis=0)          # (B,)

    # Pad batch to a sublane multiple (8); padded rows have length 0 so they
    # stay zero and are sliced off below.
    B_pad = -(-B // 8) * 8
    if B_pad != B:
        x_tokens = jnp.pad(x_tokens, ((0, 0), (0, B_pad - B)))
        lengths = jnp.pad(lengths, (0, B_pad - B))
    len_col = lengths.reshape(B_pad, 1).astype(jnp.int32)

    # Chunk the time axis so the kernel streams activation tiles with BlockSpec
    # double-buffering instead of holding the whole sequence in VMEM.
    if t_chunk is None:
        t_chunk = _pick_t_chunk(T, B_pad, H)
    Tc = int(min(t_chunk, T))
    T_pad = -(-T // Tc) * Tc

    # Embedding lookup (glue; row 0 of the table is zero -> padding_idx=0).
    # Streamed to the kernel as bf16; the layer-0 projection is fused into the
    # kernel, so no (T, B, 4H) slab ever touches HBM.
    # TODO(synk): the gather itself stays in XLA; a Pallas gather would need a
    #             manual DMA path and buys little here.
    x_emb = jnp.take(emb_table, x_tokens, axis=0).astype(jnp.bfloat16)   # (T, B_pad, H)
    if T_pad != T:
        x_emb = jnp.pad(x_emb, ((0, T_pad - T), (0, 0), (0, 0)))
    # Flatten (T, B) -> rows so the in-kernel layer-0 projection is a plain 2-D
    # large-M matmul (rank-3 dot_general does not lower on Mosaic).
    x_rows = x_emb.reshape(T_pad * B_pad, H)

    # bf16 weights, f32 accumulation in the kernel; biases stay f32.
    w_ih_b = w_ih.astype(jnp.bfloat16)                                   # (L, H, 4H)
    w_hh_b = w_hh.astype(jnp.bfloat16)                                   # (L, H, 4H)
    bias_f = bias.astype(jnp.float32)                                    # (L, 1, 4H)

    # Explicit VMEM budget (double-buffered tiles + weights + accumulators),
    # clamped so it also fits v7x's 64 MiB physical VMEM.
    est = (2 * (Tc * B_pad * H * 2)                  # x tile (bf16, 2 buffers)
           + 2 * (Tc * B_pad * H * 4)                # h_out tile (f32, 2 buffers)
           + Tc * B_pad * G * 4                      # x0 gate scratch (f32)
           + 2 * (2 * L * H * G * 2 + L * G * 4)     # weights + bias
           + 2 * (2 * L * B_pad * H * 4)             # h_n / c_n accumulators
           + B_pad * 4)
    vmem_limit = int(min(max(2 * est, 32 << 20), 64 << 20))

    num_chunks = T_pad // Tc

    h, h_n, c_n = pl.pallas_call(
        _lstm_stack_kernel,
        out_shape=(jax.ShapeDtypeStruct((T_pad, B_pad, H), jnp.float32),
                   jax.ShapeDtypeStruct((L, B_pad, H), jnp.float32),
                   jax.ShapeDtypeStruct((L, B_pad, H), jnp.float32)),
        grid_spec=pltpu.PrefetchScalarGridSpec(
            num_scalar_prefetch=0,
            grid=(num_chunks,),                       # sequential time-chunk loop
            in_specs=[
                pl.BlockSpec((B_pad, 1), lambda i: (0, 0)),          # lengths (resident)
                pl.BlockSpec((Tc * B_pad, H), lambda i: (i, 0)),     # embeddings, chunk i
                pl.BlockSpec((L, H, G), lambda i: (0, 0, 0)),        # W_ih (bf16, resident)
                pl.BlockSpec((L, H, G), lambda i: (0, 0, 0)),        # W_hh (bf16, resident)
                pl.BlockSpec((L, 1, G), lambda i: (0, 0, 0)),        # bias (f32, resident)
            ],
            out_specs=[
                pl.BlockSpec((Tc, B_pad, H), lambda i: (i, 0, 0)),   # top-layer h, chunk i
                pl.BlockSpec((L, B_pad, H), lambda i: (0, 0, 0)),    # h_n accumulator
                pl.BlockSpec((L, B_pad, H), lambda i: (0, 0, 0)),    # c_n accumulator
            ],
            scratch_shapes=[
                pltpu.VMEM((Tc * B_pad, G), jnp.float32),            # chunk gate pre-acts
            ]),
        compiler_params=pltpu.CompilerParams(
            dimension_semantics=("arbitrary",),       # time recurrence is serial
            vmem_limit_bytes=vmem_limit),
    )(len_col, x_rows, w_ih_b, w_hh_b, bias_f)

    # Slice away time/batch padding.
    return h[:T, :B], (h_n[:, :B], c_n[:, :B])


def _reference_forward(x_tokens, emb_table, w_ih, w_hh, bias):
    """Pure-JAX reference mirroring the kernel's numerics (bf16 matmul operands,
    f32 accumulation) for the self-test."""
    T, B = x_tokens.shape
    H = emb_table.shape[1]
    L = w_ih.shape[0]
    lengths = jnp.sum((x_tokens > 0).astype(jnp.int32), axis=0)

    def r16(v):
        return v.astype(jnp.bfloat16).astype(jnp.float32)

    def bdot(a, b):
        return jnp.dot(r16(a), r16(b), precision=jax.lax.Precision.HIGHEST)

    x = jnp.take(emb_table, x_tokens, axis=0)
    h = [jnp.zeros((B, H), jnp.float32) for _ in range(L)]
    c = [jnp.zeros((B, H), jnp.float32) for _ in range(L)]
    outs = []
    for t in range(T):
        mask = (lengths > t)[:, None]
        inp = x[t]
        for l in range(L):
            gates = bdot(inp, w_ih[l]) + bdot(h[l], w_hh[l]) + bias[l]
            i = jax.nn.sigmoid(gates[:, :H])
            f = jax.nn.sigmoid(gates[:, H:2 * H])
            g = jnp.tanh(gates[:, 2 * H:3 * H])
            o = jax.nn.sigmoid(gates[:, 3 * H:])
            c_new = f * c[l] + i * g
            h_new = o * jnp.tanh(c_new)
            h[l] = jnp.where(mask, h_new, h[l])
            c[l] = jnp.where(mask, c_new, c[l])
            inp = h[l]
        outs.append(jnp.where(mask, h[-1], 0.0))
    return jnp.stack(outs), (jnp.stack(h), jnp.stack(c))


def init_params(key, vocab, H, L):
    """Deterministic parameter init mirroring the module's __init__ shapes."""
    k_emb, k_ih0, k_hh0, k_rest = jax.random.split(key, 4)

    emb = jax.random.normal(k_emb, (vocab, H), jnp.float32)
    emb = emb.at[0].set(0.0)                       # padding_idx=0 row is zero

    bound = 1.0 / float(H) ** 0.5

    def uni(k, shape):
        return jax.random.uniform(k, shape, jnp.float32, -bound, bound)

    keys = jax.random.split(k_rest, 4 * L)
    w_ih_l, w_hh_l, b_l = [], [], []
    for l in range(L):
        kw, ku, kb1, kb2 = keys[4 * l:4 * l + 4]
        wih = uni(kw, (H, 4 * H))                  # stored transposed: x @ W
        whh = uni(ku, (H, 4 * H))
        if l == 0:
            # nn.init.xavier_normal_(weight_ih_l0)  (torch shape (4H, H))
            std = (2.0 / (4 * H + H)) ** 0.5
            wih = std * jax.random.normal(k_ih0, (H, 4 * H), jnp.float32)
            # nn.init.orthogonal_(weight_hh_l0)
            m = jax.random.normal(k_hh0, (4 * H, H), jnp.float32)
            q, r = jnp.linalg.qr(m)
            q = q * jnp.sign(jnp.diagonal(r))[None, :]
            whh = q.T                              # (H, 4H)
        # PyTorch has b_ih + b_hh; forward only ever uses their sum
        b = uni(kb1, (4 * H,)) + uni(kb2, (4 * H,))
        w_ih_l.append(wih)
        w_hh_l.append(whh)
        b_l.append(b.reshape(1, 4 * H))
    return (emb,
            jnp.stack(w_ih_l, axis=0),             # (L, H, 4H)
            jnp.stack(w_hh_l, axis=0),             # (L, H, 4H)
            jnp.stack(b_l, axis=0))                # (L, 1, 4H)


if __name__ == "__main__":
    VOCAB, H, L = 50, 32, NUM_LAYERS
    T, B = 8, 8

    key = jax.random.PRNGKey(0)
    k_tok, k_par = jax.random.split(key)
    emb_table, w_ih, w_hh, bias = init_params(k_par, VOCAB, H, L)

    # Token ids with trailing padding (padding_idx = 0), varying lengths.
    tokens = jax.random.randint(k_tok, (T, B), 1, VOCAB, dtype=jnp.int32)
    seq_lens = jnp.array([8, 5, 3, 6, 8, 2, 7, 4], dtype=jnp.int32)
    time_idx = jnp.arange(T, dtype=jnp.int32)[:, None]
    tokens = jnp.where(time_idx < seq_lens[None, :], tokens, 0)

    fwd = jax.jit(functools.partial(encoder_forward, t_chunk=4))   # grid = (2,)
    h, (h_n, c_n) = fwd(tokens, emb_table, w_ih, w_hh, bias)
    jax.block_until_ready((h, h_n, c_n))

    assert h.shape == (T, B, H)
    assert h_n.shape == (L, B, H) and c_n.shape == (L, B, H)
    assert bool(jnp.all(jnp.isfinite(h))) and bool(jnp.all(jnp.isfinite(h_n)))

    # pad_packed_sequence zero-pads past each sequence's length
    pad_mask = (time_idx >= seq_lens[None, :])[:, :, None]
    assert float(jnp.max(jnp.abs(jnp.where(pad_mask, h, 0.0)))) == 0.0

    # Parity vs a pure-JAX reference that mirrors the kernel's bf16 operands.
    h_ref, (hn_r, cn_r) = _reference_forward(tokens, emb_table, w_ih, w_hh, bias)
    assert bool(jnp.allclose(h, h_ref, atol=1e-2, rtol=5e-2))
    assert bool(jnp.allclose(h_n, hn_r, atol=1e-2, rtol=5e-2))
    assert bool(jnp.allclose(c_n, cn_r, atol=2e-2, rtol=5e-2))

    print("KERNEL_OK")
</pallas_src>

<mosaic_0001>
module attributes {stable_mosaic.version = 11 : i64} {
  func.func @_lstm_stack_kernel(%arg0: i32, %arg1: memref<8x1xi32, #tpu.memory_space<vmem>>, %arg2: memref<32x32xbf16, #tpu.memory_space<vmem>>, %arg3: memref<4x32x128xbf16, #tpu.memory_space<vmem>>, %arg4: memref<4x32x128xbf16, #tpu.memory_space<vmem>>, %arg5: memref<4x1x128xf32, #tpu.memory_space<vmem>>, %arg6: memref<4x8x32xf32, #tpu.memory_space<vmem>>, %arg7: memref<4x8x32xf32, #tpu.memory_space<vmem>>, %arg8: memref<4x8x32xf32, #tpu.memory_space<vmem>>, %arg9: memref<32x128xf32, #tpu.memory_space<vmem>>) attributes {dimension_semantics = [#tpu.dimension_semantics<arbitrary>], iteration_bounds = array<i64: 2>, scalar_prefetch = 0 : i64, scratch_operands = 1 : i64, tpu.core_type = #tpu.core_type<tc>, window_params = [{pipeline_mode = #tpu.pipeline_mode<synchronous>, transform_indices = @transform_0, window_bounds = array<i64: 8, 1>}, {transform_indices = @transform_1, window_bounds = array<i64: 32, 32>}, {pipeline_mode = #tpu.pipeline_mode<synchronous>, transform_indices = @transform_2, window_bounds = array<i64: 4, 32, 128>}, {pipeline_mode = #tpu.pipeline_mode<synchronous>, transform_indices = @transform_3, window_bounds = array<i64: 4, 32, 128>}, {pipeline_mode = #tpu.pipeline_mode<synchronous>, transform_indices = @transform_4, window_bounds = array<i64: 4, 1, 128>}, {transform_indices = @transform_5, window_bounds = array<i64: 4, 8, 32>}, {pipeline_mode = #tpu.pipeline_mode<synchronous>, transform_indices = @transform_6, window_bounds = array<i64: 4, 8, 32>}, {pipeline_mode = #tpu.pipeline_mode<synchronous>, transform_indices = @transform_7, window_bounds = array<i64: 4, 8, 32>}]} {
    %c0_i32 = arith.constant 0 : i32
    %0 = arith.cmpi eq, %arg0, %c0_i32 : i32
    %1 = arith.extui %0 : i1 to i32
    %c0_i32_0 = arith.constant 0 : i32
    %2 = arith.cmpi ne, %1, %c0_i32_0 : i32
    scf.if %2 {
      %cst_280 = arith.constant 0.000000e+00 : f32
      %752 = vector.broadcast %cst_280 : f32 to vector<4x8x32xf32>
      %c0_281 = arith.constant 0 : index
      %c0_282 = arith.constant 0 : index
      %c0_283 = arith.constant 0 : index
      %753 = vector.load %arg7[%c0_281, %c0_282, %c0_283] : memref<4x8x32xf32, #tpu.memory_space<vmem>>, vector<4x8x32xf32>
      tpu.vector_store %arg7[%c0_281, %c0_282, %c0_283], %752 {strides = array<i32>} : memref<4x8x32xf32, #tpu.memory_space<vmem>>, vector<4x8x32xf32>,
      %cst_284 = arith.constant 0.000000e+00 : f32
      %754 = vector.broadcast %cst_284 : f32 to vector<4x8x32xf32>
      %c0_285 = arith.constant 0 : index
      %c0_286 = arith.constant 0 : index
      %c0_287 = arith.constant 0 : index
      %755 = vector.load %arg8[%c0_285, %c0_286, %c0_287] : memref<4x8x32xf32, #tpu.memory_space<vmem>>, vector<4x8x32xf32>
      tpu.vector_store %arg8[%c0_285, %c0_286, %c0_287], %754 {strides = array<i32>} : memref<4x8x32xf32, #tpu.memory_space<vmem>>, vector<4x8x32xf32>,
    } else {
    }
    %c0 = arith.constant 0 : index
    %c0_1 = arith.constant 0 : index
    %3 = vector.load %arg1[%c0, %c0_1] : memref<8x1xi32, #tpu.memory_space<vmem>>, vector<8x1xi32>
    %c4_i32 = arith.constant 4 : i32
    %4 = arith.muli %arg0, %c4_i32 : i32
    %c0_2 = arith.constant 0 : index
    %c0_3 = arith.constant 0 : index
    %5 = vector.load %arg2[%c0_2, %c0_3] : memref<32x32xbf16, #tpu.memory_space<vmem>>, vector<32x32xbf16>
    %c0_4 = arith.constant 0 : index
    %c0_5 = arith.constant 0 : index
    %c0_6 = arith.constant 0 : index
    %6 = vector.load %arg3[%c0_4, %c0_5, %c0_6] : memref<4x32x128xbf16, #tpu.memory_space<vmem>>, vector<1x32x128xbf16>
    %7 = vector.shape_cast %6 : vector<1x32x128xbf16> to vector<32x128xbf16>
    %cst = arith.constant dense<0.000000e+00> : vector<32x128xf32>
    %8 = tpu.matmul %5, %7, %cst {dimension_numbers = #tpu.dot_dimension_numbers<[1], [0], [0], [1], [0, 0, 1, 1], [], []>} : vector<32x32xbf16>, vector<32x128xbf16>, vector<32x128xf32> -> vector<32x128xf32>
    %c0_7 = arith.constant 0 : index
    %c0_8 = arith.constant 0 : index
    %c0_9 = arith.constant 0 : index
    %9 = vector.load %arg5[%c0_7, %c0_8, %c0_9] : memref<4x1x128xf32, #tpu.memory_space<vmem>>, vector<1x1x128xf32>
    %10 = vector.shape_cast %9 : vector<1x1x128xf32> to vector<1x128xf32>
    %11 = vector.broadcast %10 : vector<1x128xf32> to vector<32x128xf32>
    %12 = arith.addf %8, %11 : vector<32x128xf32>
    %c0_10 = arith.constant 0 : index
    %c0_11 = arith.constant 0 : index
    %13 = vector.load %arg9[%c0_10, %c0_11] : memref<32x128xf32, #tpu.memory_space<vmem>>, vector<32x128xf32>
    tpu.vector_store %arg9[%c0_10, %c0_11], %12 {strides = array<i32>} : memref<32x128xf32, #tpu.memory_space<vmem>>, vector<32x128xf32>,
    %c0_12 = arith.constant 0 : index
    %c0_13 = arith.constant 0 : index
    %c0_14 = arith.constant 0 : index
    %14 = vector.load %arg4[%c0_12, %c0_13, %c0_14] : memref<4x32x128xbf16, #tpu.memory_space<vmem>>, vector<1x32x128xbf16>
    %15 = vector.shape_cast %14 : vector<1x32x128xbf16> to vector<32x128xbf16>
    %c1 = arith.constant 1 : index
    %c0_15 = arith.constant 0 : index
    %c0_16 = arith.constant 0 : index
    %16 = vector.load %arg4[%c1, %c0_15, %c0_16] : memref<4x32x128xbf16, #tpu.memory_space<vmem>>, vector<1x32x128xbf16>
    %17 = vector.shape_cast %16 : vector<1x32x128xbf16> to vector<32x128xbf16>
    %c2 = arith.constant 2 : index
    %c0_17 = arith.constant 0 : index
    %c0_18 = arith.constant 0 : index
    %18 = vector.load %arg4[%c2, %c0_17, %c0_18] : memref<4x32x128xbf16, #tpu.memory_space<vmem>>, vector<1x32x128xbf16>
    %19 = vector.shape_cast %18 : vector<1x32x128xbf16> to vector<32x128xbf16>
    %c3 = arith.constant 3 : index
    %c0_19 = arith.constant 0 : index
    %c0_20 = arith.constant 0 : index
    %20 = vector.load %arg4[%c3, %c0_19, %c0_20] : memref<4x32x128xbf16, #tpu.memory_space<vmem>>, vector<1x32x128xbf16>
    %21 = vector.shape_cast %20 : vector<1x32x128xbf16> to vector<32x128xbf16>
    %c1_21 = arith.constant 1 : index
    %c0_22 = arith.constant 0 : index
    %c0_23 = arith.constant 0 : index
    %22 = vector.load %arg3[%c1_21, %c0_22, %c0_23] : memref<4x32x128xbf16, #tpu.memory_space<vmem>>, vector<1x32x128xbf16>
    %23 = vector.shape_cast %22 : vector<1x32x128xbf16> to vector<32x128xbf16>
    %c2_24 = arith.constant 2 : index
    %c0_25 = arith.constant 0 : index
    %c0_26 = arith.constant 0 : index
    %24 = vector.load %arg3[%c2_24, %c0_25, %c0_26] : memref<4x32x128xbf16, #tpu.memory_space<vmem>>, vector<1x32x128xbf16>
    %25 = vector.shape_cast %24 : vector<1x32x128xbf16> to vector<32x128xbf16>
    %c3_27 = arith.constant 3 : index
    %c0_28 = arith.constant 0 : index
    %c0_29 = arith.constant 0 : index
    %26 = vector.load %arg3[%c3_27, %c0_28, %c0_29] : memref<4x32x128xbf16, #tpu.memory_space<vmem>>, vector<1x32x128xbf16>
    %27 = vector.shape_cast %26 : vector<1x32x128xbf16> to vector<32x128xbf16>
    %c1_30 = arith.constant 1 : index
    %c0_31 = arith.constant 0 : index
    %c0_32 = arith.constant 0 : index
    %28 = vector.load %arg5[%c1_30, %c0_31, %c0_32] : memref<4x1x128xf32, #tpu.memory_space<vmem>>, vector<1x1x128xf32>
    %29 = vector.shape_cast %28 : vector<1x1x128xf32> to vector<1x128xf32>
    %30 = vector.shape_cast %29 : vector<1x128xf32> to vector<1x128xf32>
    %31 = vector.broadcast %30 : vector<1x128xf32> to vector<8x128xf32>
    %c2_33 = arith.constant 2 : index
    %c0_34 = arith.constant 0 : index
    %c0_35 = arith.constant 0 : index
    %32 = vector.load %arg5[%c2_33, %c0_34, %c0_35] : memref<4x1x128xf32, #tpu.memory_space<vmem>>, vector<1x1x128xf32>
    %33 = vector.shape_cast %32 : vector<1x1x128xf32> to vector<1x128xf32>
    %34 = vector.shape_cast %33 : vector<1x128xf32> to vector<1x128xf32>
    %35 = vector.broadcast %34 : vector<1x128xf32> to vector<8x128xf32>
    %c3_36 = arith.constant 3 : index
    %c0_37 = arith.constant 0 : index
    %c0_38 = arith.constant 0 : index
    %36 = vector.load %arg5[%c3_36, %c0_37, %c0_38] : memref<4x1x128xf32, #tpu.memory_space<vmem>>, vector<1x1x128xf32>
    %37 = vector.shape_cast %36 : vector<1x1x128xf32> to vector<1x128xf32>
    %38 = vector.shape_cast %37 : vector<1x128xf32> to vector<1x128xf32>
    %39 = vector.broadcast %38 : vector<1x128xf32> to vector<8x128xf32>
    %c0_39 = arith.constant 0 : index
    %c0_40 = arith.constant 0 : index
    %c0_41 = arith.constant 0 : index
    %40 = vector.load %arg7[%c0_39, %c0_40, %c0_41] : memref<4x8x32xf32, #tpu.memory_space<vmem>>, vector<1x8x32xf32>
    %41 = vector.shape_cast %40 : vector<1x8x32xf32> to vector<8x32xf32>
    %c1_42 = arith.constant 1 : index
    %c0_43 = arith.constant 0 : index
    %c0_44 = arith.constant 0 : index
    %42 = vector.load %arg7[%c1_42, %c0_43, %c0_44] : memref<4x8x32xf32, #tpu.memory_space<vmem>>, vector<1x8x32xf32>
    %43 = vector.shape_cast %42 : vector<1x8x32xf32> to vector<8x32xf32>
    %c2_45 = arith.constant 2 : index
    %c0_46 = arith.constant 0 : index
    %c0_47 = arith.constant 0 : index
    %44 = vector.load %arg7[%c2_45, %c0_46, %c0_47] : memref<4x8x32xf32, #tpu.memory_space<vmem>>, vector<1x8x32xf32>
    %45 = vector.shape_cast %44 : vector<1x8x32xf32> to vector<8x32xf32>
    %c3_48 = arith.constant 3 : index
    %c0_49 = arith.constant 0 : index
    %c0_50 = arith.constant 0 : index
    %46 = vector.load %arg7[%c3_48, %c0_49, %c0_50] : memref<4x8x32xf32, #tpu.memory_space<vmem>>, vector<1x8x32xf32>
    %47 = vector.shape_cast %46 : vector<1x8x32xf32> to vector<8x32xf32>
    %c0_51 = arith.constant 0 : index
    %c0_52 = arith.constant 0 : index
    %c0_53 = arith.constant 0 : index
    %48 = vector.load %arg8[%c0_51, %c0_52, %c0_53] : memref<4x8x32xf32, #tpu.memory_space<vmem>>, vector<1x8x32xf32>
    %49 = vector.shape_cast %48 : vector<1x8x32xf32> to vector<8x32xf32>
    %c1_54 = arith.constant 1 : index
    %c0_55 = arith.constant 0 : index
    %c0_56 = arith.constant 0 : index
    %50 = vector.load %arg8[%c1_54, %c0_55, %c0_56] : memref<4x8x32xf32, #tpu.memory_space<vmem>>, vector<1x8x32xf32>
    %51 = vector.shape_cast %50 : vector<1x8x32xf32> to vector<8x32xf32>
    %c2_57 = arith.constant 2 : index
    %c0_58 = arith.constant 0 : index
    %c0_59 = arith.constant 0 : index
    %52 = vector.load %arg8[%c2_57, %c0_58, %c0_59] : memref<4x8x32xf32, #tpu.memory_space<vmem>>, vector<1x8x32xf32>
    %53 = vector.shape_cast %52 : vector<1x8x32xf32> to vector<8x32xf32>
    %c3_60 = arith.constant 3 : index
    %c0_61 = arith.constant 0 : index
    %c0_62 = arith.constant 0 : index
    %54 = vector.load %arg8[%c3_60, %c0_61, %c0_62] : memref<4x8x32xf32, #tpu.memory_space<vmem>>, vector<1x8x32xf32>
    %55 = vector.shape_cast %54 : vector<1x8x32xf32> to vector<8x32xf32>
    %c0_i32_63 = arith.constant 0 : i32
    %56 = arith.addi %4, %c0_i32_63 : i32
    %57 = vector.broadcast %56 : i32 to vector<8x1xi32>
    %58 = arith.cmpi sgt, %3, %57 : vector<8x1xi32>
    %59 = vector.shape_cast %58 : vector<8x1xi1> to vector<8x1xi1>
    %60 = vector.broadcast %59 : vector<8x1xi1> to vector<8x32xi1>
    %c8_i32 = arith.constant 8 : i32
    %61 = arith.muli %c0_i32_63, %c8_i32 : i32
    %62 = tpu.assume_multiple %61, 8 : i32
    %63 = arith.index_cast %62 : i32 to index
    %c0_64 = arith.constant 0 : index
    %64 = vector.load %arg9[%63, %c0_64] : memref<32x128xf32, #tpu.memory_space<vmem>>, vector<8x128xf32>
    %65 = arith.truncf %41 : vector<8x32xf32> to vector<8x32xbf16>
    %cst_65 = arith.constant dense<0.000000e+00> : vector<8x128xf32>
    %66 = tpu.matmul %65, %15, %cst_65 {dimension_numbers = #tpu.dot_dimension_numbers<[1], [0], [0], [1], [0, 0, 1, 1], [], []>} : vector<8x32xbf16>, vector<32x128xbf16>, vector<8x128xf32> -> vector<8x128xf32>
    %67 = arith.addf %64, %66 : vector<8x128xf32>
    %68 = vector.extract_strided_slice %67 {offsets = [0, 0], sizes = [8, 32], strides = [1, 1]} : vector<8x128xf32> to vector<8x32xf32>
    %cst_66 = arith.constant 5.000000e-01 : f32
    %69 = vector.broadcast %cst_66 : f32 to vector<8x32xf32>
    %70 = arith.mulf %69, %68 : vector<8x32xf32>
    %71 = math.tanh %70 : vector<8x32xf32>
    %cst_67 = arith.constant 1.000000e+00 : f32
    %72 = vector.broadcast %cst_67 : f32 to vector<8x32xf32>
    %73 = arith.addf %71, %72 : vector<8x32xf32>
    %cst_68 = arith.constant 5.000000e-01 : f32
    %74 = vector.broadcast %cst_68 : f32 to vector<8x32xf32>
    %75 = arith.mulf %74, %73 : vector<8x32xf32>
    %76 = vector.extract_strided_slice %67 {offsets = [0, 32], sizes = [8, 32], strides = [1, 1]} : vector<8x128xf32> to vector<8x32xf32>
    %cst_69 = arith.constant 5.000000e-01 : f32
    %77 = vector.broadcast %cst_69 : f32 to vector<8x32xf32>
    %78 = arith.mulf %77, %76 : vector<8x32xf32>
    %79 = math.tanh %78 : vector<8x32xf32>
    %cst_70 = arith.constant 1.000000e+00 : f32
    %80 = vector.broadcast %cst_70 : f32 to vector<8x32xf32>
    %81 = arith.addf %79, %80 : vector<8x32xf32>
    %cst_71 = arith.constant 5.000000e-01 : f32
    %82 = vector.broadcast %cst_71 : f32 to vector<8x32xf32>
    %83 = arith.mulf %82, %81 : vector<8x32xf32>
    %84 = vector.extract_strided_slice %67 {offsets = [0, 64], sizes = [8, 32], strides = [1, 1]} : vector<8x128xf32> to vector<8x32xf32>
    %85 = math.tanh %84 : vector<8x32xf32>
    %86 = vector.extract_strided_slice %67 {offsets = [0, 96], sizes = [8, 32], strides = [1, 1]} : vector<8x128xf32> to vector<8x32xf32>
    %cst_72 = arith.constant 5.000000e-01 : f32
    %87 = vector.broadcast %cst_72 : f32 to vector<8x32xf32>
    %88 = arith.mulf %87, %86 : vector<8x32xf32>
    %89 = math.tanh %88 : vector<8x32xf32>
    %cst_73 = arith.constant 1.000000e+00 : f32
    %90 = vector.broadcast %cst_73 : f32 to vector<8x32xf32>
    %91 = arith.addf %89, %90 : vector<8x32xf32>
    %cst_74 = arith.constant 5.000000e-01 : f32
    %92 = vector.broadcast %cst_74 : f32 to vector<8x32xf32>
    %93 = arith.mulf %92, %91 : vector<8x32xf32>
    %94 = arith.mulf %83, %49 : vector<8x32xf32>
    %95 = arith.mulf %75, %85 : vector<8x32xf32>
    %96 = arith.addf %94, %95 : vector<8x32xf32>
    %97 = math.tanh %96 : vector<8x32xf32>
    %98 = arith.mulf %93, %97 : vector<8x32xf32>
    %99 = arith.select %60, %98, %41 : vector<8x32xi1>, vector<8x32xf32>
    %100 = arith.select %60, %96, %49 : vector<8x32xi1>, vector<8x32xf32>
    %101 = arith.truncf %99 : vector<8x32xf32> to vector<8x32xbf16>
    %cst_75 = arith.constant dense<0.000000e+00> : vector<8x128xf32>
    %102 = tpu.matmul %101, %23, %cst_75 {dimension_numbers = #tpu.dot_dimension_numbers<[1], [0], [0], [1], [0, 0, 1, 1], [], []>} : vector<8x32xbf16>, vector<32x128xbf16>, vector<8x128xf32> -> vector<8x128xf32>
    %103 = arith.truncf %43 : vector<8x32xf32> to vector<8x32xbf16>
    %cst_76 = arith.constant dense<0.000000e+00> : vector<8x128xf32>
    %104 = tpu.matmul %103, %17, %cst_76 {dimension_numbers = #tpu.dot_dimension_numbers<[1], [0], [0], [1], [0, 0, 1, 1], [], []>} : vector<8x32xbf16>, vector<32x128xbf16>, vector<8x128xf32> -> vector<8x128xf32>
    %105 = arith.addf %102, %104 : vector<8x128xf32>
    %106 = arith.addf %105, %31 : vector<8x128xf32>
    %107 = vector.extract_strided_slice %106 {offsets = [0, 0], sizes = [8, 32], strides = [1, 1]} : vector<8x128xf32> to vector<8x32xf32>
    %cst_77 = arith.constant 5.000000e-01 : f32
    %108 = vector.broadcast %cst_77 : f32 to vector<8x32xf32>
    %109 = arith.mulf %108, %107 : vector<8x32xf32>
    %110 = math.tanh %109 : vector<8x32xf32>
    %cst_78 = arith.constant 1.000000e+00 : f32
    %111 = vector.broadcast %cst_78 : f32 to vector<8x32xf32>
    %112 = arith.addf %110, %111 : vector<8x32xf32>
    %cst_79 = arith.constant 5.000000e-01 : f32
    %113 = vector.broadcast %cst_79 : f32 to vector<8x32xf32>
    %114 = arith.mulf %113, %112 : vector<8x32xf32>
    %115 = vector.extract_strided_slice %106 {offsets = [0, 32], sizes = [8, 32], strides = [1, 1]} : vector<8x128xf32> to vector<8x32xf32>
    %cst_80 = arith.constant 5.000000e-01 : f32
    %116 = vector.broadcast %cst_80 : f32 to vector<8x32xf32>
    %117 = arith.mulf %116, %115 : vector<8x32xf32>
    %118 = math.tanh %117 : vector<8x32xf32>
    %cst_81 = arith.constant 1.000000e+00 : f32
    %119 = vector.broadcast %cst_81 : f32 to vector<8x32xf32>
    %120 = arith.addf %118, %119 : vector<8x32xf32>
    %cst_82 = arith.constant 5.000000e-01 : f32
    %121 = vector.broadcast %cst_82 : f32 to vector<8x32xf32>
    %122 = arith.mulf %121, %120 : vector<8x32xf32>
    %123 = vector.extract_strided_slice %106 {offsets = [0, 64], sizes = [8, 32], strides = [1, 1]} : vector<8x128xf32> to vector<8x32xf32>
    %124 = math.tanh %123 : vector<8x32xf32>
    %125 = vector.extract_strided_slice %106 {offsets = [0, 96], sizes = [8, 32], strides = [1, 1]} : vector<8x128xf32> to vector<8x32xf32>
    %cst_83 = arith.constant 5.000000e-01 : f32
    %126 = vector.broadcast %cst_83 : f32 to vector<8x32xf32>
    %127 = arith.mulf %126, %125 : vector<8x32xf32>
    %128 = math.tanh %127 : vector<8x32xf32>
    %cst_84 = arith.constant 1.000000e+00 : f32
    %129 = vector.broadcast %cst_84 : f32 to vector<8x32xf32>
    %130 = arith.addf %128, %129 : vector<8x32xf32>
    %cst_85 = arith.constant 5.000000e-01 : f32
    %131 = vector.broadcast %cst_85 : f32 to vector<8x32xf32>
    %132 = arith.mulf %131, %130 : vector<8x32xf32>
    %133 = arith.mulf %122, %51 : vector<8x32xf32>
    %134 = arith.mulf %114, %124 : vector<8x32xf32>
    %135 = arith.addf %133, %134 : vector<8x32xf32>
    %136 = math.tanh %135 : vector<8x32xf32>
    %137 = arith.mulf %132, %136 : vector<8x32xf32>
    %138 = arith.select %60, %137, %43 : vector<8x32xi1>, vector<8x32xf32>
    %139 = arith.select %60, %135, %51 : vector<8x32xi1>, vector<8x32xf32>
    %140 = arith.truncf %138 : vector<8x32xf32> to vector<8x32xbf16>
    %cst_86 = arith.constant dense<0.000000e+00> : vector<8x128xf32>
    %141 = tpu.matmul %140, %25, %cst_86 {dimension_numbers = #tpu.dot_dimension_numbers<[1], [0], [0], [1], [0, 0, 1, 1], [], []>} : vector<8x32xbf16>, vector<32x128xbf16>, vector<8x128xf32> -> vector<8x128xf32>
    %142 = arith.truncf %45 : vector<8x32xf32> to vector<8x32xbf16>
    %cst_87 = arith.constant dense<0.000000e+00> : vector<8x128xf32>
    %143 = tpu.matmul %142, %19, %cst_87 {dimension_numbers = #tpu.dot_dimension_numbers<[1], [0], [0], [1], [0, 0, 1, 1], [], []>} : vector<8x32xbf16>, vector<32x128xbf16>, vector<8x128xf32> -> vector<8x128xf32>
    %144 = arith.addf %141, %143 : vector<8x128xf32>
    %145 = arith.addf %144, %35 : vector<8x128xf32>
    %146 = vector.extract_strided_slice %145 {offsets = [0, 0], sizes = [8, 32], strides = [1, 1]} : vector<8x128xf32> to vector<8x32xf32>
    %cst_88 = arith.constant 5.000000e-01 : f32
    %147 = vector.broadcast %cst_88 : f32 to vector<8x32xf32>
    %148 = arith.mulf %147, %146 : vector<8x32xf32>
    %149 = math.tanh %148 : vector<8x32xf32>
    %cst_89 = arith.constant 1.000000e+00 : f32
    %150 = vector.broadcast %cst_89 : f32 to vector<8x32xf32>
    %151 = arith.addf %149, %150 : vector<8x32xf32>
    %cst_90 = arith.constant 5.000000e-01 : f32
    %152 = vector.broadcast %cst_90 : f32 to vector<8x32xf32>
    %153 = arith.mulf %152, %151 : vector<8x32xf32>
    %154 = vector.extract_strided_slice %145 {offsets = [0, 32], sizes = [8, 32], strides = [1, 1]} : vector<8x128xf32> to vector<8x32xf32>
    %cst_91 = arith.constant 5.000000e-01 : f32
    %155 = vector.broadcast %cst_91 : f32 to vector<8x32xf32>
    %156 = arith.mulf %155, %154 : vector<8x32xf32>
    %157 = math.tanh %156 : vector<8x32xf32>
    %cst_92 = arith.constant 1.000000e+00 : f32
    %158 = vector.broadcast %cst_92 : f32 to vector<8x32xf32>
    %159 = arith.addf %157, %158 : vector<8x32xf32>
    %cst_93 = arith.constant 5.000000e-01 : f32
    %160 = vector.broadcast %cst_93 : f32 to vector<8x32xf32>
    %161 = arith.mulf %160, %159 : vector<8x32xf32>
    %162 = vector.extract_strided_slice %145 {offsets = [0, 64], sizes = [8, 32], strides = [1, 1]} : vector<8x128xf32> to vector<8x32xf32>
    %163 = math.tanh %162 : vector<8x32xf32>
    %164 = vector.extract_strided_slice %145 {offsets = [0, 96], sizes = [8, 32], strides = [1, 1]} : vector<8x128xf32> to vector<8x32xf32>
    %cst_94 = arith.constant 5.000000e-01 : f32
    %165 = vector.broadcast %cst_94 : f32 to vector<8x32xf32>
    %166 = arith.mulf %165, %164 : vector<8x32xf32>
    %167 = math.tanh %166 : vector<8x32xf32>
    %cst_95 = arith.constant 1.000000e+00 : f32
    %168 = vector.broadcast %cst_95 : f32 to vector<8x32xf32>
    %169 = arith.addf %167, %168 : vector<8x32xf32>
    %cst_96 = arith.constant 5.000000e-01 : f32
    %170 = vector.broadcast %cst_96 : f32 to vector<8x32xf32>
    %171 = arith.mulf %170, %169 : vector<8x32xf32>
    %172 = arith.mulf %161, %53 : vector<8x32xf32>
    %173 = arith.mulf %153, %163 : vector<8x32xf32>
    %174 = arith.addf %172, %173 : vector<8x32xf32>
    %175 = math.tanh %174 : vector<8x32xf32>
    %176 = arith.mulf %171, %175 : vector<8x32xf32>
    %177 = arith.select %60, %176, %45 : vector<8x32xi1>, vector<8x32xf32>
    %178 = arith.select %60, %174, %53 : vector<8x32xi1>, vector<8x32xf32>
    %179 = arith.truncf %177 : vector<8x32xf32> to vector<8x32xbf16>
    %cst_97 = arith.constant dense<0.000000e+00> : vector<8x128xf32>
    %180 = tpu.matmul %179, %27, %cst_97 {dimension_numbers = #tpu.dot_dimension_numbers<[1], [0], [0], [1], [0, 0, 1, 1], [], []>} : vector<8x32xbf16>, vector<32x128xbf16>, vector<8x128xf32> -> vector<8x128xf32>
    %181 = arith.truncf %47 : vector<8x32xf32> to vector<8x32xbf16>
    %cst_98 = arith.constant dense<0.000000e+00> : vector<8x128xf32>
    %182 = tpu.matmul %181, %21, %cst_98 {dimension_numbers = #tpu.dot_dimension_numbers<[1], [0], [0], [1], [0, 0, 1, 1], [], []>} : vector<8x32xbf16>, vector<32x128xbf16>, vector<8x128xf32> -> vector<8x128xf32>
    %183 = arith.addf %180, %182 : vector<8x128xf32>
    %184 = arith.addf %183, %39 : vector<8x128xf32>
    %185 = vector.extract_strided_slice %184 {offsets = [0, 0], sizes = [8, 32], strides = [1, 1]} : vector<8x128xf32> to vector<8x32xf32>
    %cst_99 = arith.constant 5.000000e-01 : f32
    %186 = vector.broadcast %cst_99 : f32 to vector<8x32xf32>
    %187 = arith.mulf %186, %185 : vector<8x32xf32>
    %188 = math.tanh %187 : vector<8x32xf32>
    %cst_100 = arith.constant 1.000000e+00 : f32
    %189 = vector.broadcast %cst_100 : f32 to vector<8x32xf32>
    %190 = arith.addf %188, %189 : vector<8x32xf32>
    %cst_101 = arith.constant 5.000000e-01 : f32
    %191 = vector.broadcast %cst_101 : f32 to vector<8x32xf32>
    %192 = arith.mulf %191, %190 : vector<8x32xf32>
    %193 = vector.extract_strided_slice %184 {offsets = [0, 32], sizes = [8, 32], strides = [1, 1]} : vector<8x128xf32> to vector<8x32xf32>
    %cst_102 = arith.constant 5.000000e-01 : f32
    %194 = vector.broadcast %cst_102 : f32 to vector<8x32xf32>
    %195 = arith.mulf %194, %193 : vector<8x32xf32>
    %196 = math.tanh %195 : vector<8x32xf32>
    %cst_103 = arith.constant 1.000000e+00 : f32
    %197 = vector.broadcast %cst_103 : f32 to vector<8x32xf32>
    %198 = arith.addf %196, %197 : vector<8x32xf32>
    %cst_104 = arith.constant 5.000000e-01 : f32
    %199 = vector.broadcast %cst_104 : f32 to vector<8x32xf32>
    %200 = arith.mulf %199, %198 : vector<8x32xf32>
    %201 = vector.extract_strided_slice %184 {offsets = [0, 64], sizes = [8, 32], strides = [1, 1]} : vector<8x128xf32> to vector<8x32xf32>
    %202 = math.tanh %201 : vector<8x32xf32>
    %203 = vector.extract_strided_slice %184 {offsets = [0, 96], sizes = [8, 32], strides = [1, 1]} : vector<8x128xf32> to vector<8x32xf32>
    %cst_105 = arith.constant 5.000000e-01 : f32
    %204 = vector.broadcast %cst_105 : f32 to vector<8x32xf32>
    %205 = arith.mulf %204, %203 : vector<8x32xf32>
    %206 = math.tanh %205 : vector<8x32xf32>
    %cst_106 = arith.constant 1.000000e+00 : f32
    %207 = vector.broadcast %cst_106 : f32 to vector<8x32xf32>
    %208 = arith.addf %206, %207 : vector<8x32xf32>
    %cst_107 = arith.constant 5.000000e-01 : f32
    %209 = vector.broadcast %cst_107 : f32 to vector<8x32xf32>
    %210 = arith.mulf %209, %208 : vector<8x32xf32>
    %211 = arith.mulf %200, %55 : vector<8x32xf32>
    %212 = arith.mulf %192, %202 : vector<8x32xf32>
    %213 = arith.addf %211, %212 : vector<8x32xf32>
    %214 = math.tanh %213 : vector<8x32xf32>
    %215 = arith.mulf %210, %214 : vector<8x32xf32>
    %216 = arith.select %60, %215, %47 : vector<8x32xi1>, vector<8x32xf32>
    %217 = arith.select %60, %213, %55 : vector<8x32xi1>, vector<8x32xf32>
    %cst_108 = arith.constant 0.000000e+00 : f32
    %218 = vector.broadcast %cst_108 : f32 to vector<8x32xf32>
    %219 = arith.select %60, %216, %218 : vector<8x32xi1>, vector<8x32xf32>
    %220 = arith.index_cast %c0_i32_63 : i32 to index
    %c0_109 = arith.constant 0 : index
    %c0_110 = arith.constant 0 : index
    %221 = vector.load %arg6[%220, %c0_109, %c0_110] : memref<4x8x32xf32, #tpu.memory_space<vmem>>, vector<1x8x32xf32>
    %222 = vector.shape_cast %221 : vector<1x8x32xf32> to vector<8x32xf32>
    %223 = vector.shape_cast %219 : vector<8x32xf32> to vector<1x8x32xf32>
    tpu.vector_store %arg6[%220, %c0_109, %c0_110], %223 {strides = array<i32>} : memref<4x8x32xf32, #tpu.memory_space<vmem>>, vector<1x8x32xf32>,
    %c1_i32 = arith.constant 1 : i32
    %224 = arith.addi %4, %c1_i32 : i32
    %225 = vector.broadcast %224 : i32 to vector<8x1xi32>
    %226 = arith.cmpi sgt, %3, %225 : vector<8x1xi32>
    %227 = vector.shape_cast %226 : vector<8x1xi1> to vector<8x1xi1>
    %228 = vector.broadcast %227 : vector<8x1xi1> to vector<8x32xi1>
    %c8_i32_111 = arith.constant 8 : i32
    %229 = arith.muli %c1_i32, %c8_i32_111 : i32
    %230 = tpu.assume_multiple %229, 8 : i32
    %231 = arith.index_cast %230 : i32 to index
    %c0_112 = arith.constant 0 : index
    %232 = vector.load %arg9[%231, %c0_112] : memref<32x128xf32, #tpu.memory_space<vmem>>, vector<8x128xf32>
    %233 = arith.truncf %99 : vector<8x32xf32> to vector<8x32xbf16>
    %cst_113 = arith.constant dense<0.000000e+00> : vector<8x128xf32>
    %234 = tpu.matmul %233, %15, %cst_113 {dimension_numbers = #tpu.dot_dimension_numbers<[1], [0], [0], [1], [0, 0, 1, 1], [], []>} : vector<8x32xbf16>, vector<32x128xbf16>, vector<8x128xf32> -> vector<8x128xf32>
    %235 = arith.addf %232, %234 : vector<8x128xf32>
    %236 = vector.extract_strided_slice %235 {offsets = [0, 0], sizes = [8, 32], strides = [1, 1]} : vector<8x128xf32> to vector<8x32xf32>
    %cst_114 = arith.constant 5.000000e-01 : f32
    %237 = vector.broadcast %cst_114 : f32 to vector<8x32xf32>
    %238 = arith.mulf %237, %236 : vector<8x32xf32>
    %239 = math.tanh %238 : vector<8x32xf32>
    %cst_115 = arith.constant 1.000000e+00 : f32
    %240 = vector.broadcast %cst_115 : f32 to vector<8x32xf32>
    %241 = arith.addf %239, %240 : vector<8x32xf32>
    %cst_116 = arith.constant 5.000000e-01 : f32
    %242 = vector.broadcast %cst_116 : f32 to vector<8x32xf32>
    %243 = arith.mulf %242, %241 : vector<8x32xf32>
    %244 = vector.extract_strided_slice %235 {offsets = [0, 32], sizes = [8, 32], strides = [1, 1]} : vector<8x128xf32> to vector<8x32xf32>
    %cst_117 = arith.constant 5.000000e-01 : f32
    %245 = vector.broadcast %cst_117 : f32 to vector<8x32xf32>
    %246 = arith.mulf %245, %244 : vector<8x32xf32>
    %247 = math.tanh %246 : vector<8x32xf32>
    %cst_118 = arith.constant 1.000000e+00 : f32
    %248 = vector.broadcast %cst_118 : f32 to vector<8x32xf32>
    %249 = arith.addf %247, %248 : vector<8x32xf32>
    %cst_119 = arith.constant 5.000000e-01 : f32
    %250 = vector.broadcast %cst_119 : f32 to vector<8x32xf32>
    %251 = arith.mulf %250, %249 : vector<8x32xf32>
    %252 = vector.extract_strided_slice %235 {offsets = [0, 64], sizes = [8, 32], strides = [1, 1]} : vector<8x128xf32> to vector<8x32xf32>
    %253 = math.tanh %252 : vector<8x32xf32>
    %254 = vector.extract_strided_slice %235 {offsets = [0, 96], sizes = [8, 32], strides = [1, 1]} : vector<8x128xf32> to vector<8x32xf32>
    %cst_120 = arith.constant 5.000000e-01 : f32
    %255 = vector.broadcast %cst_120 : f32 to vector<8x32xf32>
    %256 = arith.mulf %255, %254 : vector<8x32xf32>
    %257 = math.tanh %256 : vector<8x32xf32>
    %cst_121 = arith.constant 1.000000e+00 : f32
    %258 = vector.broadcast %cst_121 : f32 to vector<8x32xf32>
    %259 = arith.addf %257, %258 : vector<8x32xf32>
    %cst_122 = arith.constant 5.000000e-01 : f32
    %260 = vector.broadcast %cst_122 : f32 to vector<8x32xf32>
    %261 = arith.mulf %260, %259 : vector<8x32xf32>
    %262 = arith.mulf %251, %100 : vector<8x32xf32>
    %263 = arith.mulf %243, %253 : vector<8x32xf32>
    %264 = arith.addf %262, %263 : vector<8x32xf32>
    %265 = math.tanh %264 : vector<8x32xf32>
    %266 = arith.mulf %261, %265 : vector<8x32xf32>
    %267 = arith.select %228, %266, %99 : vector<8x32xi1>, vector<8x32xf32>
    %268 = arith.select %228, %264, %100 : vector<8x32xi1>, vector<8x32xf32>
    %269 = arith.truncf %267 : vector<8x32xf32> to vector<8x32xbf16>
    %cst_123 = arith.constant dense<0.000000e+00> : vector<8x128xf32>
    %270 = tpu.matmul %269, %23, %cst_123 {dimension_numbers = #tpu.dot_dimension_numbers<[1], [0], [0], [1], [0, 0, 1, 1], [], []>} : vector<8x32xbf16>, vector<32x128xbf16>, vector<8x128xf32> -> vector<8x128xf32>
    %271 = arith.truncf %138 : vector<8x32xf32> to vector<8x32xbf16>
    %cst_124 = arith.constant dense<0.000000e+00> : vector<8x128xf32>
    %272 = tpu.matmul %271, %17, %cst_124 {dimension_numbers = #tpu.dot_dimension_numbers<[1], [0], [0], [1], [0, 0, 1, 1], [], []>} : vector<8x32xbf16>, vector<32x128xbf16>, vector<8x128xf32> -> vector<8x128xf32>
    %273 = arith.addf %270, %272 : vector<8x128xf32>
    %274 = arith.addf %273, %31 : vector<8x128xf32>
    %275 = vector.extract_strided_slice %274 {offsets = [0, 0], sizes = [8, 32], strides = [1, 1]} : vector<8x128xf32> to vector<8x32xf32>
    %cst_125 = arith.constant 5.000000e-01 : f32
    %276 = vector.broadcast %cst_125 : f32 to vector<8x32xf32>
    %277 = arith.mulf %276, %275 : vector<8x32xf32>
    %278 = math.tanh %277 : vector<8x32xf32>
    %cst_126 = arith.constant 1.000000e+00 : f32
    %279 = vector.broadcast %cst_126 : f32 to vector<8x32xf32>
    %280 = arith.addf %278, %279 : vector<8x32xf32>
    %cst_127 = arith.constant 5.000000e-01 : f32
    %281 = vector.broadcast %cst_127 : f32 to vector<8x32xf32>
    %282 = arith.mulf %281, %280 : vector<8x32xf32>
    %283 = vector.extract_strided_slice %274 {offsets = [0, 32], sizes = [8, 32], strides = [1, 1]} : vector<8x128xf32> to vector<8x32xf32>
    %cst_128 = arith.constant 5.000000e-01 : f32
    %284 = vector.broadcast %cst_128 : f32 to vector<8x32xf32>
    %285 = arith.mulf %284, %283 : vector<8x32xf32>
    %286 = math.tanh %285 : vector<8x32xf32>
    %cst_129 = arith.constant 1.000000e+00 : f32
    %287 = vector.broadcast %cst_129 : f32 to vector<8x32xf32>
    %288 = arith.addf %286, %287 : vector<8x32xf32>
    %cst_130 = arith.constant 5.000000e-01 : f32
    %289 = vector.broadcast %cst_130 : f32 to vector<8x32xf32>
    %290 = arith.mulf %289, %288 : vector<8x32xf32>
    %291 = vector.extract_strided_slice %274 {offsets = [0, 64], sizes = [8, 32], strides = [1, 1]} : vector<8x128xf32> to vector<8x32xf32>
    %292 = math.tanh %291 : vector<8x32xf32>
    %293 = vector.extract_strided_slice %274 {offsets = [0, 96], sizes = [8, 32], strides = [1, 1]} : vector<8x128xf32> to vector<8x32xf32>
    %cst_131 = arith.constant 5.000000e-01 : f32
    %294 = vector.broadcast %cst_131 : f32 to vector<8x32xf32>
    %295 = arith.mulf %294, %293 : vector<8x32xf32>
    %296 = math.tanh %295 : vector<8x32xf32>
    %cst_132 = arith.constant 1.000000e+00 : f32
    %297 = vector.broadcast %cst_132 : f32 to vector<8x32xf32>
    %298 = arith.addf %296, %297 : vector<8x32xf32>
    %cst_133 = arith.constant 5.000000e-01 : f32
    %299 = vector.broadcast %cst_133 : f32 to vector<8x32xf32>
    %300 = arith.mulf %299, %298 : vector<8x32xf32>
    %301 = arith.mulf %290, %139 : vector<8x32xf32>
    %302 = arith.mulf %282, %292 : vector<8x32xf32>
    %303 = arith.addf %301, %302 : vector<8x32xf32>
    %304 = math.tanh %303 : vector<8x32xf32>
    %305 = arith.mulf %300, %304 : vector<8x32xf32>
    %306 = arith.select %228, %305, %138 : vector<8x32xi1>, vector<8x32xf32>
    %307 = arith.select %228, %303, %139 : vector<8x32xi1>, vector<8x32xf32>
    %308 = arith.truncf %306 : vector<8x32xf32> to vector<8x32xbf16>
    %cst_134 = arith.constant dense<0.000000e+00> : vector<8x128xf32>
    %309 = tpu.matmul %308, %25, %cst_134 {dimension_numbers = #tpu.dot_dimension_numbers<[1], [0], [0], [1], [0, 0, 1, 1], [], []>} : vector<8x32xbf16>, vector<32x128xbf16>, vector<8x128xf32> -> vector<8x128xf32>
    %310 = arith.truncf %177 : vector<8x32xf32> to vector<8x32xbf16>
    %cst_135 = arith.constant dense<0.000000e+00> : vector<8x128xf32>
    %311 = tpu.matmul %310, %19, %cst_135 {dimension_numbers = #tpu.dot_dimension_numbers<[1], [0], [0], [1], [0, 0, 1, 1], [], []>} : vector<8x32xbf16>, vector<32x128xbf16>, vector<8x128xf32> -> vector<8x128xf32>
    %312 = arith.addf %309, %311 : vector<8x128xf32>
    %313 = arith.addf %312, %35 : vector<8x128xf32>
    %314 = vector.extract_strided_slice %313 {offsets = [0, 0], sizes = [8, 32], strides = [1, 1]} : vector<8x128xf32> to vector<8x32xf32>
    %cst_136 = arith.constant 5.000000e-01 : f32
    %315 = vector.broadcast %cst_136 : f32 to vector<8x32xf32>
    %316 = arith.mulf %315, %314 : vector<8x32xf32>
    %317 = math.tanh %316 : vector<8x32xf32>
    %cst_137 = arith.constant 1.000000e+00 : f32
    %318 = vector.broadcast %cst_137 : f32 to vector<8x32xf32>
    %319 = arith.addf %317, %318 : vector<8x32xf32>
    %cst_138 = arith.constant 5.000000e-01 : f32
    %320 = vector.broadcast %cst_138 : f32 to vector<8x32xf32>
    %321 = arith.mulf %320, %319 : vector<8x32xf32>
    %322 = vector.extract_strided_slice %313 {offsets = [0, 32], sizes = [8, 32], strides = [1, 1]} : vector<8x128xf32> to vector<8x32xf32>
    %cst_139 = arith.constant 5.000000e-01 : f32
    %323 = vector.broadcast %cst_139 : f32 to vector<8x32xf32>
    %324 = arith.mulf %323, %322 : vector<8x32xf32>
    %325 = math.tanh %324 : vector<8x32xf32>
    %cst_140 = arith.constant 1.000000e+00 : f32
    %326 = vector.broadcast %cst_140 : f32 to vector<8x32xf32>
    %327 = arith.addf %325, %326 : vector<8x32xf32>
    %cst_141 = arith.constant 5.000000e-01 : f32
    %328 = vector.broadcast %cst_141 : f32 to vector<8x32xf32>
    %329 = arith.mulf %328, %327 : vector<8x32xf32>
    %330 = vector.extract_strided_slice %313 {offsets = [0, 64], sizes = [8, 32], strides = [1, 1]} : vector<8x128xf32> to vector<8x32xf32>
    %331 = math.tanh %330 : vector<8x32xf32>
    %332 = vector.extract_strided_slice %313 {offsets = [0, 96], sizes = [8, 32], strides = [1, 1]} : vector<8x128xf32> to vector<8x32xf32>
    %cst_142 = arith.constant 5.000000e-01 : f32
    %333 = vector.broadcast %cst_142 : f32 to vector<8x32xf32>
    %334 = arith.mulf %333, %332 : vector<8x32xf32>
    %335 = math.tanh %334 : vector<8x32xf32>
    %cst_143 = arith.constant 1.000000e+00 : f32
    %336 = vector.broadcast %cst_143 : f32 to vector<8x32xf32>
    %337 = arith.addf %335, %336 : vector<8x32xf32>
    %cst_144 = arith.constant 5.000000e-01 : f32
    %338 = vector.broadcast %cst_144 : f32 to vector<8x32xf32>
    %339 = arith.mulf %338, %337 : vector<8x32xf32>
    %340 = arith.mulf %329, %178 : vector<8x32xf32>
    %341 = arith.mulf %321, %331 : vector<8x32xf32>
    %342 = arith.addf %340, %341 : vector<8x32xf32>
    %343 = math.tanh %342 : vector<8x32xf32>
    %344 = arith.mulf %339, %343 : vector<8x32xf32>
    %345 = arith.select %228, %344, %177 : vector<8x32xi1>, vector<8x32xf32>
    %346 = arith.select %228, %342, %178 : vector<8x32xi1>, vector<8x32xf32>
    %347 = arith.truncf %345 : vector<8x32xf32> to vector<8x32xbf16>
    %cst_145 = arith.constant dense<0.000000e+00> : vector<8x128xf32>
    %348 = tpu.matmul %347, %27, %cst_145 {dimension_numbers = #tpu.dot_dimension_numbers<[1], [0], [0], [1], [0, 0, 1, 1], [], []>} : vector<8x32xbf16>, vector<32x128xbf16>, vector<8x128xf32> -> vector<8x128xf32>
    %349 = arith.truncf %216 : vector<8x32xf32> to vector<8x32xbf16>
    %cst_146 = arith.constant dense<0.000000e+00> : vector<8x128xf32>
    %350 = tpu.matmul %349, %21, %cst_146 {dimension_numbers = #tpu.dot_dimension_numbers<[1], [0], [0], [1], [0, 0, 1, 1], [], []>} : vector<8x32xbf16>, vector<32x128xbf16>, vector<8x128xf32> -> vector<8x128xf32>
    %351 = arith.addf %348, %350 : vector<8x128xf32>
    %352 = arith.addf %351, %39 : vector<8x128xf32>
    %353 = vector.extract_strided_slice %352 {offsets = [0, 0], sizes = [8, 32], strides = [1, 1]} : vector<8x128xf32> to vector<8x32xf32>
    %cst_147 = arith.constant 5.000000e-01 : f32
    %354 = vector.broadcast %cst_147 : f32 to vector<8x32xf32>
    %355 = arith.mulf %354, %353 : vector<8x32xf32>
    %356 = math.tanh %355 : vector<8x32xf32>
    %cst_148 = arith.constant 1.000000e+00 : f32
    %357 = vector.broadcast %cst_148 : f32 to vector<8x32xf32>
    %358 = arith.addf %356, %357 : vector<8x32xf32>
    %cst_149 = arith.constant 5.000000e-01 : f32
    %359 = vector.broadcast %cst_149 : f32 to vector<8x32xf32>
    %360 = arith.mulf %359, %358 : vector<8x32xf32>
    %361 = vector.extract_strided_slice %352 {offsets = [0, 32], sizes = [8, 32], strides = [1, 1]} : vector<8x128xf32> to vector<8x32xf32>
    %cst_150 = arith.constant 5.000000e-01 : f32
    %362 = vector.broadcast %cst_150 : f32 to vector<8x32xf32>
    %363 = arith.mulf %362, %361 : vector<8x32xf32>
    %364 = math.tanh %363 : vector<8x32xf32>
    %cst_151 = arith.constant 1.000000e+00 : f32
    %365 = vector.broadcast %cst_151 : f32 to vector<8x32xf32>
    %366 = arith.addf %364, %365 : vector<8x32xf32>
    %cst_152 = arith.constant 5.000000e-01 : f32
    %367 = vector.broadcast %cst_152 : f32 to vector<8x32xf32>
    %368 = arith.mulf %367, %366 : vector<8x32xf32>
    %369 = vector.extract_strided_slice %352 {offsets = [0, 64], sizes = [8, 32], strides = [1, 1]} : vector<8x128xf32> to vector<8x32xf32>
    %370 = math.tanh %369 : vector<8x32xf32>
    %371 = vector.extract_strided_slice %352 {offsets = [0, 96], sizes = [8, 32], strides = [1, 1]} : vector<8x128xf32> to vector<8x32xf32>
    %cst_153 = arith.constant 5.000000e-01 : f32
    %372 = vector.broadcast %cst_153 : f32 to vector<8x32xf32>
    %373 = arith.mulf %372, %371 : vector<8x32xf32>
    %374 = math.tanh %373 : vector<8x32xf32>
    %cst_154 = arith.constant 1.000000e+00 : f32
    %375 = vector.broadcast %cst_154 : f32 to vector<8x32xf32>
    %376 = arith.addf %374, %375 : vector<8x32xf32>
    %cst_155 = arith.constant 5.000000e-01 : f32
    %377 = vector.broadcast %cst_155 : f32 to vector<8x32xf32>
    %378 = arith.mulf %377, %376 : vector<8x32xf32>
    %379 = arith.mulf %368, %217 : vector<8x32xf32>
    %380 = arith.mulf %360, %370 : vector<8x32xf32>
    %381 = arith.addf %379, %380 : vector<8x32xf32>
    %382 = math.tanh %381 : vector<8x32xf32>
    %383 = arith.mulf %378, %382 : vector<8x32xf32>
    %384 = arith.select %228, %383, %216 : vector<8x32xi1>, vector<8x32xf32>
    %385 = arith.select %228, %381, %217 : vector<8x32xi1>, vector<8x32xf32>
    %cst_156 = arith.constant 0.000000e+00 : f32
    %386 = vector.broadcast %cst_156 : f32 to vector<8x32xf32>
    %387 = arith.select %228, %384, %386 : vector<8x32xi1>, vector<8x32xf32>
    %388 = arith.index_cast %c1_i32 : i32 to index
    %c0_157 = arith.constant 0 : index
    %c0_158 = arith.constant 0 : index
    %389 = vector.load %arg6[%388, %c0_157, %c0_158] : memref<4x8x32xf32, #tpu.memory_space<vmem>>, vector<1x8x32xf32>
    %390 = vector.shape_cast %389 : vector<1x8x32xf32> to vector<8x32xf32>
    %391 = vector.shape_cast %387 : vector<8x32xf32> to vector<1x8x32xf32>
    tpu.vector_store %arg6[%388, %c0_157, %c0_158], %391 {strides = array<i32>} : memref<4x8x32xf32, #tpu.memory_space<vmem>>, vector<1x8x32xf32>,
    %c2_i32 = arith.constant 2 : i32
    %392 = arith.addi %4, %c2_i32 : i32
    %393 = vector.broadcast %392 : i32 to vector<8x1xi32>
    %394 = arith.cmpi sgt, %3, %393 : vector<8x1xi32>
    %395 = vector.shape_cast %394 : vector<8x1xi1> to vector<8x1xi1>
    %396 = vector.broadcast %395 : vector<8x1xi1> to vector<8x32xi1>
    %c8_i32_159 = arith.constant 8 : i32
    %397 = arith.muli %c2_i32, %c8_i32_159 : i32
    %398 = tpu.assume_multiple %397, 8 : i32
    %399 = arith.index_cast %398 : i32 to index
    %c0_160 = arith.constant 0 : index
    %400 = vector.load %arg9[%399, %c0_160] : memref<32x128xf32, #tpu.memory_space<vmem>>, vector<8x128xf32>
    %401 = arith.truncf %267 : vector<8x32xf32> to vector<8x32xbf16>
    %cst_161 = arith.constant dense<0.000000e+00> : vector<8x128xf32>
    %402 = tpu.matmul %401, %15, %cst_161 {dimension_numbers = #tpu.dot_dimension_numbers<[1], [0], [0], [1], [0, 0, 1, 1], [], []>} : vector<8x32xbf16>, vector<32x128xbf16>, vector<8x128xf32> -> vector<8x128xf32>
    %403 = arith.addf %400, %402 : vector<8x128xf32>
    %404 = vector.extract_strided_slice %403 {offsets = [0, 0], sizes = [8, 32], strides = [1, 1]} : vector<8x128xf32> to vector<8x32xf32>
    %cst_162 = arith.constant 5.000000e-01 : f32
    %405 = vector.broadcast %cst_162 : f32 to vector<8x32xf32>
    %406 = arith.mulf %405, %404 : vector<8x32xf32>
    %407 = math.tanh %406 : vector<8x32xf32>
    %cst_163 = arith.constant 1.000000e+00 : f32
    %408 = vector.broadcast %cst_163 : f32 to vector<8x32xf32>
    %409 = arith.addf %407, %408 : vector<8x32xf32>
    %cst_164 = arith.constant 5.000000e-01 : f32
    %410 = vector.broadcast %cst_164 : f32 to vector<8x32xf32>
    %411 = arith.mulf %410, %409 : vector<8x32xf32>
    %412 = vector.extract_strided_slice %403 {offsets = [0, 32], sizes = [8, 32], strides = [1, 1]} : vector<8x128xf32> to vector<8x32xf32>
    %cst_165 = arith.constant 5.000000e-01 : f32
    %413 = vector.broadcast %cst_165 : f32 to vector<8x32xf32>
    %414 = arith.mulf %413, %412 : vector<8x32xf32>
    %415 = math.tanh %414 : vector<8x32xf32>
    %cst_166 = arith.constant 1.000000e+00 : f32
    %416 = vector.broadcast %cst_166 : f32 to vector<8x32xf32>
    %417 = arith.addf %415, %416 : vector<8x32xf32>
    %cst_167 = arith.constant 5.000000e-01 : f32
    %418 = vector.broadcast %cst_167 : f32 to vector<8x32xf32>
    %419 = arith.mulf %418, %417 : vector<8x32xf32>
    %420 = vector.extract_strided_slice %403 {offsets = [0, 64], sizes = [8, 32], strides = [1, 1]} : vector<8x128xf32> to vector<8x32xf32>
    %421 = math.tanh %420 : vector<8x32xf32>
    %422 = vector.extract_strided_slice %403 {offsets = [0, 96], sizes = [8, 32], strides = [1, 1]} : vector<8x128xf32> to vector<8x32xf32>
    %cst_168 = arith.constant 5.000000e-01 : f32
    %423 = vector.broadcast %cst_168 : f32 to vector<8x32xf32>
    %424 = arith.mulf %423, %422 : vector<8x32xf32>
    %425 = math.tanh %424 : vector<8x32xf32>
    %cst_169 = arith.constant 1.000000e+00 : f32
    %426 = vector.broadcast %cst_169 : f32 to vector<8x32xf32>
    %427 = arith.addf %425, %426 : vector<8x32xf32>
    %cst_170 = arith.constant 5.000000e-01 : f32
    %428 = vector.broadcast %cst_170 : f32 to vector<8x32xf32>
    %429 = arith.mulf %428, %427 : vector<8x32xf32>
    %430 = arith.mulf %419, %268 : vector<8x32xf32>
    %431 = arith.mulf %411, %421 : vector<8x32xf32>
    %432 = arith.addf %430, %431 : vector<8x32xf32>
    %433 = math.tanh %432 : vector<8x32xf32>
    %434 = arith.mulf %429, %433 : vector<8x32xf32>
    %435 = arith.select %396, %434, %267 : vector<8x32xi1>, vector<8x32xf32>
    %436 = arith.select %396, %432, %268 : vector<8x32xi1>, vector<8x32xf32>
    %437 = arith.truncf %435 : vector<8x32xf32> to vector<8x32xbf16>
    %cst_171 = arith.constant dense<0.000000e+00> : vector<8x128xf32>
    %438 = tpu.matmul %437, %23, %cst_171 {dimension_numbers = #tpu.dot_dimension_numbers<[1], [0], [0], [1], [0, 0, 1, 1], [], []>} : vector<8x32xbf16>, vector<32x128xbf16>, vector<8x128xf32> -> vector<8x128xf32>
    %439 = arith.truncf %306 : vector<8x32xf32> to vector<8x32xbf16>
    %cst_172 = arith.constant dense<0.000000e+00> : vector<8x128xf32>
    %440 = tpu.matmul %439, %17, %cst_172 {dimension_numbers = #tpu.dot_dimension_numbers<[1], [0], [0], [1], [0, 0, 1, 1], [], []>} : vector<8x32xbf16>, vector<32x128xbf16>, vector<8x128xf32> -> vector<8x128xf32>
    %441 = arith.addf %438, %440 : vector<8x128xf32>
    %442 = arith.addf %441, %31 : vector<8x128xf32>
    %443 = vector.extract_strided_slice %442 {offsets = [0, 0], sizes = [8, 32], strides = [1, 1]} : vector<8x128xf32> to vector<8x32xf32>
    %cst_173 = arith.constant 5.000000e-01 : f32
    %444 = vector.broadcast %cst_173 : f32 to vector<8x32xf32>
    %445 = arith.mulf %444, %443 : vector<8x32xf32>
    %446 = math.tanh %445 : vector<8x32xf32>
    %cst_174 = arith.constant 1.000000e+00 : f32
    %447 = vector.broadcast %cst_174 : f32 to vector<8x32xf32>
    %448 = arith.addf %446, %447 : vector<8x32xf32>
    %cst_175 = arith.constant 5.000000e-01 : f32
    %449 = vector.broadcast %cst_175 : f32 to vector<8x32xf32>
    %450 = arith.mulf %449, %448 : vector<8x32xf32>
    %451 = vector.extract_strided_slice %442 {offsets = [0, 32], sizes = [8, 32], strides = [1, 1]} : vector<8x128xf32> to vector<8x32xf32>
    %cst_176 = arith.constant 5.000000e-01 : f32
    %452 = vector.broadcast %cst_176 : f32 to vector<8x32xf32>
    %453 = arith.mulf %452, %451 : vector<8x32xf32>
    %454 = math.tanh %453 : vector<8x32xf32>
    %cst_177 = arith.constant 1.000000e+00 : f32
    %455 = vector.broadcast %cst_177 : f32 to vector<8x32xf32>
    %456 = arith.addf %454, %455 : vector<8x32xf32>
    %cst_178 = arith.constant 5.000000e-01 : f32
    %457 = vector.broadcast %cst_178 : f32 to vector<8x32xf32>
    %458 = arith.mulf %457, %456 : vector<8x32xf32>
    %459 = vector.extract_strided_slice %442 {offsets = [0, 64], sizes = [8, 32], strides = [1, 1]} : vector<8x128xf32> to vector<8x32xf32>
    %460 = math.tanh %459 : vector<8x32xf32>
    %461 = vector.extract_strided_slice %442 {offsets = [0, 96], sizes = [8, 32], strides = [1, 1]} : vector<8x128xf32> to vector<8x32xf32>
    %cst_179 = arith.constant 5.000000e-01 : f32
    %462 = vector.broadcast %cst_179 : f32 to vector<8x32xf32>
    %463 = arith.mulf %462, %461 : vector<8x32xf32>
    %464 = math.tanh %463 : vector<8x32xf32>
    %cst_180 = arith.constant 1.000000e+00 : f32
    %465 = vector.broadcast %cst_180 : f32 to vector<8x32xf32>
    %466 = arith.addf %464, %465 : vector<8x32xf32>
    %cst_181 = arith.constant 5.000000e-01 : f32
    %467 = vector.broadcast %cst_181 : f32 to vector<8x32xf32>
    %468 = arith.mulf %467, %466 : vector<8x32xf32>
    %469 = arith.mulf %458, %307 : vector<8x32xf32>
    %470 = arith.mulf %450, %460 : vector<8x32xf32>
    %471 = arith.addf %469, %470 : vector<8x32xf32>
    %472 = math.tanh %471 : vector<8x32xf32>
    %473 = arith.mulf %468, %472 : vector<8x32xf32>
    %474 = arith.select %396, %473, %306 : vector<8x32xi1>, vector<8x32xf32>
    %475 = arith.select %396, %471, %307 : vector<8x32xi1>, vector<8x32xf32>
    %476 = arith.truncf %474 : vector<8x32xf32> to vector<8x32xbf16>
    %cst_182 = arith.constant dense<0.000000e+00> : vector<8x128xf32>
    %477 = tpu.matmul %476, %25, %cst_182 {dimension_numbers = #tpu.dot_dimension_numbers<[1], [0], [0], [1], [0, 0, 1, 1], [], []>} : vector<8x32xbf16>, vector<32x128xbf16>, vector<8x128xf32> -> vector<8x128xf32>
    %478 = arith.truncf %345 : vector<8x32xf32> to vector<8x32xbf16>
    %cst_183 = arith.constant dense<0.000000e+00> : vector<8x128xf32>
    %479 = tpu.matmul %478, %19, %cst_183 {dimension_numbers = #tpu.dot_dimension_numbers<[1], [0], [0], [1], [0, 0, 1, 1], [], []>} : vector<8x32xbf16>, vector<32x128xbf16>, vector<8x128xf32> -> vector<8x128xf32>
    %480 = arith.addf %477, %479 : vector<8x128xf32>
    %481 = arith.addf %480, %35 : vector<8x128xf32>
    %482 = vector.extract_strided_slice %481 {offsets = [0, 0], sizes = [8, 32], strides = [1, 1]} : vector<8x128xf32> to vector<8x32xf32>
    %cst_184 = arith.constant 5.000000e-01 : f32
    %483 = vector.broadcast %cst_184 : f32 to vector<8x32xf32>
    %484 = arith.mulf %483, %482 : vector<8x32xf32>
    %485 = math.tanh %484 : vector<8x32xf32>
    %cst_185 = arith.constant 1.000000e+00 : f32
    %486 = vector.broadcast %cst_185 : f32 to vector<8x32xf32>
    %487 = arith.addf %485, %486 : vector<8x32xf32>
    %cst_186 = arith.constant 5.000000e-01 : f32
    %488 = vector.broadcast %cst_186 : f32 to vector<8x32xf32>
    %489 = arith.mulf %488, %487 : vector<8x32xf32>
    %490 = vector.extract_strided_slice %481 {offsets = [0, 32], sizes = [8, 32], strides = [1, 1]} : vector<8x128xf32> to vector<8x32xf32>
    %cst_187 = arith.constant 5.000000e-01 : f32
    %491 = vector.broadcast %cst_187 : f32 to vector<8x32xf32>
    %492 = arith.mulf %491, %490 : vector<8x32xf32>
    %493 = math.tanh %492 : vector<8x32xf32>
    %cst_188 = arith.constant 1.000000e+00 : f32
    %494 = vector.broadcast %cst_188 : f32 to vector<8x32xf32>
    %495 = arith.addf %493, %494 : vector<8x32xf32>
    %cst_189 = arith.constant 5.000000e-01 : f32
    %496 = vector.broadcast %cst_189 : f32 to vector<8x32xf32>
    %497 = arith.mulf %496, %495 : vector<8x32xf32>
    %498 = vector.extract_strided_slice %481 {offsets = [0, 64], sizes = [8, 32], strides = [1, 1]} : vector<8x128xf32> to vector<8x32xf32>
    %499 = math.tanh %498 : vector<8x32xf32>
    %500 = vector.extract_strided_slice %481 {offsets = [0, 96], sizes = [8, 32], strides = [1, 1]} : vector<8x128xf32> to vector<8x32xf32>
    %cst_190 = arith.constant 5.000000e-01 : f32
    %501 = vector.broadcast %cst_190 : f32 to vector<8x32xf32>
    %502 = arith.mulf %501, %500 : vector<8x32xf32>
    %503 = math.tanh %502 : vector<8x32xf32>
    %cst_191 = arith.constant 1.000000e+00 : f32
    %504 = vector.broadcast %cst_191 : f32 to vector<8x32xf32>
    %505 = arith.addf %503, %504 : vector<8x32xf32>
    %cst_192 = arith.constant 5.000000e-01 : f32
    %506 = vector.broadcast %cst_192 : f32 to vector<8x32xf32>
    %507 = arith.mulf %506, %505 : vector<8x32xf32>
    %508 = arith.mulf %497, %346 : vector<8x32xf32>
    %509 = arith.mulf %489, %499 : vector<8x32xf32>
    %510 = arith.addf %508, %509 : vector<8x32xf32>
    %511 = math.tanh %510 : vector<8x32xf32>
    %512 = arith.mulf %507, %511 : vector<8x32xf32>
    %513 = arith.select %396, %512, %345 : vector<8x32xi1>, vector<8x32xf32>
    %514 = arith.select %396, %510, %346 : vector<8x32xi1>, vector<8x32xf32>
    %515 = arith.truncf %513 : vector<8x32xf32> to vector<8x32xbf16>
    %cst_193 = arith.constant dense<0.000000e+00> : vector<8x128xf32>
    %516 = tpu.matmul %515, %27, %cst_193 {dimension_numbers = #tpu.dot_dimension_numbers<[1], [0], [0], [1], [0, 0, 1, 1], [], []>} : vector<8x32xbf16>, vector<32x128xbf16>, vector<8x128xf32> -> vector<8x128xf32>
    %517 = arith.truncf %384 : vector<8x32xf32> to vector<8x32xbf16>
    %cst_194 = arith.constant dense<0.000000e+00> : vector<8x128xf32>
    %518 = tpu.matmul %517, %21, %cst_194 {dimension_numbers = #tpu.dot_dimension_numbers<[1], [0], [0], [1], [0, 0, 1, 1], [], []>} : vector<8x32xbf16>, vector<32x128xbf16>, vector<8x128xf32> -> vector<8x128xf32>
    %519 = arith.addf %516, %518 : vector<8x128xf32>
    %520 = arith.addf %519, %39 : vector<8x128xf32>
    %521 = vector.extract_strided_slice %520 {offsets = [0, 0], sizes = [8, 32], strides = [1, 1]} : vector<8x128xf32> to vector<8x32xf32>
    %cst_195 = arith.constant 5.000000e-01 : f32
    %522 = vector.broadcast %cst_195 : f32 to vector<8x32xf32>
    %523 = arith.mulf %522, %521 : vector<8x32xf32>
    %524 = math.tanh %523 : vector<8x32xf32>
    %cst_196 = arith.constant 1.000000e+00 : f32
    %525 = vector.broadcast %cst_196 : f32 to vector<8x32xf32>
    %526 = arith.addf %524, %525 : vector<8x32xf32>
    %cst_197 = arith.constant 5.000000e-01 : f32
    %527 = vector.broadcast %cst_197 : f32 to vector<8x32xf32>
    %528 = arith.mulf %527, %526 : vector<8x32xf32>
    %529 = vector.extract_strided_slice %520 {offsets = [0, 32], sizes = [8, 32], strides = [1, 1]} : vector<8x128xf32> to vector<8x32xf32>
    %cst_198 = arith.constant 5.000000e-01 : f32
    %530 = vector.broadcast %cst_198 : f32 to vector<8x32xf32>
    %531 = arith.mulf %530, %529 : vector<8x32xf32>
    %532 = math.tanh %531 : vector<8x32xf32>
    %cst_199 = arith.constant 1.000000e+00 : f32
    %533 = vector.broadcast %cst_199 : f32 to vector<8x32xf32>
    %534 = arith.addf %532, %533 : vector<8x32xf32>
    %cst_200 = arith.constant 5.000000e-01 : f32
    %535 = vector.broadcast %cst_200 : f32 to vector<8x32xf32>
    %536 = arith.mulf %535, %534 : vector<8x32xf32>
    %537 = vector.extract_strided_slice %520 {offsets = [0, 64], sizes = [8, 32], strides = [1, 1]} : vector<8x128xf32> to vector<8x32xf32>
    %538 = math.tanh %537 : vector<8x32xf32>
    %539 = vector.extract_strided_slice %520 {offsets = [0, 96], sizes = [8, 32], strides = [1, 1]} : vector<8x128xf32> to vector<8x32xf32>
    %cst_201 = arith.constant 5.000000e-01 : f32
    %540 = vector.broadcast %cst_201 : f32 to vector<8x32xf32>
    %541 = arith.mulf %540, %539 : vector<8x32xf32>
    %542 = math.tanh %541 : vector<8x32xf32>
    %cst_202 = arith.constant 1.000000e+00 : f32
    %543 = vector.broadcast %cst_202 : f32 to vector<8x32xf32>
    %544 = arith.addf %542, %543 : vector<8x32xf32>
    %cst_203 = arith.constant 5.000000e-01 : f32
    %545 = vector.broadcast %cst_203 : f32 to vector<8x32xf32>
    %546 = arith.mulf %545, %544 : vector<8x32xf32>
    %547 = arith.mulf %536, %385 : vector<8x32xf32>
    %548 = arith.mulf %528, %538 : vector<8x32xf32>
    %549 = arith.addf %547, %548 : vector<8x32xf32>
    %550 = math.tanh %549 : vector<8x32xf32>
    %551 = arith.mulf %546, %550 : vector<8x32xf32>
    %552 = arith.select %396, %551, %384 : vector<8x32xi1>, vector<8x32xf32>
    %553 = arith.select %396, %549, %385 : vector<8x32xi1>, vector<8x32xf32>
    %cst_204 = arith.constant 0.000000e+00 : f32
    %554 = vector.broadcast %cst_204 : f32 to vector<8x32xf32>
    %555 = arith.select %396, %552, %554 : vector<8x32xi1>, vector<8x32xf32>
    %556 = arith.index_cast %c2_i32 : i32 to index
    %c0_205 = arith.constant 0 : index
    %c0_206 = arith.constant 0 : index
    %557 = vector.load %arg6[%556, %c0_205, %c0_206] : memref<4x8x32xf32, #tpu.memory_space<vmem>>, vector<1x8x32xf32>
    %558 = vector.shape_cast %557 : vector<1x8x32xf32> to vector<8x32xf32>
    %559 = vector.shape_cast %555 : vector<8x32xf32> to vector<1x8x32xf32>
    tpu.vector_store %arg6[%556, %c0_205, %c0_206], %559 {strides = array<i32>} : memref<4x8x32xf32, #tpu.memory_space<vmem>>, vector<1x8x32xf32>,
    %c3_i32 = arith.constant 3 : i32
    %560 = arith.addi %4, %c3_i32 : i32
    %561 = vector.broadcast %560 : i32 to vector<8x1xi32>
    %562 = arith.cmpi sgt, %3, %561 : vector<8x1xi32>
    %563 = vector.shape_cast %562 : vector<8x1xi1> to vector<8x1xi1>
    %564 = vector.broadcast %563 : vector<8x1xi1> to vector<8x32xi1>
    %c8_i32_207 = arith.constant 8 : i32
    %565 = arith.muli %c3_i32, %c8_i32_207 : i32
    %566 = tpu.assume_multiple %565, 8 : i32
    %567 = arith.index_cast %566 : i32 to index
    %c0_208 = arith.constant 0 : index
    %568 = vector.load %arg9[%567, %c0_208] : memref<32x128xf32, #tpu.memory_space<vmem>>, vector<8x128xf32>
    %569 = arith.truncf %435 : vector<8x32xf32> to vector<8x32xbf16>
    %cst_209 = arith.constant dense<0.000000e+00> : vector<8x128xf32>
    %570 = tpu.matmul %569, %15, %cst_209 {dimension_numbers = #tpu.dot_dimension_numbers<[1], [0], [0], [1], [0, 0, 1, 1], [], []>} : vector<8x32xbf16>, vector<32x128xbf16>, vector<8x128xf32> -> vector<8x128xf32>
    %571 = arith.addf %568, %570 : vector<8x128xf32>
    %572 = vector.extract_strided_slice %571 {offsets = [0, 0], sizes = [8, 32], strides = [1, 1]} : vector<8x128xf32> to vector<8x32xf32>
    %cst_210 = arith.constant 5.000000e-01 : f32
    %573 = vector.broadcast %cst_210 : f32 to vector<8x32xf32>
    %574 = arith.mulf %573, %572 : vector<8x32xf32>
    %575 = math.tanh %574 : vector<8x32xf32>
    %cst_211 = arith.constant 1.000000e+00 : f32
    %576 = vector.broadcast %cst_211 : f32 to vector<8x32xf32>
    %577 = arith.addf %575, %576 : vector<8x32xf32>
    %cst_212 = arith.constant 5.000000e-01 : f32
    %578 = vector.broadcast %cst_212 : f32 to vector<8x32xf32>
    %579 = arith.mulf %578, %577 : vector<8x32xf32>
    %580 = vector.extract_strided_slice %571 {offsets = [0, 32], sizes = [8, 32], strides = [1, 1]} : vector<8x128xf32> to vector<8x32xf32>
    %cst_213 = arith.constant 5.000000e-01 : f32
    %581 = vector.broadcast %cst_213 : f32 to vector<8x32xf32>
    %582 = arith.mulf %581, %580 : vector<8x32xf32>
    %583 = math.tanh %582 : vector<8x32xf32>
    %cst_214 = arith.constant 1.000000e+00 : f32
    %584 = vector.broadcast %cst_214 : f32 to vector<8x32xf32>
    %585 = arith.addf %583, %584 : vector<8x32xf32>
    %cst_215 = arith.constant 5.000000e-01 : f32
    %586 = vector.broadcast %cst_215 : f32 to vector<8x32xf32>
    %587 = arith.mulf %586, %585 : vector<8x32xf32>
    %588 = vector.extract_strided_slice %571 {offsets = [0, 64], sizes = [8, 32], strides = [1, 1]} : vector<8x128xf32> to vector<8x32xf32>
    %589 = math.tanh %588 : vector<8x32xf32>
    %590 = vector.extract_strided_slice %571 {offsets = [0, 96], sizes = [8, 32], strides = [1, 1]} : vector<8x128xf32> to vector<8x32xf32>
    %cst_216 = arith.constant 5.000000e-01 : f32
    %591 = vector.broadcast %cst_216 : f32 to vector<8x32xf32>
    %592 = arith.mulf %591, %590 : vector<8x32xf32>
    %593 = math.tanh %592 : vector<8x32xf32>
    %cst_217 = arith.constant 1.000000e+00 : f32
    %594 = vector.broadcast %cst_217 : f32 to vector<8x32xf32>
    %595 = arith.addf %593, %594 : vector<8x32xf32>
    %cst_218 = arith.constant 5.000000e-01 : f32
    %596 = vector.broadcast %cst_218 : f32 to vector<8x32xf32>
    %597 = arith.mulf %596, %595 : vector<8x32xf32>
    %598 = arith.mulf %587, %436 : vector<8x32xf32>
    %599 = arith.mulf %579, %589 : vector<8x32xf32>
    %600 = arith.addf %598, %599 : vector<8x32xf32>
    %601 = math.tanh %600 : vector<8x32xf32>
    %602 = arith.mulf %597, %601 : vector<8x32xf32>
    %603 = arith.select %564, %602, %435 : vector<8x32xi1>, vector<8x32xf32>
    %604 = arith.select %564, %600, %436 : vector<8x32xi1>, vector<8x32xf32>
    %605 = arith.truncf %603 : vector<8x32xf32> to vector<8x32xbf16>
    %cst_219 = arith.constant dense<0.000000e+00> : vector<8x128xf32>
    %606 = tpu.matmul %605, %23, %cst_219 {dimension_numbers = #tpu.dot_dimension_numbers<[1], [0], [0], [1], [0, 0, 1, 1], [], []>} : vector<8x32xbf16>, vector<32x128xbf16>, vector<8x128xf32> -> vector<8x128xf32>
    %607 = arith.truncf %474 : vector<8x32xf32> to vector<8x32xbf16>
    %cst_220 = arith.constant dense<0.000000e+00> : vector<8x128xf32>
    %608 = tpu.matmul %607, %17, %cst_220 {dimension_numbers = #tpu.dot_dimension_numbers<[1], [0], [0], [1], [0, 0, 1, 1], [], []>} : vector<8x32xbf16>, vector<32x128xbf16>, vector<8x128xf32> -> vector<8x128xf32>
    %609 = arith.addf %606, %608 : vector<8x128xf32>
    %610 = arith.addf %609, %31 : vector<8x128xf32>
    %611 = vector.extract_strided_slice %610 {offsets = [0, 0], sizes = [8, 32], strides = [1, 1]} : vector<8x128xf32> to vector<8x32xf32>
    %cst_221 = arith.constant 5.000000e-01 : f32
    %612 = vector.broadcast %cst_221 : f32 to vector<8x32xf32>
    %613 = arith.mulf %612, %611 : vector<8x32xf32>
    %614 = math.tanh %613 : vector<8x32xf32>
    %cst_222 = arith.constant 1.000000e+00 : f32
    %615 = vector.broadcast %cst_222 : f32 to vector<8x32xf32>
    %616 = arith.addf %614, %615 : vector<8x32xf32>
    %cst_223 = arith.constant 5.000000e-01 : f32
    %617 = vector.broadcast %cst_223 : f32 to vector<8x32xf32>
    %618 = arith.mulf %617, %616 : vector<8x32xf32>
    %619 = vector.extract_strided_slice %610 {offsets = [0, 32], sizes = [8, 32], strides = [1, 1]} : vector<8x128xf32> to vector<8x32xf32>
    %cst_224 = arith.constant 5.000000e-01 : f32
    %620 = vector.broadcast %cst_224 : f32 to vector<8x32xf32>
    %621 = arith.mulf %620, %619 : vector<8x32xf32>
    %622 = math.tanh %621 : vector<8x32xf32>
    %cst_225 = arith.constant 1.000000e+00 : f32
    %623 = vector.broadcast %cst_225 : f32 to vector<8x32xf32>
    %624 = arith.addf %622, %623 : vector<8x32xf32>
    %cst_226 = arith.constant 5.000000e-01 : f32
    %625 = vector.broadcast %cst_226 : f32 to vector<8x32xf32>
    %626 = arith.mulf %625, %624 : vector<8x32xf32>
    %627 = vector.extract_strided_slice %610 {offsets = [0, 64], sizes = [8, 32], strides = [1, 1]} : vector<8x128xf32> to vector<8x32xf32>
    %628 = math.tanh %627 : vector<8x32xf32>
    %629 = vector.extract_strided_slice %610 {offsets = [0, 96], sizes = [8, 32], strides = [1, 1]} : vector<8x128xf32> to vector<8x32xf32>
    %cst_227 = arith.constant 5.000000e-01 : f32
    %630 = vector.broadcast %cst_227 : f32 to vector<8x32xf32>
    %631 = arith.mulf %630, %629 : vector<8x32xf32>
    %632 = math.tanh %631 : vector<8x32xf32>
    %cst_228 = arith.constant 1.000000e+00 : f32
    %633 = vector.broadcast %cst_228 : f32 to vector<8x32xf32>
    %634 = arith.addf %632, %633 : vector<8x32xf32>
    %cst_229 = arith.constant 5.000000e-01 : f32
    %635 = vector.broadcast %cst_229 : f32 to vector<8x32xf32>
    %636 = arith.mulf %635, %634 : vector<8x32xf32>
    %637 = arith.mulf %626, %475 : vector<8x32xf32>
    %638 = arith.mulf %618, %628 : vector<8x32xf32>
    %639 = arith.addf %637, %638 : vector<8x32xf32>
    %640 = math.tanh %639 : vector<8x32xf32>
    %641 = arith.mulf %636, %640 : vector<8x32xf32>
    %642 = arith.select %564, %641, %474 : vector<8x32xi1>, vector<8x32xf32>
    %643 = arith.select %564, %639, %475 : vector<8x32xi1>, vector<8x32xf32>
    %644 = arith.truncf %642 : vector<8x32xf32> to vector<8x32xbf16>
    %cst_230 = arith.constant dense<0.000000e+00> : vector<8x128xf32>
    %645 = tpu.matmul %644, %25, %cst_230 {dimension_numbers = #tpu.dot_dimension_numbers<[1], [0], [0], [1], [0, 0, 1, 1], [], []>} : vector<8x32xbf16>, vector<32x128xbf16>, vector<8x128xf32> -> vector<8x128xf32>
    %646 = arith.truncf %513 : vector<8x32xf32> to vector<8x32xbf16>
    %cst_231 = arith.constant dense<0.000000e+00> : vector<8x128xf32>
    %647 = tpu.matmul %646, %19, %cst_231 {dimension_numbers = #tpu.dot_dimension_numbers<[1], [0], [0], [1], [0, 0, 1, 1], [], []>} : vector<8x32xbf16>, vector<32x128xbf16>, vector<8x128xf32> -> vector<8x128xf32>
    %648 = arith.addf %645, %647 : vector<8x128xf32>
    %649 = arith.addf %648, %35 : vector<8x128xf32>
    %650 = vector.extract_strided_slice %649 {offsets = [0, 0], sizes = [8, 32], strides = [1, 1]} : vector<8x128xf32> to vector<8x32xf32>
    %cst_232 = arith.constant 5.000000e-01 : f32
    %651 = vector.broadcast %cst_232 : f32 to vector<8x32xf32>
    %652 = arith.mulf %651, %650 : vector<8x32xf32>
    %653 = math.tanh %652 : vector<8x32xf32>
    %cst_233 = arith.constant 1.000000e+00 : f32
    %654 = vector.broadcast %cst_233 : f32 to vector<8x32xf32>
    %655 = arith.addf %653, %654 : vector<8x32xf32>
    %cst_234 = arith.constant 5.000000e-01 : f32
    %656 = vector.broadcast %cst_234 : f32 to vector<8x32xf32>
    %657 = arith.mulf %656, %655 : vector<8x32xf32>
    %658 = vector.extract_strided_slice %649 {offsets = [0, 32], sizes = [8, 32], strides = [1, 1]} : vector<8x128xf32> to vector<8x32xf32>
    %cst_235 = arith.constant 5.000000e-01 : f32
    %659 = vector.broadcast %cst_235 : f32 to vector<8x32xf32>
    %660 = arith.mulf %659, %658 : vector<8x32xf32>
    %661 = math.tanh %660 : vector<8x32xf32>
    %cst_236 = arith.constant 1.000000e+00 : f32
    %662 = vector.broadcast %cst_236 : f32 to vector<8x32xf32>
    %663 = arith.addf %661, %662 : vector<8x32xf32>
    %cst_237 = arith.constant 5.000000e-01 : f32
    %664 = vector.broadcast %cst_237 : f32 to vector<8x32xf32>
    %665 = arith.mulf %664, %663 : vector<8x32xf32>
    %666 = vector.extract_strided_slice %649 {offsets = [0, 64], sizes = [8, 32], strides = [1, 1]} : vector<8x128xf32> to vector<8x32xf32>
    %667 = math.tanh %666 : vector<8x32xf32>
    %668 = vector.extract_strided_slice %649 {offsets = [0, 96], sizes = [8, 32], strides = [1, 1]} : vector<8x128xf32> to vector<8x32xf32>
    %cst_238 = arith.constant 5.000000e-01 : f32
    %669 = vector.broadcast %cst_238 : f32 to vector<8x32xf32>
    %670 = arith.mulf %669, %668 : vector<8x32xf32>
    %671 = math.tanh %670 : vector<8x32xf32>
    %cst_239 = arith.constant 1.000000e+00 : f32
    %672 = vector.broadcast %cst_239 : f32 to vector<8x32xf32>
    %673 = arith.addf %671, %672 : vector<8x32xf32>
    %cst_240 = arith.constant 5.000000e-01 : f32
    %674 = vector.broadcast %cst_240 : f32 to vector<8x32xf32>
    %675 = arith.mulf %674, %673 : vector<8x32xf32>
    %676 = arith.mulf %665, %514 : vector<8x32xf32>
    %677 = arith.mulf %657, %667 : vector<8x32xf32>
    %678 = arith.addf %676, %677 : vector<8x32xf32>
    %679 = math.tanh %678 : vector<8x32xf32>
    %680 = arith.mulf %675, %679 : vector<8x32xf32>
    %681 = arith.select %564, %680, %513 : vector<8x32xi1>, vector<8x32xf32>
    %682 = arith.select %564, %678, %514 : vector<8x32xi1>, vector<8x32xf32>
    %683 = arith.truncf %681 : vector<8x32xf32> to vector<8x32xbf16>
    %cst_241 = arith.constant dense<0.000000e+00> : vector<8x128xf32>
    %684 = tpu.matmul %683, %27, %cst_241 {dimension_numbers = #tpu.dot_dimension_numbers<[1], [0], [0], [1], [0, 0, 1, 1], [], []>} : vector<8x32xbf16>, vector<32x128xbf16>, vector<8x128xf32> -> vector<8x128xf32>
    %685 = arith.truncf %552 : vector<8x32xf32> to vector<8x32xbf16>
    %cst_242 = arith.constant dense<0.000000e+00> : vector<8x128xf32>
    %686 = tpu.matmul %685, %21, %cst_242 {dimension_numbers = #tpu.dot_dimension_numbers<[1], [0], [0], [1], [0, 0, 1, 1], [], []>} : vector<8x32xbf16>, vector<32x128xbf16>, vector<8x128xf32> -> vector<8x128xf32>
    %687 = arith.addf %684, %686 : vector<8x128xf32>
    %688 = arith.addf %687, %39 : vector<8x128xf32>
    %689 = vector.extract_strided_slice %688 {offsets = [0, 0], sizes = [8, 32], strides = [1, 1]} : vector<8x128xf32> to vector<8x32xf32>
    %cst_243 = arith.constant 5.000000e-01 : f32
    %690 = vector.broadcast %cst_243 : f32 to vector<8x32xf32>
    %691 = arith.mulf %690, %689 : vector<8x32xf32>
    %692 = math.tanh %691 : vector<8x32xf32>
    %cst_244 = arith.constant 1.000000e+00 : f32
    %693 = vector.broadcast %cst_244 : f32 to vector<8x32xf32>
    %694 = arith.addf %692, %693 : vector<8x32xf32>
    %cst_245 = arith.constant 5.000000e-01 : f32
    %695 = vector.broadcast %cst_245 : f32 to vector<8x32xf32>
    %696 = arith.mulf %695, %694 : vector<8x32xf32>
    %697 = vector.extract_strided_slice %688 {offsets = [0, 32], sizes = [8, 32], strides = [1, 1]} : vector<8x128xf32> to vector<8x32xf32>
    %cst_246 = arith.constant 5.000000e-01 : f32
    %698 = vector.broadcast %cst_246 : f32 to vector<8x32xf32>
    %699 = arith.mulf %698, %697 : vector<8x32xf32>
    %700 = math.tanh %699 : vector<8x32xf32>
    %cst_247 = arith.constant 1.000000e+00 : f32
    %701 = vector.broadcast %cst_247 : f32 to vector<8x32xf32>
    %702 = arith.addf %700, %701 : vector<8x32xf32>
    %cst_248 = arith.constant 5.000000e-01 : f32
    %703 = vector.broadcast %cst_248 : f32 to vector<8x32xf32>
    %704 = arith.mulf %703, %702 : vector<8x32xf32>
    %705 = vector.extract_strided_slice %688 {offsets = [0, 64], sizes = [8, 32], strides = [1, 1]} : vector<8x128xf32> to vector<8x32xf32>
    %706 = math.tanh %705 : vector<8x32xf32>
    %707 = vector.extract_strided_slice %688 {offsets = [0, 96], sizes = [8, 32], strides = [1, 1]} : vector<8x128xf32> to vector<8x32xf32>
    %cst_249 = arith.constant 5.000000e-01 : f32
    %708 = vector.broadcast %cst_249 : f32 to vector<8x32xf32>
    %709 = arith.mulf %708, %707 : vector<8x32xf32>
    %710 = math.tanh %709 : vector<8x32xf32>
    %cst_250 = arith.constant 1.000000e+00 : f32
    %711 = vector.broadcast %cst_250 : f32 to vector<8x32xf32>
    %712 = arith.addf %710, %711 : vector<8x32xf32>
    %cst_251 = arith.constant 5.000000e-01 : f32
    %713 = vector.broadcast %cst_251 : f32 to vector<8x32xf32>
    %714 = arith.mulf %713, %712 : vector<8x32xf32>
    %715 = arith.mulf %704, %553 : vector<8x32xf32>
    %716 = arith.mulf %696, %706 : vector<8x32xf32>
    %717 = arith.addf %715, %716 : vector<8x32xf32>
    %718 = math.tanh %717 : vector<8x32xf32>
    %719 = arith.mulf %714, %718 : vector<8x32xf32>
    %720 = arith.select %564, %719, %552 : vector<8x32xi1>, vector<8x32xf32>
    %721 = arith.select %564, %717, %553 : vector<8x32xi1>, vector<8x32xf32>
    %cst_252 = arith.constant 0.000000e+00 : f32
    %722 = vector.broadcast %cst_252 : f32 to vector<8x32xf32>
    %723 = arith.select %564, %720, %722 : vector<8x32xi1>, vector<8x32xf32>
    %724 = arith.index_cast %c3_i32 : i32 to index
    %c0_253 = arith.constant 0 : index
    %c0_254 = arith.constant 0 : index
    %725 = vector.load %arg6[%724, %c0_253, %c0_254] : memref<4x8x32xf32, #tpu.memory_space<vmem>>, vector<1x8x32xf32>
    %726 = vector.shape_cast %725 : vector<1x8x32xf32> to vector<8x32xf32>
    %727 = vector.shape_cast %723 : vector<8x32xf32> to vector<1x8x32xf32>
    tpu.vector_store %arg6[%724, %c0_253, %c0_254], %727 {strides = array<i32>} : memref<4x8x32xf32, #tpu.memory_space<vmem>>, vector<1x8x32xf32>,
    %c4_i32_255 = arith.constant 4 : i32
    %c0_256 = arith.constant 0 : index
    %c0_257 = arith.constant 0 : index
    %c0_258 = arith.constant 0 : index
    %728 = vector.load %arg7[%c0_256, %c0_257, %c0_258] : memref<4x8x32xf32, #tpu.memory_space<vmem>>, vector<1x8x32xf32>
    %729 = vector.shape_cast %728 : vector<1x8x32xf32> to vector<8x32xf32>
    %730 = vector.shape_cast %603 : vector<8x32xf32> to vector<1x8x32xf32>
    tpu.vector_store %arg7[%c0_256, %c0_257, %c0_258], %730 {strides = array<i32>} : memref<4x8x32xf32, #tpu.memory_space<vmem>>, vector<1x8x32xf32>,
    %c0_259 = arith.constant 0 : index
    %c0_260 = arith.constant 0 : index
    %c0_261 = arith.constant 0 : index
    %731 = vector.load %arg8[%c0_259, %c0_260, %c0_261] : memref<4x8x32xf32, #tpu.memory_space<vmem>>, vector<1x8x32xf32>
    %732 = vector.shape_cast %731 : vector<1x8x32xf32> to vector<8x32xf32>
    %733 = vector.shape_cast %604 : vector<8x32xf32> to vector<1x8x32xf32>
    tpu.vector_store %arg8[%c0_259, %c0_260, %c0_261], %733 {strides = array<i32>} : memref<4x8x32xf32, #tpu.memory_space<vmem>>, vector<1x8x32xf32>,
    %c1_262 = arith.constant 1 : index
    %c0_263 = arith.constant 0 : index
    %c0_264 = arith.constant 0 : index
    %734 = vector.load %arg7[%c1_262, %c0_263, %c0_264] : memref<4x8x32xf32, #tpu.memory_space<vmem>>, vector<1x8x32xf32>
    %735 = vector.shape_cast %734 : vector<1x8x32xf32> to vector<8x32xf32>
    %736 = vector.shape_cast %642 : vector<8x32xf32> to vector<1x8x32xf32>
    tpu.vector_store %arg7[%c1_262, %c0_263, %c0_264], %736 {strides = array<i32>} : memref<4x8x32xf32, #tpu.memory_space<vmem>>, vector<1x8x32xf32>,
    %c1_265 = arith.constant 1 : index
    %c0_266 = arith.constant 0 : index
    %c0_267 = arith.constant 0 : index
    %737 = vector.load %arg8[%c1_265, %c0_266, %c0_267] : memref<4x8x32xf32, #tpu.memory_space<vmem>>, vector<1x8x32xf32>
    %738 = vector.shape_cast %737 : vector<1x8x32xf32> to vector<8x32xf32>
    %739 = vector.shape_cast %643 : vector<8x32xf32> to vector<1x8x32xf32>
    tpu.vector_store %arg8[%c1_265, %c0_266, %c0_267], %739 {strides = array<i32>} : memref<4x8x32xf32, #tpu.memory_space<vmem>>, vector<1x8x32xf32>,
    %c2_268 = arith.constant 2 : index
    %c0_269 = arith.constant 0 : index
    %c0_270 = arith.constant 0 : index
    %740 = vector.load %arg7[%c2_268, %c0_269, %c0_270] : memref<4x8x32xf32, #tpu.memory_space<vmem>>, vector<1x8x32xf32>
    %741 = vector.shape_cast %740 : vector<1x8x32xf32> to vector<8x32xf32>
    %742 = vector.shape_cast %681 : vector<8x32xf32> to vector<1x8x32xf32>
    tpu.vector_store %arg7[%c2_268, %c0_269, %c0_270], %742 {strides = array<i32>} : memref<4x8x32xf32, #tpu.memory_space<vmem>>, vector<1x8x32xf32>,
    %c2_271 = arith.constant 2 : index
    %c0_272 = arith.constant 0 : index
    %c0_273 = arith.constant 0 : index
    %743 = vector.load %arg8[%c2_271, %c0_272, %c0_273] : memref<4x8x32xf32, #tpu.memory_space<vmem>>, vector<1x8x32xf32>
    %744 = vector.shape_cast %743 : vector<1x8x32xf32> to vector<8x32xf32>
    %745 = vector.shape_cast %682 : vector<8x32xf32> to vector<1x8x32xf32>
    tpu.vector_store %arg8[%c2_271, %c0_272, %c0_273], %745 {strides = array<i32>} : memref<4x8x32xf32, #tpu.memory_space<vmem>>, vector<1x8x32xf32>,
    %c3_274 = arith.constant 3 : index
    %c0_275 = arith.constant 0 : index
    %c0_276 = arith.constant 0 : index
    %746 = vector.load %arg7[%c3_274, %c0_275, %c0_276] : memref<4x8x32xf32, #tpu.memory_space<vmem>>, vector<1x8x32xf32>
    %747 = vector.shape_cast %746 : vector<1x8x32xf32> to vector<8x32xf32>
    %748 = vector.shape_cast %720 : vector<8x32xf32> to vector<1x8x32xf32>
    tpu.vector_store %arg7[%c3_274, %c0_275, %c0_276], %748 {strides = array<i32>} : memref<4x8x32xf32, #tpu.memory_space<vmem>>, vector<1x8x32xf32>,
    %c3_277 = arith.constant 3 : index
    %c0_278 = arith.constant 0 : index
    %c0_279 = arith.constant 0 : index
    %749 = vector.load %arg8[%c3_277, %c0_278, %c0_279] : memref<4x8x32xf32, #tpu.memory_space<vmem>>, vector<1x8x32xf32>
    %750 = vector.shape_cast %749 : vector<1x8x32xf32> to vector<8x32xf32>
    %751 = vector.shape_cast %721 : vector<8x32xf32> to vector<1x8x32xf32>
    tpu.vector_store %arg8[%c3_277, %c0_278, %c0_279], %751 {strides = array<i32>} : memref<4x8x32xf32, #tpu.memory_space<vmem>>, vector<1x8x32xf32>,
    return
  }
  func.func @transform_0(%arg0: i32) -> (i32, i32) {
    %c0_i32 = arith.constant 0 : i32
    %c0_i32_0 = arith.constant 0 : i32
    %c0_i32_1 = arith.constant 0 : i32
    return %c0_i32, %c0_i32_0 : i32, i32
  }
  func.func @transform_1(%arg0: i32) -> (i32, i32) {
    %c0_i32 = arith.constant 0 : i32
    %c0_i32_0 = arith.constant 0 : i32
    return %arg0, %c0_i32 : i32, i32
  }
  func.func @transform_2(%arg0: i32) -> (i32, i32, i32) {
    %c0_i32 = arith.constant 0 : i32
    %c0_i32_0 = arith.constant 0 : i32
    %c0_i32_1 = arith.constant 0 : i32
    %c0_i32_2 = arith.constant 0 : i32
    return %c0_i32, %c0_i32_0, %c0_i32_1 : i32, i32, i32
  }
  func.func @transform_3(%arg0: i32) -> (i32, i32, i32) {
    %c0_i32 = arith.constant 0 : i32
    %c0_i32_0 = arith.constant 0 : i32
    %c0_i32_1 = arith.constant 0 : i32
    %c0_i32_2 = arith.constant 0 : i32
    return %c0_i32, %c0_i32_0, %c0_i32_1 : i32, i32, i32
  }
  func.func @transform_4(%arg0: i32) -> (i32, i32, i32) {
    %c0_i32 = arith.constant 0 : i32
    %c0_i32_0 = arith.constant 0 : i32
    %c0_i32_1 = arith.constant 0 : i32
    %c0_i32_2 = arith.constant 0 : i32
    return %c0_i32, %c0_i32_0, %c0_i32_1 : i32, i32, i32
  }
  func.func @transform_5(%arg0: i32) -> (i32, i32, i32) {
    %c0_i32 = arith.constant 0 : i32
    %c0_i32_0 = arith.constant 0 : i32
    %c0_i32_1 = arith.constant 0 : i32
    return %arg0, %c0_i32, %c0_i32_0 : i32, i32, i32
  }
  func.func @transform_6(%arg0: i32) -> (i32, i32, i32) {
    %c0_i32 = arith.constant 0 : i32
    %c0_i32_0 = arith.constant 0 : i32
    %c0_i32_1 = arith.constant 0 : i32
    %c0_i32_2 = arith.constant 0 : i32
    return %c0_i32, %c0_i32_0, %c0_i32_1 : i32, i32, i32
  }
  func.func @transform_7(%arg0: i32) -> (i32, i32, i32) {
    %c0_i32 = arith.constant 0 : i32
    %c0_i32_0 = arith.constant 0 : i32
    %c0_i32_1 = arith.constant 0 : i32
    %c0_i32_2 = arith.constant 0 : i32
    return %c0_i32, %c0_i32_0, %c0_i32_1 : i32, i32, i32
  }
}

</mosaic_0001>

<llo_original>
// kernel: encoder_forward.1
$region0: #{encoder_forward.1}
  #allocation0 [shape = 'u32[]', space=smem, size = 0x4, offset = 0x4, fixed_abs, tag = 'smem constant byte address 0x4 - core index']
  #allocation1 [shape = 'u32[144,128]{1,0:T(1,128)}', space=vmem, size = 0x12000, scoped, tag = 'internal scratch']
  #allocation2 [shape = 'f32[32,128]{1,0:T(8,128)}', space=vmem, size = 0x4000, scoped, tag = 'scratch operand']
  %s0 = inlined_call_operand.vmem [shape: s32[8,1], index: 0, kind: input, shape index: {}]
  %s1 = inlined_call_operand.vmem [shape: bf16[64,32], index: 1, kind: input, shape index: {}]
  %s2 = inlined_call_operand.vmem [shape: bf16[4,32,128], index: 2, kind: input, shape index: {}]
  %s3 = inlined_call_operand.vmem [shape: bf16[4,32,128], index: 3, kind: input, shape index: {}]
  %s4 = inlined_call_operand.vmem [shape: f32[4,1,128], index: 4, kind: input, shape index: {}]
  %s5 = inlined_call_operand.hbm [shape: f32[8,8,32], index: 5, kind: output, shape index: {0}]
  %s6 = inlined_call_operand.hbm [shape: f32[4,8,32], index: 6, kind: output, shape index: {1}]
  %s7 = inlined_call_operand.hbm [shape: f32[4,8,32], index: 7, kind: output, shape index: {2}]
  %8 = xla_tuple %s5, %s6, %s7
  %s9 = sld [smem:[#allocation0]]
  $region73: #{encoder_forward.1} parent=0
    _
  %s11 = ssub.s32 1, %s9
  %s12 = scalar_select 0, %s11, %s9
  $region1: #{encoder_forward.1} parent=0
    #allocation3 [shape = 'u8[32768]{0}', space=vmem, size = 0x8000, scoped, tag = 'output window, operand 0']
    #allocation4 [shape = 's32[2]{0}', space=sflag, size = 0x8, scoped, tag = 'scoped memory for encoder_forward.1']
    #allocation5 [shape = 'u8[16384]{0}', space=vmem, size = 0x4000, scoped, tag = 'output window, operand 1, single buffered']
    #allocation6 [shape = 's32[1]{0}', space=sflag, size = 0x4, scoped, tag = 'scoped memory for encoder_forward.1']
    #allocation7 [shape = 'u8[16384]{0}', space=vmem, size = 0x4000, scoped, tag = 'output window, operand 2, single buffered']
    %13 = vsyncpa [#allocation4], 0
    %s14 = scalar_lea.sflag [#allocation4], 1
    %15 = vsyncpa %s14, 0
    %16 = vsyncpa [#allocation6], 0
    loop: start=0, step=1, limit=4
    $region2: #{encoder_forward.1} parent=1 // loop_pre_header
      _
    $region3: #{encoder_forward.1} parent=1 // loop_header
      %s18 = sphi 0, %s22
      %p19 = scmp.ge.s32.totalorder %s18, 4
      %s26 = sphi 0, %s26
      %s28 = sphi 0, %s26
      %s29 = sphi 0, %s28
      %s43 = sphi 0, %s29
      %s49 = sphi 0, %s51
      %s52 = sphi 0, %s49
      %s53 = sphi 0, %s52
      %s69 = sphi 0, %s53
      %s73 = sphi 0, %s73
      %s75 = sphi 0, %s73
      %s76 = sphi 0, %s75
      %s90 = sphi 0, %s76
      %s94 = sphi 0, %s94
      %s96 = sphi 0, %s94
      %s97 = sphi 0, %s96
      %s111 = sphi 0, %s97
      %s115 = sphi 0, %s115
      %s117 = sphi 0, %s115
      %s118 = sphi 0, %s117
      %s132 = sphi 0, %s118
      %s138 = sphi 0, %s140
      %s141 = sphi 0, %s138
      %s142 = sphi 0, %s141
      %s158 = sphi 0, %s142
      %s162 = sphi 0, %s162
      %s164 = sphi 0, %s162
      %s165 = sphi 0, %s164
      %s179 = sphi 0, %s165
      %s183 = sphi 0, %s183
      %s185 = sphi 0, %s183
      %s186 = sphi 0, %s185
      %s200 = sphi 0, %s186
    $region4: #{encoder_forward.1} parent=1 // loop_header_branch
      %21 = sbr.rel (%p19) target = $region8
    $region5: #{encoder_forward.1} parent=1 // loop_body
      %s23 = ssub.s32 %s18, 1
      %s24 = ssub.s32 %s18, 2
      %s25 = sadd.s32 %s18, 1
      %s27 = sadd.s32 %s26, 1
      %p30 = scmp.eq.s32.totalorder %s18, 1
      %p31 = scmp.ne.s32.totalorder %s26, %s28
      %p32 = scmp.eq.s32.totalorder %s18, 0
      %p33 = por %p31, %p32
      %p34 = scmp.ne.s32.totalorder %s26, %s28
      %p35 = scmp.eq.s32.totalorder %s23, 1
      %p36 = por %p34, %p35
      %p37 = scmp.ne.s32.totalorder %s28, %s29
      %p38 = scmp.eq.s32.totalorder %s23, 0
      %p39 = por %p37, %p38
      %p40 = scmp.ne.s32.totalorder %s28, %s29
      %p41 = scmp.eq.s32.totalorder %s24, 1
      %p42 = por %p40, %p41
      %p44 = scmp.ne.s32.totalorder %s29, %s43
      %p45 = scmp.eq.s32.totalorder %s24, 0
      %p46 = por %p44, %p45
      %s47 = ssub.s32 %s18, %s25
      %p48 = scmp.eq.s32.totalorder %s47, 0
      %s50 = sadd.s32 %s49, 1
      %s51 = scalar_select %p48, %s49, %s50
      %p54 = pneg %p48
      %p55 = scmp.eq.s32.totalorder %s18, 1
      %p56 = por %p54, %p55
      %p57 = scmp.ne.s32.totalorder %s49, %s52
      %p58 = scmp.eq.s32.totalorder %s18, 0
      %p59 = por %p57, %p58
      %p60 = scmp.ne.s32.totalorder %s49, %s52
      %p61 = scmp.eq.s32.totalorder %s23, 1
      %p62 = por %p60, %p61
      %p63 = scmp.ne.s32.totalorder %s52, %s53
      %p64 = scmp.eq.s32.totalorder %s23, 0
      %p65 = por %p63, %p64
      %p66 = scmp.ne.s32.totalorder %s52, %s53
      %p67 = scmp.eq.s32.totalorder %s24, 1
      %p68 = por %p66, %p67
      %p70 = scmp.ne.s32.totalorder %s53, %s69
      %p71 = scmp.eq.s32.totalorder %s24, 0
      %p72 = por %p70, %p71
      %s74 = sadd.s32 %s73, 1
      %p77 = scmp.eq.s32.totalorder %s18, 1
      %p78 = scmp.ne.s32.totalorder %s73, %s75
      %p79 = scmp.eq.s32.totalorder %s18, 0
      %p80 = por %p78, %p79
      %p81 = scmp.ne.s32.totalorder %s73, %s75
      %p82 = scmp.eq.s32.totalorder %s23, 1
      %p83 = por %p81, %p82
      %p84 = scmp.ne.s32.totalorder %s75, %s76
      %p85 = scmp.eq.s32.totalorder %s23, 0
      %p86 = por %p84, %p85
      %p87 = scmp.ne.s32.totalorder %s75, %s76
      %p88 = scmp.eq.s32.totalorder %s24, 1
      %p89 = por %p87, %p88
      %p91 = scmp.ne.s32.totalorder %s76, %s90
      %p92 = scmp.eq.s32.totalorder %s24, 0
      %p93 = por %p91, %p92
      %s95 = sadd.s32 %s94, 1
      %p98 = scmp.eq.s32.totalorder %s18, 1
      %p99 = scmp.ne.s32.totalorder %s94, %s96
      %p100 = scmp.eq.s32.totalorder %s18, 0
      %p101 = por %p99, %p100
      %p102 = scmp.ne.s32.totalorder %s94, %s96
      %p103 = scmp.eq.s32.totalorder %s23, 1
      %p104 = por %p102, %p103
      %p105 = scmp.ne.s32.totalorder %s96, %s97
      %p106 = scmp.eq.s32.totalorder %s23, 0
      %p107 = por %p105, %p106
      %p108 = scmp.ne.s32.totalorder %s96, %s97
      %p109 = scmp.eq.s32.totalorder %s24, 1
      %p110 = por %p108, %p109
      %p112 = scmp.ne.s32.totalorder %s97, %s111
      %p113 = scmp.eq.s32.totalorder %s24, 0
      %p114 = por %p112, %p113
      %s116 = sadd.s32 %s115, 1
      %p119 = scmp.eq.s32.totalorder %s18, 1
      %p120 = scmp.ne.s32.totalorder %s115, %s117
      %p121 = scmp.eq.s32.totalorder %s18, 0
      %p122 = por %p120, %p121
      %p123 = scmp.ne.s32.totalorder %s115, %s117
      %p124 = scmp.eq.s32.totalorder %s23, 1
      %p125 = por %p123, %p124
      %p126 = scmp.ne.s32.totalorder %s117, %s118
      %p127 = scmp.eq.s32.totalorder %s23, 0
      %p128 = por %p126, %p127
      %p129 = scmp.ne.s32.totalorder %s117, %s118
      %p130 = scmp.eq.s32.totalorder %s24, 1
      %p131 = por %p129, %p130
      %p133 = scmp.ne.s32.totalorder %s118, %s132
      %p134 = scmp.eq.s32.totalorder %s24, 0
      %p135 = por %p133, %p134
      %s136 = ssub.s32 %s18, %s25
      %p137 = scmp.eq.s32.totalorder %s136, 0
      %s139 = sadd.s32 %s138, 1
      %s140 = scalar_select %p137, %s138, %s139
      %p143 = pneg %p137
      %p144 = scmp.eq.s32.totalorder %s18, 1
      %p145 = por %p143, %p144
      %p146 = scmp.ne.s32.totalorder %s138, %s141
      %p147 = scmp.eq.s32.totalorder %s18, 0
      %p148 = por %p146, %p147
      %p149 = scmp.ne.s32.totalorder %s138, %s141
      %p150 = scmp.eq.s32.totalorder %s23, 1
      %p151 = por %p149, %p150
      %p152 = scmp.ne.s32.totalorder %s141, %s142
      %p153 = scmp.eq.s32.totalorder %s23, 0
      %p154 = por %p152, %p153
      %p155 = scmp.ne.s32.totalorder %s141, %s142
      %p156 = scmp.eq.s32.totalorder %s24, 1
      %p157 = por %p155, %p156
      %p159 = scmp.ne.s32.totalorder %s142, %s158
      %p160 = scmp.eq.s32.totalorder %s24, 0
      %p161 = por %p159, %p160
      %s163 = sadd.s32 %s162, 1
      %p166 = scmp.eq.s32.totalorder %s18, 1
      %p167 = scmp.ne.s32.totalorder %s162, %s164
      %p168 = scmp.eq.s32.totalorder %s18, 0
      %p169 = por %p167, %p168
      %p170 = scmp.ne.s32.totalorder %s162, %s164
      %p171 = scmp.eq.s32.totalorder %s23, 1
      %p172 = por %p170, %p171
      %p173 = scmp.ne.s32.totalorder %s164, %s165
      %p174 = scmp.eq.s32.totalorder %s23, 0
      %p175 = por %p173, %p174
      %p176 = scmp.ne.s32.totalorder %s164, %s165
      %p177 = scmp.eq.s32.totalorder %s24, 1
      %p178 = por %p176, %p177
      %p180 = scmp.ne.s32.totalorder %s165, %s179
      %p181 = scmp.eq.s32.totalorder %s24, 0
      %p182 = por %p180, %p181
      %s184 = sadd.s32 %s183, 1
      %p187 = scmp.eq.s32.totalorder %s18, 1
      %p188 = scmp.ne.s32.totalorder %s183, %s185
      %p189 = scmp.eq.s32.totalorder %s18, 0
      %p190 = por %p188, %p189
      %p191 = scmp.ne.s32.totalorder %s183, %s185
      %p192 = scmp.eq.s32.totalorder %s23, 1
      %p193 = por %p191, %p192
      %p194 = scmp.ne.s32.totalorder %s185, %s186
      %p195 = scmp.eq.s32.totalorder %s23, 0
      %p196 = por %p194, %p195
      %p197 = scmp.ne.s32.totalorder %s185, %s186
      %p198 = scmp.eq.s32.totalorder %s24, 1
      %p199 = por %p197, %p198
      %p201 = scmp.ne.s32.totalorder %s186, %s200
      %p202 = scmp.eq.s32.totalorder %s24, 0
      %p203 = por %p201, %p202
      %p204 = scmp.le.s32.totalorder 1, %s18
      %p205 = scmp.lt.s32.totalorder %s18, 3
      %p206 = pnand %p204, %p205
      %p207 = pneg %p206
      // Predicated region
      $region9: #{encoder_forward.1} parent=5 // pred_check
        _
      $region10: #{encoder_forward.1} parent=5 // pred_check_branch
        %209 = sbr.rel (%p206) target = $region12
      $region11: #{encoder_forward.1} parent=5 // pred_region
        %s210 = ssub.s32 %s18, 1
        // Predicated region
        $region13: #{encoder_forward.1} parent=11 // pred_check
          %p211 = pneg %p39
        $region14: #{encoder_forward.1} parent=11 // pred_check_branch
          %213 = sbr.rel (%p211) target = $region16
        $region15: #{encoder_forward.1} parent=11 // pred_region
          _
        $region16: #{encoder_forward.1} parent=11 // pred_fallthru
          _
        // Predicated region
        $region17: #{encoder_forward.1} parent=11 // pred_check
          %p214 = pneg %p86
        $region18: #{encoder_forward.1} parent=11 // pred_check_branch
          %216 = sbr.rel (%p214) target = $region20
        $region19: #{encoder_forward.1} parent=11 // pred_region
          _
        $region20: #{encoder_forward.1} parent=11 // pred_fallthru
          _
        // Predicated region
        $region21: #{encoder_forward.1} parent=11 // pred_check
          %p217 = pneg %p107
        $region22: #{encoder_forward.1} parent=11 // pred_check_branch
          %219 = sbr.rel (%p217) target = $region24
        $region23: #{encoder_forward.1} parent=11 // pred_region
          _
        $region24: #{encoder_forward.1} parent=11 // pred_fallthru
          _
        // Predicated region
        $region25: #{encoder_forward.1} parent=11 // pred_check
          %p220 = pneg %p128
        $region26: #{encoder_forward.1} parent=11 // pred_check_branch
          %222 = sbr.rel (%p220) target = $region28
        $region27: #{encoder_forward.1} parent=11 // pred_region
          _
        $region28: #{encoder_forward.1} parent=11 // pred_fallthru
          _
      $region12: #{encoder_forward.1} parent=5 // pred_fallthru
        _
      %p223 = scmp.lt.s32.totalorder %s18, 2
      // Predicated region
      $region29: #{encoder_forward.1} parent=5 // pred_check
        %p224 = pneg %p223
      $region30: #{encoder_forward.1} parent=5 // pred_check_branch
        %226 = sbr.rel (%p224) target = $region32
      $region31: #{encoder_forward.1} parent=5 // pred_region
        // Predicated region
        $region33: #{encoder_forward.1} parent=31 // pred_check
          %p227 = pneg %p59
        $region34: #{encoder_forward.1} parent=31 // pred_check_branch
          %229 = sbr.rel (%p227) target = $region36
        $region35: #{encoder_forward.1} parent=31 // pred_region
          %s230 = smul.u32 4, %s18
          %p231 = scmp.lt.s32.totalorder %s230, 7
          %s232 = scalar_select %p231, %s230, 7
          %s233 = smul.addr %s232, 4
          %s234 = scalar_lea.vmem %s1, %s233
          %s235 = smul.u32 4, %s18
        $region36: #{encoder_forward.1} parent=31 // pred_fallthru
          _
      $region32: #{encoder_forward.1} parent=5 // pred_fallthru
        _
      %p236 = scmp.le.s32.totalorder 1, %s18
      %p237 = scmp.lt.s32.totalorder %s18, 3
      %p238 = pnand %p236, %p237
      %p239 = pneg %p238
      // Predicated region
      $region37: #{encoder_forward.1} parent=5 // pred_check
        _
      $region38: #{encoder_forward.1} parent=5 // pred_check_branch
        %241 = sbr.rel (%p238) target = $region40
      $region39: #{encoder_forward.1} parent=5 // pred_region
        %s242 = ssub.s32 %s18, 1
        %p243 = pneg %p39
        %p244 = pneg %p36
        %s245 = smul.u32 4, %s23
        %p246 = scmp.lt.s32.totalorder %s245, 7
        %s247 = scalar_select %p246, %s245, 7
        %s248 = smul.addr %s247, 4
        %s249 = scalar_lea.vmem %s1, %s248
        %p250 = pneg %p65
        %p251 = pneg %p62
        %p252 = pneg %p86
        %p253 = pneg %p83
        %p254 = pneg %p107
        %p255 = pneg %p104
        %p256 = pneg %p128
        %p257 = pneg %p125
        %p258 = pneg %p154
        %p259 = pneg %p151
        %s260 = sand.u32 %s141, 1
        %s261 = scalar_lea.sflag [#allocation4], %s260
        %s262 = sand.u32 %s141, 1
        %s263 = smul.addr %s262, 32
        %s264 = scalar_lea.vmem [#allocation3], %s263
        %p265 = pneg %p175
        %p266 = pneg %p172
        %p267 = pneg %p196
        %p268 = pneg %p193
        %s269 = smul.u32 4, %s23
        %p270 = scmp.lt.s32.totalorder %s269, 7
        %s271 = scalar_select %p270, %s269, 7
        %s272 = smul.addr %s271, 4
        %s273 = scalar_lea.vmem %s1, %s272
        %s274 = smul.u32 4, %s23
        %s275 = smul.u32 4, %s23
        %p277 = scmp.eq.s32.totalorder %s23, 0
        // Predicated region
        $region41: #{encoder_forward.1} parent=39 // pred_check
          %p278 = pneg %p277
        $region42: #{encoder_forward.1} parent=39 // pred_check_branch
          %280 = sbr.rel (%p278) target = $region44
        $region43: #{encoder_forward.1} parent=39 // pred_region
          %vm281 = vcmask 261120
          %282 = vst.msk [vmem:[#allocation5] sm:$0xff] %vm281, 0.0
          %283 = vst.msk [vmem:[#allocation5 + $0x8] sm:$0xff] %vm281, 0.0
          %284 = vst.msk [vmem:[#allocation5 + $0x10] sm:$0xff] %vm281, 0.0
          %285 = vst.msk [vmem:[#allocation5 + $0x18] sm:$0xff] %vm281, 0.0
          %286 = vst.msk [vmem:[#allocation7] sm:$0xff] %vm281, 0.0
          %287 = vst.msk [vmem:[#allocation7 + $0x8] sm:$0xff] %vm281, 0.0
          %288 = vst.msk [vmem:[#allocation7 + $0x10] sm:$0xff] %vm281, 0.0
          %289 = vst.msk [vmem:[#allocation7 + $0x18] sm:$0xff] %vm281, 0.0
        $region44: #{encoder_forward.1} parent=39 // pred_fallthru
          _
        %v290 = vld [vmem:[%s0] sm:$0xff]
        %s291 = smul.u32 %s23, 4
        %v292 = vld [vmem:[%s273] sm:$0xf]
        %v293 = vld [vmem:[%s273 + $0x4] sm:$0xf]
        %v294 = vld [vmem:[%s273 + $0x8] sm:$0xf]
        %v295 = vld [vmem:[%s273 + $0xc] sm:$0xf]
        %v296 = vld [vmem:[%s2] sm:$0xf]
        %v297 = vld [vmem:[%s2 + $0x4] sm:$0xf]
        %v298 = vld [vmem:[%s2 + $0x8] sm:$0xf]
        %v299 = vld [vmem:[%s2 + $0xc] sm:$0xf]
        %v300 = vld [vmem:[%s4] sm:$0x1]
        %v302 = vlaneseq
        %v303 = vshrl.u32 %v302, 7
        %v304 = vsub.s32 0, %v303
        %v305 = vrot.slane %v300, %v304
        %v311 = vunpack.c.l.b16 %v292
        %v312 = vunpack.c.l.b16 %v293
        %v313 = vunpack.c.l.b16 %v294
        %v314 = vunpack.c.l.b16 %v295
        %v315 = vpack.c.b16 %v312, %v311
        %v316 = vpack.c.b16 %v314, %v313
        %v321 = vunpack.c.l.b16 %v296
        %v322 = vunpack.c.l.b16 %v297
        %v323 = vunpack.c.l.b16 %v298
        %v324 = vunpack.c.l.b16 %v299
        %v325 = vpack.c.b16 %v322, %v321
        %v326 = vpack.c.b16 %v324, %v323
        %vm329 = vcmask 261120
        %v331 = vsel %vm329, %v315, 0
        %v334 = vsel %vm329, %v316, 0
        %336 = vmatprep.subr.bf16.mxu0 0
        %337 = vmatpush1.bf16.msra.mxu0 %v325
        %338 = vmatprep.subr.bf16.mxu0 0
        %339 = vmatpush1.bf16.msra.mxu0 %v326
        %340 = vmatprep.subr.bf16.mxu0 0
        %341 = vmatpush1.bf16.msra.mxu0 0
        %342 = vmatprep.subr.bf16.mxu0 0
        %343 = vmatpush1.bf16.msra.mxu0 0
        %344 = vmatprep.subr.bf16.mxu0 0
        %345 = vmatpush1.bf16.msra.mxu0 0
        %346 = vmatprep.subr.bf16.mxu0 0
        %347 = vmatpush1.bf16.msra.mxu0 0
        %348 = vmatprep.subr.bf16.mxu0 0
        %349 = vmatpush1.bf16.msra.mxu0 0
        %350 = vmatprep.subr.bf16.mxu0 0
        %351 = vmatpush1.bf16.msra.mxu0 0
        %352 = vmatprep.subr.bf16.mxu0 0
        %353 = vmatpush1.bf16.msra.mxu0 0
        %354 = vmatprep.subr.bf16.mxu0 0
        %355 = vmatpush1.bf16.msra.mxu0 0
        %356 = vmatprep.subr.bf16.mxu0 0
        %357 = vmatpush1.bf16.msra.mxu0 0
        %358 = vmatprep.subr.bf16.mxu0 0
        %359 = vmatpush1.bf16.msra.mxu0 0
        %360 = vmatprep.subr.bf16.mxu0 0
        %361 = vmatpush1.bf16.msra.mxu0 0
        %362 = vmatprep.subr.bf16.mxu0 0
        %363 = vmatpush1.bf16.msra.mxu0 0
        %364 = vmatprep.subr.bf16.mxu0 0
        %365 = vmatpush1.bf16.msra.mxu0 0
        %366 = vmatprep.subr.bf16.mxu0 0
        %367 = vmatpush1.bf16.msra.mxu0 0
        %368 = vmatprep.mubr.bf16.mxu0 0
        %369 = vmatmul.mubr.bf16.gmra.mrb[0].mxu0 %v331
        %v370 = vpop.f32.mrb[0].mxu0
        %v371 = vadd.f32 %v305, %v370
        %v372 = vpop.f32.mrb[0].mxu0
        %v373 = vpop.f32.mrb[0].mxu0
        %v374 = vadd.f32 %v305, %v373
        %v375 = vpop.f32.mrb[0].mxu0
        %376 = vmatprep.mubr.bf16.mxu0 0
        %377 = vmatmul.mubr.bf16.gmra.mrb[0].mxu0 %v334
        %v378 = vpop.f32.mrb[0].mxu0
        %v379 = vadd.f32 %v305, %v378
        %v380 = vpop.f32.mrb[0].mxu0
        %v381 = vpop.f32.mrb[0].mxu0
        %v382 = vadd.f32 %v305, %v381
        %v383 = vpop.f32.mrb[0].mxu0
        %384 = vdwg.mxu0
        %385 = vst [vmem:[#allocation2] sm:$0xff] %v371
        %386 = vst [vmem:[#allocation2 + $0x8] sm:$0xff] %v374
        %387 = vst [vmem:[#allocation2 + $0x10] sm:$0xff] %v379
        %388 = vst [vmem:[#allocation2 + $0x18] sm:$0xff] %v382
        %v389 = vld [vmem:[%s3] sm:$0xf]
        %v390 = vld [vmem:[%s3 + $0x4] sm:$0xf]
        %v391 = vld [vmem:[%s3 + $0x8] sm:$0xf]
        %v392 = vld [vmem:[%s3 + $0xc] sm:$0xf]
        %s393 = scalar_lea.vmem %s3, 16
        %v394 = vld [vmem:[%s393] sm:$0xf]
        %v395 = vld [vmem:[%s393 + $0x4] sm:$0xf]
        %v396 = vld [vmem:[%s393 + $0x8] sm:$0xf]
        %v397 = vld [vmem:[%s393 + $0xc] sm:$0xf]
        %s398 = scalar_lea.vmem %s3, 32
        %v399 = vld [vmem:[%s398] sm:$0xf]
        %v400 = vld [vmem:[%s398 + $0x4] sm:$0xf]
        %v401 = vld [vmem:[%s398 + $0x8] sm:$0xf]
        %v402 = vld [vmem:[%s398 + $0xc] sm:$0xf]
        %s403 = scalar_lea.vmem %s3, 48
        %v404 = vld [vmem:[%s403] sm:$0xf]
        %v405 = vld [vmem:[%s403 + $0x4] sm:$0xf]
        %v406 = vld [vmem:[%s403 + $0x8] sm:$0xf]
        %v407 = vld [vmem:[%s403 + $0xc] sm:$0xf]
        %s408 = scalar_lea.vmem %s2, 16
        %v409 = vld [vmem:[%s408] sm:$0xf]
        %v410 = vld [vmem:[%s408 + $0x4] sm:$0xf]
        %v411 = vld [vmem:[%s408 + $0x8] sm:$0xf]
        %v412 = vld [vmem:[%s408 + $0xc] sm:$0xf]
        %s413 = scalar_lea.vmem %s2, 32
        %v414 = vld [vmem:[%s413] sm:$0xf]
        %v415 = vld [vmem:[%s413 + $0x4] sm:$0xf]
        %v416 = vld [vmem:[%s413 + $0x8] sm:$0xf]
        %v417 = vld [vmem:[%s413 + $0xc] sm:$0xf]
        %s418 = scalar_lea.vmem %s2, 48
        %v419 = vld [vmem:[%s418] sm:$0xf]
        %v420 = vld [vmem:[%s418 + $0x4] sm:$0xf]
        %v421 = vld [vmem:[%s418 + $0x8] sm:$0xf]
        %v422 = vld [vmem:[%s418 + $0xc] sm:$0xf]
        %s423 = scalar_lea.vmem %s4, 1
        %v424 = vld [vmem:[%s423] sm:$0x1]
        %v426 = vlaneseq
        %v427 = vshrl.u32 %v426, 7
        %v428 = vsub.s32 0, %v427
        %v429 = vrot.slane %v424, %v428
        %s431 = scalar_lea.vmem %s4, 2
        %v432 = vld [vmem:[%s431] sm:$0x1]
        %v434 = vlaneseq
        %v435 = vshrl.u32 %v434, 7
        %v436 = vsub.s32 0, %v435
        %v437 = vrot.slane %v432, %v436
        %s439 = scalar_lea.vmem %s4, 3
        %v440 = vld [vmem:[%s439] sm:$0x1]
        %v442 = vlaneseq
        %v443 = vshrl.u32 %v442, 7
        %v444 = vsub.s32 0, %v443
        %v445 = vrot.slane %v440, %v444
        %v447 = vld [vmem:[#allocation5] sm:$0xff]
        %s448 = scalar_lea.vmem [#allocation5], 8
        %v449 = vld [vmem:[%s448] sm:$0xff]
        %s450 = scalar_lea.vmem [#allocation5], 16
        %v451 = vld [vmem:[%s450] sm:$0xff]
        %s452 = scalar_lea.vmem [#allocation5], 24
        %v453 = vld [vmem:[%s452] sm:$0xff]
        %v454 = vld [vmem:[#allocation7] sm:$0xff]
        %s455 = scalar_lea.vmem [#allocation7], 8
        %v456 = vld [vmem:[%s455] sm:$0xff]
        %s457 = scalar_lea.vmem [#allocation7], 16
        %v458 = vld [vmem:[%s457] sm:$0xff]
        %s459 = scalar_lea.vmem [#allocation7], 24
        %v460 = vld [vmem:[%s459] sm:$0xff]
        %v461 = vstv %s291
        %vm462 = vcmp.gt.s32.totalorder %v290, %v461
        %v463 = vsel %vm462, 1, 0
        %464 = vset.pattern.permute.xlu0 0
        %465 = vperm.xlu0 %464, %v463
        %v466 = vpop.permute.xlu0 %465
        %vm467 = vcmp.eq.s32.totalorder %v466, 1
        %v468 = vld [vmem:[#allocation2] sm:$0xff]
        %v469 = vpack.c.bf16 %v447, %v447
        %v474 = vunpack.c.l.b16 %v389
        %v475 = vunpack.c.l.b16 %v390
        %v476 = vunpack.c.l.b16 %v391
        %v477 = vunpack.c.l.b16 %v392
        %v478 = vpack.c.b16 %v475, %v474
        %v479 = vpack.c.b16 %v477, %v476
        %v483 = vsel %vm329, %v469, 0
        %485 = vmatprep.subr.bf16.mxu0 0
        %486 = vmatpush1.bf16.msra.mxu0 %v478
        %487 = vmatprep.subr.bf16.mxu0 0
        %488 = vmatpush1.bf16.msra.mxu0 %v479
        %489 = vmatprep.subr.bf16.mxu0 0
        %490 = vmatpush1.bf16.msra.mxu0 0
        %491 = vmatprep.subr.bf16.mxu0 0
        %492 = vmatpush1.bf16.msra.mxu0 0
        %493 = vmatprep.subr.bf16.mxu0 0
        %494 = vmatpush1.bf16.msra.mxu0 0
        %495 = vmatprep.subr.bf16.mxu0 0
        %496 = vmatpush1.bf16.msra.mxu0 0
        %497 = vmatprep.subr.bf16.mxu0 0
        %498 = vmatpush1.bf16.msra.mxu0 0
        %499 = vmatprep.subr.bf16.mxu0 0
        %500 = vmatpush1.bf16.msra.mxu0 0
        %501 = vmatprep.subr.bf16.mxu0 0
        %502 = vmatpush1.bf16.msra.mxu0 0
        %503 = vmatprep.subr.bf16.mxu0 0
        %504 = vmatpush1.bf16.msra.mxu0 0
        %505 = vmatprep.subr.bf16.mxu0 0
        %506 = vmatpush1.bf16.msra.mxu0 0
        %507 = vmatprep.subr.bf16.mxu0 0
        %508 = vmatpush1.bf16.msra.mxu0 0
        %509 = vmatprep.subr.bf16.mxu0 0
        %510 = vmatpush1.bf16.msra.mxu0 0
        %511 = vmatprep.subr.bf16.mxu0 0
        %512 = vmatpush1.bf16.msra.mxu0 0
        %513 = vmatprep.subr.bf16.mxu0 0
        %514 = vmatpush1.bf16.msra.mxu0 0
        %515 = vmatprep.subr.bf16.mxu0 0
        %516 = vmatpush1.bf16.msra.mxu0 0
        %517 = vmatprep.mubr.bf16.mxu0 0
        %518 = vmatmul.mubr.bf16.gmra.mrb[0].mxu0 %v483
        %v519 = vpop.f32.mrb[0].mxu0
        %v520 = vadd.f32 0.0, %v519
        %v521 = vpop.f32.mrb[0].mxu0
        %v522 = vpop.f32.mrb[0].mxu0
        %v523 = vpop.f32.mrb[0].mxu0
        %524 = vdwg.mxu0
        %v525 = vadd.f32 %v468, %v520
        %v526 = vmul.f32 %v525, 0.5
        %v527 = vtanh.pop %v526
        %v528 = vadd.f32 %v527, 1.0
        %v529 = vmul.f32 %v528, 0.5
        %v530 = vtanh.pop %v525
        %532 = vrot.lane.b32.xlu0 %v454, 32
        %v533 = vpop.permute.xlu0 %532
        %v535 = vmul.f32 %v529, %v533
        %537 = vrot.lane.b32.xlu0 %v530, 64
        %v538 = vpop.permute.xlu0 %537
        %v540 = vmul.f32 %v529, %v538
        %542 = vrot.lane.b32.xlu0 %v540, 32
        %v543 = vpop.permute.xlu0 %542
        %v545 = vadd.f32 %v535, %v543
        %v546 = vtanh.pop %v545
        %548 = vrot.lane.b32.xlu0 %v546, 64
        %v549 = vpop.permute.xlu0 %548
        %v551 = vmul.f32 %v529, %v549
        %553 = vrot.lane.b32.xlu0 %v447, 96
        %v554 = vpop.permute.xlu0 %553
        %v556 = vsel %vm467, %v551, %v554
        %v557 = vsel %vm467, %v545, %v533
        %v558 = vpack.c.bf16 %v556, %v556
        %v559 = vpack.c.bf16 %v449, %v449
        %v564 = vunpack.c.l.b16 %v394
        %v565 = vunpack.c.l.b16 %v395
        %v566 = vunpack.c.l.b16 %v396
        %v567 = vunpack.c.l.b16 %v397
        %v568 = vpack.c.b16 %v565, %v564
        %v569 = vpack.c.b16 %v567, %v566
        %v573 = vsel %vm329, %v559, 0
        %575 = vmatprep.subr.bf16.mxu0 0
        %576 = vmatpush1.bf16.msra.mxu0 %v568
        %577 = vmatprep.subr.bf16.mxu0 0
        %578 = vmatpush1.bf16.msra.mxu0 %v569
        %579 = vmatprep.subr.bf16.mxu0 0
        %580 = vmatpush1.bf16.msra.mxu0 0
        %581 = vmatprep.subr.bf16.mxu0 0
        %582 = vmatpush1.bf16.msra.mxu0 0
        %583 = vmatprep.subr.bf16.mxu0 0
        %584 = vmatpush1.bf16.msra.mxu0 0
        %585 = vmatprep.subr.bf16.mxu0 0
        %586 = vmatpush1.bf16.msra.mxu0 0
        %587 = vmatprep.subr.bf16.mxu0 0
        %588 = vmatpush1.bf16.msra.mxu0 0
        %589 = vmatprep.subr.bf16.mxu0 0
        %590 = vmatpush1.bf16.msra.mxu0 0
        %591 = vmatprep.subr.bf16.mxu0 0
        %592 = vmatpush1.bf16.msra.mxu0 0
        %593 = vmatprep.subr.bf16.mxu0 0
        %594 = vmatpush1.bf16.msra.mxu0 0
        %595 = vmatprep.subr.bf16.mxu0 0
        %596 = vmatpush1.bf16.msra.mxu0 0
        %597 = vmatprep.subr.bf16.mxu0 0
        %598 = vmatpush1.bf16.msra.mxu0 0
        %599 = vmatprep.subr.bf16.mxu0 0
        %600 = vmatpush1.bf16.msra.mxu0 0
        %601 = vmatprep.subr.bf16.mxu0 0
        %602 = vmatpush1.bf16.msra.mxu0 0
        %603 = vmatprep.subr.bf16.mxu0 0
        %604 = vmatpush1.bf16.msra.mxu0 0
        %605 = vmatprep.subr.bf16.mxu0 0
        %606 = vmatpush1.bf16.msra.mxu0 0
        %607 = vmatprep.mubr.bf16.mxu0 0
        %608 = vmatmul.mubr.bf16.gmra.mrb[0].mxu0 %v573
        %v609 = vpop.f32.mrb[0].mxu0
        %v610 = vadd.f32 0.0, %v609
        %v611 = vpop.f32.mrb[0].mxu0
        %v612 = vpop.f32.mrb[0].mxu0
        %v613 = vpop.f32.mrb[0].mxu0
        %614 = vdwg.mxu0
        %616 = vrot.lane.b32.xlu0 %v558, 32
        %v617 = vpop.permute.xlu0 %616
        %v622 = vunpack.c.l.b16 %v409
        %v623 = vunpack.c.l.b16 %v410
        %v624 = vunpack.c.l.b16 %v411
        %v625 = vunpack.c.l.b16 %v412
        %v626 = vpack.c.b16 %v623, %v622
        %v627 = vpack.c.b16 %v625, %v624
        %v631 = vsel %vm329, %v617, 0
        %633 = vmatprep.subr.bf16.mxu0 0
        %634 = vmatpush1.bf16.msra.mxu0 %v626
        %635 = vmatprep.subr.bf16.mxu0 0
        %636 = vmatpush1.bf16.msra.mxu0 %v627
        %637 = vmatprep.subr.bf16.mxu0 0
        %638 = vmatpush1.bf16.msra.mxu0 0
        %639 = vmatprep.subr.bf16.mxu0 0
        %640 = vmatpush1.bf16.msra.mxu0 0
        %641 = vmatprep.subr.bf16.mxu0 0
        %642 = vmatpush1.bf16.msra.mxu0 0
        %643 = vmatprep.subr.bf16.mxu0 0
        %644 = vmatpush1.bf16.msra.mxu0 0
        %645 = vmatprep.subr.bf16.mxu0 0
        %646 = vmatpush1.bf16.msra.mxu0 0
        %647 = vmatprep.subr.bf16.mxu0 0
        %648 = vmatpush1.bf16.msra.mxu0 0
        %649 = vmatprep.subr.bf16.mxu0 0
        %650 = vmatpush1.bf16.msra.mxu0 0
        %651 = vmatprep.subr.bf16.mxu0 0
        %652 = vmatpush1.bf16.msra.mxu0 0
        %653 = vmatprep.subr.bf16.mxu0 0
        %654 = vmatpush1.bf16.msra.mxu0 0
        %655 = vmatprep.subr.bf16.mxu0 0
        %656 = vmatpush1.bf16.msra.mxu0 0
        %657 = vmatprep.subr.bf16.mxu0 0
        %658 = vmatpush1.bf16.msra.mxu0 0
        %659 = vmatprep.subr.bf16.mxu0 0
        %660 = vmatpush1.bf16.msra.mxu0 0
        %661 = vmatprep.subr.bf16.mxu0 0
        %662 = vmatpush1.bf16.msra.mxu0 0
        %663 = vmatprep.subr.bf16.mxu0 0
        %664 = vmatpush1.bf16.msra.mxu0 0
        %665 = vmatprep.mubr.bf16.mxu0 0
        %666 = vmatmul.mubr.bf16.gmra.mrb[0].mxu0 %v631
        %v667 = vpop.f32.mrb[0].mxu0
        %v668 = vadd.f32 %v610, %v667
        %v669 = vpop.f32.mrb[0].mxu0
        %v670 = vpop.f32.mrb[0].mxu0
        %v671 = vpop.f32.mrb[0].mxu0
        %672 = vdwg.mxu0
        %v673 = vadd.f32 %v668, %v429
        %v674 = vmul.f32 %v673, 0.5
        %v675 = vtanh.pop %v674
        %v676 = vadd.f32 %v675, 1.0
        %v677 = vmul.f32 %v676, 0.5
        %v678 = vtanh.pop %v673
        %680 = vrot.lane.b32.xlu0 %v456, 32
        %v681 = vpop.permute.xlu0 %680
        %v683 = vmul.f32 %v677, %v681
        %685 = vrot.lane.b32.xlu0 %v678, 64
        %v686 = vpop.permute.xlu0 %685
        %v688 = vmul.f32 %v677, %v686
        %690 = vrot.lane.b32.xlu0 %v688, 32
        %v691 = vpop.permute.xlu0 %690
        %v693 = vadd.f32 %v683, %v691
        %v694 = vtanh.pop %v693
        %696 = vrot.lane.b32.xlu0 %v694, 64
        %v697 = vpop.permute.xlu0 %696
        %v699 = vmul.f32 %v677, %v697
        %701 = vrot.lane.b32.xlu0 %v449, 96
        %v702 = vpop.permute.xlu0 %701
        %v704 = vsel %vm467, %v699, %v702
        %v705 = vsel %vm467, %v693, %v681
        %v706 = vpack.c.bf16 %v704, %v704
        %v707 = vpack.c.bf16 %v451, %v451
        %v712 = vunpack.c.l.b16 %v399
        %v713 = vunpack.c.l.b16 %v400
        %v714 = vunpack.c.l.b16 %v401
        %v715 = vunpack.c.l.b16 %v402
        %v716 = vpack.c.b16 %v713, %v712
        %v717 = vpack.c.b16 %v715, %v714
        %v721 = vsel %vm329, %v707, 0
        %723 = vmatprep.subr.bf16.mxu0 0
        %724 = vmatpush1.bf16.msra.mxu0 %v716
        %725 = vmatprep.subr.bf16.mxu0 0
        %726 = vmatpush1.bf16.msra.mxu0 %v717
        %727 = vmatprep.subr.bf16.mxu0 0
        %728 = vmatpush1.bf16.msra.mxu0 0
        %729 = vmatprep.subr.bf16.mxu0 0
        %730 = vmatpush1.bf16.msra.mxu0 0
        %731 = vmatprep.subr.bf16.mxu0 0
        %732 = vmatpush1.bf16.msra.mxu0 0
        %733 = vmatprep.subr.bf16.mxu0 0
        %734 = vmatpush1.bf16.msra.mxu0 0
        %735 = vmatprep.subr.bf16.mxu0 0
        %736 = vmatpush1.bf16.msra.mxu0 0
        %737 = vmatprep.subr.bf16.mxu0 0
        %738 = vmatpush1.bf16.msra.mxu0 0
        %739 = vmatprep.subr.bf16.mxu0 0
        %740 = vmatpush1.bf16.msra.mxu0 0
        %741 = vmatprep.subr.bf16.mxu0 0
        %742 = vmatpush1.bf16.msra.mxu0 0
        %743 = vmatprep.subr.bf16.mxu0 0
        %744 = vmatpush1.bf16.msra.mxu0 0
        %745 = vmatprep.subr.bf16.mxu0 0
        %746 = vmatpush1.bf16.msra.mxu0 0
        %747 = vmatprep.subr.bf16.mxu0 0
        %748 = vmatpush1.bf16.msra.mxu0 0
        %749 = vmatprep.subr.bf16.mxu0 0
        %750 = vmatpush1.bf16.msra.mxu0 0
        %751 = vmatprep.subr.bf16.mxu0 0
        %752 = vmatpush1.bf16.msra.mxu0 0
        %753 = vmatprep.subr.bf16.mxu0 0
        %754 = vmatpush1.bf16.msra.mxu0 0
        %755 = vmatprep.mubr.bf16.mxu0 0
        %756 = vmatmul.mubr.bf16.gmra.mrb[0].mxu0 %v721
        %v757 = vpop.f32.mrb[0].mxu0
        %v758 = vadd.f32 0.0, %v757
        %v759 = vpop.f32.mrb[0].mxu0
        %v760 = vpop.f32.mrb[0].mxu0
        %v761 = vpop.f32.mrb[0].mxu0
        %762 = vdwg.mxu0
        %764 = vrot.lane.b32.xlu0 %v706, 32
        %v765 = vpop.permute.xlu0 %764
        %v770 = vunpack.c.l.b16 %v414
        %v771 = vunpack.c.l.b16 %v415
        %v772 = vunpack.c.l.b16 %v416
        %v773 = vunpack.c.l.b16 %v417
        %v774 = vpack.c.b16 %v771, %v770
        %v775 = vpack.c.b16 %v773, %v772
        %v779 = vsel %vm329, %v765, 0
        %781 = vmatprep.subr.bf16.mxu0 0
        %782 = vmatpush1.bf16.msra.mxu0 %v774
        %783 = vmatprep.subr.bf16.mxu0 0
        %784 = vmatpush1.bf16.msra.mxu0 %v775
        %785 = vmatprep.subr.bf16.mxu0 0
        %786 = vmatpush1.bf16.msra.mxu0 0
        %787 = vmatprep.subr.bf16.mxu0 0
        %788 = vmatpush1.bf16.msra.mxu0 0
        %789 = vmatprep.subr.bf16.mxu0 0
        %790 = vmatpush1.bf16.msra.mxu0 0
        %791 = vmatprep.subr.bf16.mxu0 0
        %792 = vmatpush1.bf16.msra.mxu0 0
        %793 = vmatprep.subr.bf16.mxu0 0
        %794 = vmatpush1.bf16.msra.mxu0 0
        %795 = vmatprep.subr.bf16.mxu0 0
        %796 = vmatpush1.bf16.msra.mxu0 0
        %797 = vmatprep.subr.bf16.mxu0 0
        %798 = vmatpush1.bf16.msra.mxu0 0
        %799 = vmatprep.subr.bf16.mxu0 0
        %800 = vmatpush1.bf16.msra.mxu0 0
        %801 = vmatprep.subr.bf16.mxu0 0
        %802 = vmatpush1.bf16.msra.mxu0 0
        %803 = vmatprep.subr.bf16.mxu0 0
        %804 = vmatpush1.bf16.msra.mxu0 0
        %805 = vmatprep.subr.bf16.mxu0 0
        %806 = vmatpush1.bf16.msra.mxu0 0
        %807 = vmatprep.subr.bf16.mxu0 0
        %808 = vmatpush1.bf16.msra.mxu0 0
        %809 = vmatprep.subr.bf16.mxu0 0
        %810 = vmatpush1.bf16.msra.mxu0 0
        %811 = vmatprep.subr.bf16.mxu0 0
        %812 = vmatpush1.bf16.msra.mxu0 0
        %813 = vmatprep.mubr.bf16.mxu0 0
        %814 = vmatmul.mubr.bf16.gmra.mrb[0].mxu0 %v779
        %v815 = vpop.f32.mrb[0].mxu0
        %v816 = vadd.f32 %v758, %v815
        %v817 = vpop.f32.mrb[0].mxu0
        %v818 = vpop.f32.mrb[0].mxu0
        %v819 = vpop.f32.mrb[0].mxu0
        %820 = vdwg.mxu0
        %v821 = vadd.f32 %v816, %v437
        %v822 = vmul.f32 %v821, 0.5
        %v823 = vtanh.pop %v822
        %v824 = vadd.f32 %v823, 1.0
        %v825 = vmul.f32 %v824, 0.5
        %v826 = vtanh.pop %v821
        %828 = vrot.lane.b32.xlu0 %v458, 32
        %v829 = vpop.permute.xlu0 %828
        %v831 = vmul.f32 %v825, %v829
        %833 = vrot.lane.b32.xlu0 %v826, 64
        %v834 = vpop.permute.xlu0 %833
        %v836 = vmul.f32 %v825, %v834
        %838 = vrot.lane.b32.xlu0 %v836, 32
        %v839 = vpop.permute.xlu0 %838
        %v841 = vadd.f32 %v831, %v839
        %v842 = vtanh.pop %v841
        %844 = vrot.lane.b32.xlu0 %v842, 64
        %v845 = vpop.permute.xlu0 %844
        %v847 = vmul.f32 %v825, %v845
        %849 = vrot.lane.b32.xlu0 %v451, 96
        %v850 = vpop.permute.xlu0 %849
        %v852 = vsel %vm467, %v847, %v850
        %v853 = vsel %vm467, %v841, %v829
        %v854 = vpack.c.bf16 %v852, %v852
        %v855 = vpack.c.bf16 %v453, %v453
        %v860 = vunpack.c.l.b16 %v404
        %v861 = vunpack.c.l.b16 %v405
        %v862 = vunpack.c.l.b16 %v406
        %v863 = vunpack.c.l.b16 %v407
        %v864 = vpack.c.b16 %v861, %v860
        %v865 = vpack.c.b16 %v863, %v862
        %v869 = vsel %vm329, %v855, 0
        %871 = vmatprep.subr.bf16.mxu0 0
        %872 = vmatpush1.bf16.msra.mxu0 %v864
        %873 = vmatprep.subr.bf16.mxu0 0
        %874 = vmatpush1.bf16.msra.mxu0 %v865
        %875 = vmatprep.subr.bf16.mxu0 0
        %876 = vmatpush1.bf16.msra.mxu0 0
        %877 = vmatprep.subr.bf16.mxu0 0
        %878 = vmatpush1.bf16.msra.mxu0 0
        %879 = vmatprep.subr.bf16.mxu0 0
        %880 = vmatpush1.bf16.msra.mxu0 0
        %881 = vmatprep.subr.bf16.mxu0 0
        %882 = vmatpush1.bf16.msra.mxu0 0
        %883 = vmatprep.subr.bf16.mxu0 0
        %884 = vmatpush1.bf16.msra.mxu0 0
        %885 = vmatprep.subr.bf16.mxu0 0
        %886 = vmatpush1.bf16.msra.mxu0 0
        %887 = vmatprep.subr.bf16.mxu0 0
        %888 = vmatpush1.bf16.msra.mxu0 0
        %889 = vmatprep.subr.bf16.mxu0 0
        %890 = vmatpush1.bf16.msra.mxu0 0
        %891 = vmatprep.subr.bf16.mxu0 0
        %892 = vmatpush1.bf16.msra.mxu0 0
        %893 = vmatprep.subr.bf16.mxu0 0
        %894 = vmatpush1.bf16.msra.mxu0 0
        %895 = vmatprep.subr.bf16.mxu0 0
        %896 = vmatpush1.bf16.msra.mxu0 0
        %897 = vmatprep.subr.bf16.mxu0 0
        %898 = vmatpush1.bf16.msra.mxu0 0
        %899 = vmatprep.subr.bf16.mxu0 0
        %900 = vmatpush1.bf16.msra.mxu0 0
        %901 = vmatprep.subr.bf16.mxu0 0
        %902 = vmatpush1.bf16.msra.mxu0 0
        %903 = vmatprep.mubr.bf16.mxu0 0
        %904 = vmatmul.mubr.bf16.gmra.mrb[0].mxu0 %v869
        %v905 = vpop.f32.mrb[0].mxu0
        %v906 = vadd.f32 0.0, %v905
        %v907 = vpop.f32.mrb[0].mxu0
        %v908 = vpop.f32.mrb[0].mxu0
        %v909 = vpop.f32.mrb[0].mxu0
        %910 = vdwg.mxu0
        %912 = vrot.lane.b32.xlu0 %v854, 32
        %v913 = vpop.permute.xlu0 %912
        %v918 = vunpack.c.l.b16 %v419
        %v919 = vunpack.c.l.b16 %v420
        %v920 = vunpack.c.l.b16 %v421
        %v921 = vunpack.c.l.b16 %v422
        %v922 = vpack.c.b16 %v919, %v918
        %v923 = vpack.c.b16 %v921, %v920
        %v927 = vsel %vm329, %v913, 0
        %929 = vmatprep.subr.bf16.mxu0 0
        %930 = vmatpush1.bf16.msra.mxu0 %v922
        %931 = vmatprep.subr.bf16.mxu0 0
        %932 = vmatpush1.bf16.msra.mxu0 %v923
        %933 = vmatprep.subr.bf16.mxu0 0
        %934 = vmatpush1.bf16.msra.mxu0 0
        %935 = vmatprep.subr.bf16.mxu0 0
        %936 = vmatpush1.bf16.msra.mxu0 0
        %937 = vmatprep.subr.bf16.mxu0 0
        %938 = vmatpush1.bf16.msra.mxu0 0
        %939 = vmatprep.subr.bf16.mxu0 0
        %940 = vmatpush1.bf16.msra.mxu0 0
        %941 = vmatprep.subr.bf16.mxu0 0
        %942 = vmatpush1.bf16.msra.mxu0 0
        %943 = vmatprep.subr.bf16.mxu0 0
        %944 = vmatpush1.bf16.msra.mxu0 0
        %945 = vmatprep.subr.bf16.mxu0 0
        %946 = vmatpush1.bf16.msra.mxu0 0
        %947 = vmatprep.subr.bf16.mxu0 0
        %948 = vmatpush1.bf16.msra.mxu0 0
        %949 = vmatprep.subr.bf16.mxu0 0
        %950 = vmatpush1.bf16.msra.mxu0 0
        %951 = vmatprep.subr.bf16.mxu0 0
        %952 = vmatpush1.bf16.msra.mxu0 0
        %953 = vmatprep.subr.bf16.mxu0 0
        %954 = vmatpush1.bf16.msra.mxu0 0
        %955 = vmatprep.subr.bf16.mxu0 0
        %956 = vmatpush1.bf16.msra.mxu0 0
        %957 = vmatprep.subr.bf16.mxu0 0
        %958 = vmatpush1.bf16.msra.mxu0 0
        %959 = vmatprep.subr.bf16.mxu0 0
        %960 = vmatpush1.bf16.msra.mxu0 0
        %961 = vmatprep.mubr.bf16.mxu0 0
        %962 = vmatmul.mubr.bf16.gmra.mrb[0].mxu0 %v927
        %v963 = vpop.f32.mrb[0].mxu0
        %v964 = vadd.f32 %v906, %v963
        %v965 = vpop.f32.mrb[0].mxu0
        %v966 = vpop.f32.mrb[0].mxu0
        %v967 = vpop.f32.mrb[0].mxu0
        %968 = vdwg.mxu0
        %v969 = vadd.f32 %v964, %v445
        %v970 = vmul.f32 %v969, 0.5
        %v971 = vtanh.pop %v970
        %v972 = vadd.f32 %v971, 1.0
        %v973 = vmul.f32 %v972, 0.5
        %v974 = vtanh.pop %v969
        %976 = vrot.lane.b32.xlu0 %v460, 32
        %v977 = vpop.permute.xlu0 %976
        %v979 = vmul.f32 %v973, %v977
        %981 = vrot.lane.b32.xlu0 %v974, 64
        %v982 = vpop.permute.xlu0 %981
        %v984 = vmul.f32 %v973, %v982
        %986 = vrot.lane.b32.xlu0 %v984, 32
        %v987 = vpop.permute.xlu0 %986
        %v989 = vadd.f32 %v979, %v987
        %v990 = vtanh.pop %v989
        %992 = vrot.lane.b32.xlu0 %v990, 64
        %v993 = vpop.permute.xlu0 %992
        %v995 = vmul.f32 %v973, %v993
        %997 = vrot.lane.b32.xlu0 %v453, 96
        %v998 = vpop.permute.xlu0 %997
        %v1000 = vsel %vm467, %v995, %v998
        %v1001 = vsel %vm467, %v989, %v977
        %v1002 = vsel %vm467, %v995, 0.0
        %1004 = vrot.lane.b32.xlu0 %v1002, 32
        %v1005 = vpop.permute.xlu0 %1004
        %1007 = vst.msk [vmem:[%s264] sm:$0xff] %vm329, %v1005
        %s1008 = sadd.s32 %s291, 1
        %v1009 = vstv %s1008
        %vm1010 = vcmp.gt.s32.totalorder %v290, %v1009
        %v1011 = vsel %vm1010, 1, 0
        %1012 = vset.pattern.permute.xlu0 0
        %1013 = vperm.xlu0 %1012, %v1011
        %v1014 = vpop.permute.xlu0 %1013
        %vm1015 = vcmp.eq.s32.totalorder %v1014, 1
        %s1016 = scalar_lea.vmem [#allocation2], 8
        %v1017 = vld [vmem:[%s1016] sm:$0xff]
        %1018 = vmatprep.subr.bf16.mxu0 0
        %1019 = vmatpush1.bf16.msra.mxu0 %v478
        %1020 = vmatprep.subr.bf16.mxu0 0
        %1021 = vmatpush1.bf16.msra.mxu0 %v479
        %1022 = vmatprep.subr.bf16.mxu0 0
        %1023 = vmatpush1.bf16.msra.mxu0 0
        %1024 = vmatprep.subr.bf16.mxu0 0
        %1025 = vmatpush1.bf16.msra.mxu0 0
        %1026 = vmatprep.subr.bf16.mxu0 0
        %1027 = vmatpush1.bf16.msra.mxu0 0
        %1028 = vmatprep.subr.bf16.mxu0 0
        %1029 = vmatpush1.bf16.msra.mxu0 0
        %1030 = vmatprep.subr.bf16.mxu0 0
        %1031 = vmatpush1.bf16.msra.mxu0 0
        %1032 = vmatprep.subr.bf16.mxu0 0
        %1033 = vmatpush1.bf16.msra.mxu0 0
        %1034 = vmatprep.subr.bf16.mxu0 0
        %1035 = vmatpush1.bf16.msra.mxu0 0
        %1036 = vmatprep.subr.bf16.mxu0 0
        %1037 = vmatpush1.bf16.msra.mxu0 0
        %1038 = vmatprep.subr.bf16.mxu0 0
        %1039 = vmatpush1.bf16.msra.mxu0 0
        %1040 = vmatprep.subr.bf16.mxu0 0
        %1041 = vmatpush1.bf16.msra.mxu0 0
        %1042 = vmatprep.subr.bf16.mxu0 0
        %1043 = vmatpush1.bf16.msra.mxu0 0
        %1044 = vmatprep.subr.bf16.mxu0 0
        %1045 = vmatpush1.bf16.msra.mxu0 0
        %1046 = vmatprep.subr.bf16.mxu0 0
        %1047 = vmatpush1.bf16.msra.mxu0 0
        %1048 = vmatprep.subr.bf16.mxu0 0
        %1049 = vmatpush1.bf16.msra.mxu0 0
        %1050 = vmatprep.mubr.bf16.mxu0 0
        %1051 = vmatmul.mubr.bf16.gmra.mrb[0].mxu0 %v631
        %v1052 = vpop.f32.mrb[0].mxu0
        %v1053 = vadd.f32 0.0, %v1052
        %v1054 = vpop.f32.mrb[0].mxu0
        %v1055 = vpop.f32.mrb[0].mxu0
        %v1056 = vpop.f32.mrb[0].mxu0
        %1057 = vdwg.mxu0
        %v1058 = vadd.f32 %v1017, %v1053
        %v1059 = vmul.f32 %v1058, 0.5
        %v1060 = vtanh.pop %v1059
        %v1061 = vadd.f32 %v1060, 1.0
        %v1062 = vmul.f32 %v1061, 0.5
        %v1063 = vtanh.pop %v1058
        %v1064 = vmul.f32 %v1062, %v557
        %1066 = vrot.lane.b32.xlu0 %v1063, 64
        %v1067 = vpop.permute.xlu0 %1066
        %v1069 = vmul.f32 %v1062, %v1067
        %1071 = vrot.lane.b32.xlu0 %v1069, 32
        %v1072 = vpop.permute.xlu0 %1071
        %v1074 = vadd.f32 %v1064, %v1072
        %v1075 = vtanh.pop %v1074
        %1077 = vrot.lane.b32.xlu0 %v1075, 64
        %v1078 = vpop.permute.xlu0 %1077
        %v1080 = vmul.f32 %v1062, %v1078
        %v1081 = vsel %vm1015, %v1080, %v556
        %v1082 = vsel %vm1015, %v1074, %v557
        %v1083 = vpack.c.bf16 %v1081, %v1081
        %1084 = vmatprep.subr.bf16.mxu0 0
        %1085 = vmatpush1.bf16.msra.mxu0 %v568
        %1086 = vmatprep.subr.bf16.mxu0 0
        %1087 = vmatpush1.bf16.msra.mxu0 %v569
        %1088 = vmatprep.subr.bf16.mxu0 0
        %1089 = vmatpush1.bf16.msra.mxu0 0
        %1090 = vmatprep.subr.bf16.mxu0 0
        %1091 = vmatpush1.bf16.msra.mxu0 0
        %1092 = vmatprep.subr.bf16.mxu0 0
        %1093 = vmatpush1.bf16.msra.mxu0 0
        %1094 = vmatprep.subr.bf16.mxu0 0
        %1095 = vmatpush1.bf16.msra.mxu0 0
        %1096 = vmatprep.subr.bf16.mxu0 0
        %1097 = vmatpush1.bf16.msra.mxu0 0
        %1098 = vmatprep.subr.bf16.mxu0 0
        %1099 = vmatpush1.bf16.msra.mxu0 0
        %1100 = vmatprep.subr.bf16.mxu0 0
        %1101 = vmatpush1.bf16.msra.mxu0 0
        %1102 = vmatprep.subr.bf16.mxu0 0
        %1103 = vmatpush1.bf16.msra.mxu0 0
        %1104 = vmatprep.subr.bf16.mxu0 0
        %1105 = vmatpush1.bf16.msra.mxu0 0
        %1106 = vmatprep.subr.bf16.mxu0 0
        %1107 = vmatpush1.bf16.msra.mxu0 0
        %1108 = vmatprep.subr.bf16.mxu0 0
        %1109 = vmatpush1.bf16.msra.mxu0 0
        %1110 = vmatprep.subr.bf16.mxu0 0
        %1111 = vmatpush1.bf16.msra.mxu0 0
        %1112 = vmatprep.subr.bf16.mxu0 0
        %1113 = vmatpush1.bf16.msra.mxu0 0
        %1114 = vmatprep.subr.bf16.mxu0 0
        %1115 = vmatpush1.bf16.msra.mxu0 0
        %1116 = vmatprep.mubr.bf16.mxu0 0
        %1117 = vmatmul.mubr.bf16.gmra.mrb[0].mxu0 %v779
        %v1118 = vpop.f32.mrb[0].mxu0
        %v1119 = vadd.f32 0.0, %v1118
        %v1120 = vpop.f32.mrb[0].mxu0
        %v1121 = vpop.f32.mrb[0].mxu0
        %v1122 = vpop.f32.mrb[0].mxu0
        %1123 = vdwg.mxu0
        %1125 = vrot.lane.b32.xlu0 %v1083, 32
        %v1126 = vpop.permute.xlu0 %1125
        %v1128 = vsel %vm329, %v1126, 0
        %1130 = vmatprep.subr.bf16.mxu0 0
        %1131 = vmatpush1.bf16.msra.mxu0 %v626
        %1132 = vmatprep.subr.bf16.mxu0 0
        %1133 = vmatpush1.bf16.msra.mxu0 %v627
        %1134 = vmatprep.subr.bf16.mxu0 0
        %1135 = vmatpush1.bf16.msra.mxu0 0
        %1136 = vmatprep.subr.bf16.mxu0 0
        %1137 = vmatpush1.bf16.msra.mxu0 0
        %1138 = vmatprep.subr.bf16.mxu0 0
        %1139 = vmatpush1.bf16.msra.mxu0 0
        %1140 = vmatprep.subr.bf16.mxu0 0
        %1141 = vmatpush1.bf16.msra.mxu0 0
        %1142 = vmatprep.subr.bf16.mxu0 0
        %1143 = vmatpush1.bf16.msra.mxu0 0
        %1144 = vmatprep.subr.bf16.mxu0 0
        %1145 = vmatpush1.bf16.msra.mxu0 0
        %1146 = vmatprep.subr.bf16.mxu0 0
        %1147 = vmatpush1.bf16.msra.mxu0 0
        %1148 = vmatprep.subr.bf16.mxu0 0
        %1149 = vmatpush1.bf16.msra.mxu0 0
        %1150 = vmatprep.subr.bf16.mxu0 0
        %1151 = vmatpush1.bf16.msra.mxu0 0
        %1152 = vmatprep.subr.bf16.mxu0 0
        %1153 = vmatpush1.bf16.msra.mxu0 0
        %1154 = vmatprep.subr.bf16.mxu0 0
        %1155 = vmatpush1.bf16.msra.mxu0 0
        %1156 = vmatprep.subr.bf16.mxu0 0
        %1157 = vmatpush1.bf16.msra.mxu0 0
        %1158 = vmatprep.subr.bf16.mxu0 0
        %1159 = vmatpush1.bf16.msra.mxu0 0
        %1160 = vmatprep.subr.bf16.mxu0 0
        %1161 = vmatpush1.bf16.msra.mxu0 0
        %1162 = vmatprep.mubr.bf16.mxu0 0
        %1163 = vmatmul.mubr.bf16.gmra.mrb[0].mxu0 %v1128
        %v1164 = vpop.f32.mrb[0].mxu0
        %v1165 = vadd.f32 %v1119, %v1164
        %v1166 = vpop.f32.mrb[0].mxu0
        %v1167 = vpop.f32.mrb[0].mxu0
        %v1168 = vpop.f32.mrb[0].mxu0
        %1169 = vdwg.mxu0
        %v1170 = vadd.f32 %v1165, %v429
        %v1171 = vmul.f32 %v1170, 0.5
        %v1172 = vtanh.pop %v1171
        %v1173 = vadd.f32 %v1172, 1.0
        %v1174 = vmul.f32 %v1173, 0.5
        %v1175 = vtanh.pop %v1170
        %v1176 = vmul.f32 %v1174, %v705
        %1178 = vrot.lane.b32.xlu0 %v1175, 64
        %v1179 = vpop.permute.xlu0 %1178
        %v1181 = vmul.f32 %v1174, %v1179
        %1183 = vrot.lane.b32.xlu0 %v1181, 32
        %v1184 = vpop.permute.xlu0 %1183
        %v1186 = vadd.f32 %v1176, %v1184
        %v1187 = vtanh.pop %v1186
        %1189 = vrot.lane.b32.xlu0 %v1187, 64
        %v1190 = vpop.permute.xlu0 %1189
        %v1192 = vmul.f32 %v1174, %v1190
        %v1193 = vsel %vm1015, %v1192, %v704
        %v1194 = vsel %vm1015, %v1186, %v705
        %v1195 = vpack.c.bf16 %v1193, %v1193
        %1196 = vmatprep.subr.bf16.mxu0 0
        %1197 = vmatpush1.bf16.msra.mxu0 %v716
        %1198 = vmatprep.subr.bf16.mxu0 0
        %1199 = vmatpush1.bf16.msra.mxu0 %v717
        %1200 = vmatprep.subr.bf16.mxu0 0
        %1201 = vmatpush1.bf16.msra.mxu0 0
        %1202 = vmatprep.subr.bf16.mxu0 0
        %1203 = vmatpush1.bf16.msra.mxu0 0
        %1204 = vmatprep.subr.bf16.mxu0 0
        %1205 = vmatpush1.bf16.msra.mxu0 0
        %1206 = vmatprep.subr.bf16.mxu0 0
        %1207 = vmatpush1.bf16.msra.mxu0 0
        %1208 = vmatprep.subr.bf16.mxu0 0
        %1209 = vmatpush1.bf16.msra.mxu0 0
        %1210 = vmatprep.subr.bf16.mxu0 0
        %1211 = vmatpush1.bf16.msra.mxu0 0
        %1212 = vmatprep.subr.bf16.mxu0 0
        %1213 = vmatpush1.bf16.msra.mxu0 0
        %1214 = vmatprep.subr.bf16.mxu0 0
        %1215 = vmatpush1.bf16.msra.mxu0 0
        %1216 = vmatprep.subr.bf16.mxu0 0
        %1217 = vmatpush1.bf16.msra.mxu0 0
        %1218 = vmatprep.subr.bf16.mxu0 0
        %1219 = vmatpush1.bf16.msra.mxu0 0
        %1220 = vmatprep.subr.bf16.mxu0 0
        %1221 = vmatpush1.bf16.msra.mxu0 0
        %1222 = vmatprep.subr.bf16.mxu0 0
        %1223 = vmatpush1.bf16.msra.mxu0 0
        %1224 = vmatprep.subr.bf16.mxu0 0
        %1225 = vmatpush1.bf16.msra.mxu0 0
        %1226 = vmatprep.subr.bf16.mxu0 0
        %1227 = vmatpush1.bf16.msra.mxu0 0
        %1228 = vmatprep.mubr.bf16.mxu0 0
        %1229 = vmatmul.mubr.bf16.gmra.mrb[0].mxu0 %v927
        %v1230 = vpop.f32.mrb[0].mxu0
        %v1231 = vadd.f32 0.0, %v1230
        %v1232 = vpop.f32.mrb[0].mxu0
        %v1233 = vpop.f32.mrb[0].mxu0
        %v1234 = vpop.f32.mrb[0].mxu0
        %1235 = vdwg.mxu0
        %1237 = vrot.lane.b32.xlu0 %v1195, 32
        %v1238 = vpop.permute.xlu0 %1237
        %v1240 = vsel %vm329, %v1238, 0
        %1242 = vmatprep.subr.bf16.mxu0 0
        %1243 = vmatpush1.bf16.msra.mxu0 %v774
        %1244 = vmatprep.subr.bf16.mxu0 0
        %1245 = vmatpush1.bf16.msra.mxu0 %v775
        %1246 = vmatprep.subr.bf16.mxu0 0
        %1247 = vmatpush1.bf16.msra.mxu0 0
        %1248 = vmatprep.subr.bf16.mxu0 0
        %1249 = vmatpush1.bf16.msra.mxu0 0
        %1250 = vmatprep.subr.bf16.mxu0 0
        %1251 = vmatpush1.bf16.msra.mxu0 0
        %1252 = vmatprep.subr.bf16.mxu0 0
        %1253 = vmatpush1.bf16.msra.mxu0 0
        %1254 = vmatprep.subr.bf16.mxu0 0
        %1255 = vmatpush1.bf16.msra.mxu0 0
        %1256 = vmatprep.subr.bf16.mxu0 0
        %1257 = vmatpush1.bf16.msra.mxu0 0
        %1258 = vmatprep.subr.bf16.mxu0 0
        %1259 = vmatpush1.bf16.msra.mxu0 0
        %1260 = vmatprep.subr.bf16.mxu0 0
        %1261 = vmatpush1.bf16.msra.mxu0 0
        %1262 = vmatprep.subr.bf16.mxu0 0
        %1263 = vmatpush1.bf16.msra.mxu0 0
        %1264 = vmatprep.subr.bf16.mxu0 0
        %1265 = vmatpush1.bf16.msra.mxu0 0
        %1266 = vmatprep.subr.bf16.mxu0 0
        %1267 = vmatpush1.bf16.msra.mxu0 0
        %1268 = vmatprep.subr.bf16.mxu0 0
        %1269 = vmatpush1.bf16.msra.mxu0 0
        %1270 = vmatprep.subr.bf16.mxu0 0
        %1271 = vmatpush1.bf16.msra.mxu0 0
        %1272 = vmatprep.subr.bf16.mxu0 0
        %1273 = vmatpush1.bf16.msra.mxu0 0
        %1274 = vmatprep.mubr.bf16.mxu0 0
        %1275 = vmatmul.mubr.bf16.gmra.mrb[0].mxu0 %v1240
        %v1276 = vpop.f32.mrb[0].mxu0
        %v1277 = vadd.f32 %v1231, %v1276
        %v1278 = vpop.f32.mrb[0].mxu0
        %v1279 = vpop.f32.mrb[0].mxu0
        %v1280 = vpop.f32.mrb[0].mxu0
        %1281 = vdwg.mxu0
        %v1282 = vadd.f32 %v1277, %v437
        %v1283 = vmul.f32 %v1282, 0.5
        %v1284 = vtanh.pop %v1283
        %v1285 = vadd.f32 %v1284, 1.0
        %v1286 = vmul.f32 %v1285, 0.5
        %v1287 = vtanh.pop %v1282
        %v1288 = vmul.f32 %v1286, %v853
        %1290 = vrot.lane.b32.xlu0 %v1287, 64
        %v1291 = vpop.permute.xlu0 %1290
        %v1293 = vmul.f32 %v1286, %v1291
        %1295 = vrot.lane.b32.xlu0 %v1293, 32
        %v1296 = vpop.permute.xlu0 %1295
        %v1298 = vadd.f32 %v1288, %v1296
        %v1299 = vtanh.pop %v1298
        %1301 = vrot.lane.b32.xlu0 %v1299, 64
        %v1302 = vpop.permute.xlu0 %1301
        %v1304 = vmul.f32 %v1286, %v1302
        %v1305 = vsel %vm1015, %v1304, %v852
        %v1306 = vsel %vm1015, %v1298, %v853
        %v1307 = vpack.c.bf16 %v1305, %v1305
        %v1308 = vpack.c.bf16 %v1000, %v1000
        %1310 = vrot.lane.b32.xlu0 %v1308, 32
        %v1311 = vpop.permute.xlu0 %1310
        %v1313 = vsel %vm329, %v1311, 0
        %1315 = vmatprep.subr.bf16.mxu0 0
        %1316 = vmatpush1.bf16.msra.mxu0 %v864
        %1317 = vmatprep.subr.bf16.mxu0 0
        %1318 = vmatpush1.bf16.msra.mxu0 %v865
        %1319 = vmatprep.subr.bf16.mxu0 0
        %1320 = vmatpush1.bf16.msra.mxu0 0
        %1321 = vmatprep.subr.bf16.mxu0 0
        %1322 = vmatpush1.bf16.msra.mxu0 0
        %1323 = vmatprep.subr.bf16.mxu0 0
        %1324 = vmatpush1.bf16.msra.mxu0 0
        %1325 = vmatprep.subr.bf16.mxu0 0
        %1326 = vmatpush1.bf16.msra.mxu0 0
        %1327 = vmatprep.subr.bf16.mxu0 0
        %1328 = vmatpush1.bf16.msra.mxu0 0
        %1329 = vmatprep.subr.bf16.mxu0 0
        %1330 = vmatpush1.bf16.msra.mxu0 0
        %1331 = vmatprep.subr.bf16.mxu0 0
        %1332 = vmatpush1.bf16.msra.mxu0 0
        %1333 = vmatprep.subr.bf16.mxu0 0
        %1334 = vmatpush1.bf16.msra.mxu0 0
        %1335 = vmatprep.subr.bf16.mxu0 0
        %1336 = vmatpush1.bf16.msra.mxu0 0
        %1337 = vmatprep.subr.bf16.mxu0 0
        %1338 = vmatpush1.bf16.msra.mxu0 0
        %1339 = vmatprep.subr.bf16.mxu0 0
        %1340 = vmatpush1.bf16.msra.mxu0 0
        %1341 = vmatprep.subr.bf16.mxu0 0
        %1342 = vmatpush1.bf16.msra.mxu0 0
        %1343 = vmatprep.subr.bf16.mxu0 0
        %1344 = vmatpush1.bf16.msra.mxu0 0
        %1345 = vmatprep.subr.bf16.mxu0 0
        %1346 = vmatpush1.bf16.msra.mxu0 0
        %1347 = vmatprep.mubr.bf16.mxu0 0
        %1348 = vmatmul.mubr.bf16.gmra.mrb[0].mxu0 %v1313
        %v1349 = vpop.f32.mrb[0].mxu0
        %v1350 = vadd.f32 0.0, %v1349
        %v1351 = vpop.f32.mrb[0].mxu0
        %v1352 = vpop.f32.mrb[0].mxu0
        %v1353 = vpop.f32.mrb[0].mxu0
        %1354 = vdwg.mxu0
        %1356 = vrot.lane.b32.xlu0 %v1307, 32
        %v1357 = vpop.permute.xlu0 %1356
        %v1359 = vsel %vm329, %v1357, 0
        %1361 = vmatprep.subr.bf16.mxu0 0
        %1362 = vmatpush1.bf16.msra.mxu0 %v922
        %1363 = vmatprep.subr.bf16.mxu0 0
        %1364 = vmatpush1.bf16.msra.mxu0 %v923
        %1365 = vmatprep.subr.bf16.mxu0 0
        %1366 = vmatpush1.bf16.msra.mxu0 0
        %1367 = vmatprep.subr.bf16.mxu0 0
        %1368 = vmatpush1.bf16.msra.mxu0 0
        %1369 = vmatprep.subr.bf16.mxu0 0
        %1370 = vmatpush1.bf16.msra.mxu0 0
        %1371 = vmatprep.subr.bf16.mxu0 0
        %1372 = vmatpush1.bf16.msra.mxu0 0
        %1373 = vmatprep.subr.bf16.mxu0 0
        %1374 = vmatpush1.bf16.msra.mxu0 0
        %1375 = vmatprep.subr.bf16.mxu0 0
        %1376 = vmatpush1.bf16.msra.mxu0 0
        %1377 = vmatprep.subr.bf16.mxu0 0
        %1378 = vmatpush1.bf16.msra.mxu0 0
        %1379 = vmatprep.subr.bf16.mxu0 0
        %1380 = vmatpush1.bf16.msra.mxu0 0
        %1381 = vmatprep.subr.bf16.mxu0 0
        %1382 = vmatpush1.bf16.msra.mxu0 0
        %1383 = vmatprep.subr.bf16.mxu0 0
        %1384 = vmatpush1.bf16.msra.mxu0 0
        %1385 = vmatprep.subr.bf16.mxu0 0
        %1386 = vmatpush1.bf16.msra.mxu0 0
        %1387 = vmatprep.subr.bf16.mxu0 0
        %1388 = vmatpush1.bf16.msra.mxu0 0
        %1389 = vmatprep.subr.bf16.mxu0 0
        %1390 = vmatpush1.bf16.msra.mxu0 0
        %1391 = vmatprep.subr.bf16.mxu0 0
        %1392 = vmatpush1.bf16.msra.mxu0 0
        %1393 = vmatprep.mubr.bf16.mxu0 0
        %1394 = vmatmul.mubr.bf16.gmra.mrb[0].mxu0 %v1359
        %v1395 = vpop.f32.mrb[0].mxu0
        %v1396 = vadd.f32 %v1350, %v1395
        %v1397 = vpop.f32.mrb[0].mxu0
        %v1398 = vpop.f32.mrb[0].mxu0
        %v1399 = vpop.f32.mrb[0].mxu0
        %1400 = vdwg.mxu0
        %v1401 = vadd.f32 %v1396, %v445
        %v1402 = vmul.f32 %v1401, 0.5
        %v1403 = vtanh.pop %v1402
        %v1404 = vadd.f32 %v1403, 1.0
        %v1405 = vmul.f32 %v1404, 0.5
        %v1406 = vtanh.pop %v1401
        %v1407 = vmul.f32 %v1405, %v1001
        %1409 = vrot.lane.b32.xlu0 %v1406, 64
        %v1410 = vpop.permute.xlu0 %1409
        %v1412 = vmul.f32 %v1405, %v1410
        %1414 = vrot.lane.b32.xlu0 %v1412, 32
        %v1415 = vpop.permute.xlu0 %1414
        %v1417 = vadd.f32 %v1407, %v1415
        %v1418 = vtanh.pop %v1417
        %1420 = vrot.lane.b32.xlu0 %v1418, 64
        %v1421 = vpop.permute.xlu0 %1420
        %v1423 = vmul.f32 %v1405, %v1421
        %v1424 = vsel %vm1015, %v1423, %v1000
        %v1425 = vsel %vm1015, %v1417, %v1001
        %v1426 = vsel %vm1015, %v1423, 0.0
        %1428 = vrot.lane.b32.xlu0 %v1426, 32
        %v1429 = vpop.permute.xlu0 %1428
        %s1431 = scalar_lea.vmem %s264, 8 [#allocation3]
        %1432 = vst.msk [vmem:[%s1431] sm:$0xff] %vm329, %v1429
        %s1433 = sadd.s32 %s291, 2
        %v1434 = vstv %s1433
        %vm1435 = vcmp.gt.s32.totalorder %v290, %v1434
        %v1436 = vsel %vm1435, 1, 0
        %1437 = vset.pattern.permute.xlu0 0
        %1438 = vperm.xlu0 %1437, %v1436
        %v1439 = vpop.permute.xlu0 %1438
        %vm1440 = vcmp.eq.s32.totalorder %v1439, 1
        %s1441 = scalar_lea.vmem [#allocation2], 16
        %v1442 = vld [vmem:[%s1441] sm:$0xff]
        %1443 = vmatprep.subr.bf16.mxu0 0
        %1444 = vmatpush1.bf16.msra.mxu0 %v478
        %1445 = vmatprep.subr.bf16.mxu0 0
        %1446 = vmatpush1.bf16.msra.mxu0 %v479
        %1447 = vmatprep.subr.bf16.mxu0 0
        %1448 = vmatpush1.bf16.msra.mxu0 0
        %1449 = vmatprep.subr.bf16.mxu0 0
        %1450 = vmatpush1.bf16.msra.mxu0 0
        %1451 = vmatprep.subr.bf16.mxu0 0
        %1452 = vmatpush1.bf16.msra.mxu0 0
        %1453 = vmatprep.subr.bf16.mxu0 0
        %1454 = vmatpush1.bf16.msra.mxu0 0
        %1455 = vmatprep.subr.bf16.mxu0 0
        %1456 = vmatpush1.bf16.msra.mxu0 0
        %1457 = vmatprep.subr.bf16.mxu0 0
        %1458 = vmatpush1.bf16.msra.mxu0 0
        %1459 = vmatprep.subr.bf16.mxu0 0
        %1460 = vmatpush1.bf16.msra.mxu0 0
        %1461 = vmatprep.subr.bf16.mxu0 0
        %1462 = vmatpush1.bf16.msra.mxu0 0
        %1463 = vmatprep.subr.bf16.mxu0 0
        %1464 = vmatpush1.bf16.msra.mxu0 0
        %1465 = vmatprep.subr.bf16.mxu0 0
        %1466 = vmatpush1.bf16.msra.mxu0 0
        %1467 = vmatprep.subr.bf16.mxu0 0
        %1468 = vmatpush1.bf16.msra.mxu0 0
        %1469 = vmatprep.subr.bf16.mxu0 0
        %1470 = vmatpush1.bf16.msra.mxu0 0
        %1471 = vmatprep.subr.bf16.mxu0 0
        %1472 = vmatpush1.bf16.msra.mxu0 0
        %1473 = vmatprep.subr.bf16.mxu0 0
        %1474 = vmatpush1.bf16.msra.mxu0 0
        %1475 = vmatprep.mubr.bf16.mxu0 0
        %1476 = vmatmul.mubr.bf16.gmra.mrb[0].mxu0 %v1128
        %v1477 = vpop.f32.mrb[0].mxu0
        %v1478 = vadd.f32 0.0, %v1477
        %v1479 = vpop.f32.mrb[0].mxu0
        %v1480 = vpop.f32.mrb[0].mxu0
        %v1481 = vpop.f32.mrb[0].mxu0
        %1482 = vdwg.mxu0
        %v1483 = vadd.f32 %v1442, %v1478
        %v1484 = vmul.f32 %v1483, 0.5
        %v1485 = vtanh.pop %v1484
        %v1486 = vadd.f32 %v1485, 1.0
        %v1487 = vmul.f32 %v1486, 0.5
        %v1488 = vtanh.pop %v1483
        %v1489 = vmul.f32 %v1487, %v1082
        %1491 = vrot.lane.b32.xlu0 %v1488, 64
        %v1492 = vpop.permute.xlu0 %1491
        %v1494 = vmul.f32 %v1487, %v1492
        %1496 = vrot.lane.b32.xlu0 %v1494, 32
        %v1497 = vpop.permute.xlu0 %1496
        %v1499 = vadd.f32 %v1489, %v1497
        %v1500 = vtanh.pop %v1499
        %1502 = vrot.lane.b32.xlu0 %v1500, 64
        %v1503 = vpop.permute.xlu0 %1502
        %v1505 = vmul.f32 %v1487, %v1503
        %v1506 = vsel %vm1440, %v1505, %v1081
        %v1507 = vsel %vm1440, %v1499, %v1082
        %v1508 = vpack.c.bf16 %v1506, %v1506
        %1509 = vmatprep.subr.bf16.mxu0 0
        %1510 = vmatpush1.bf16.msra.mxu0 %v568
        %1511 = vmatprep.subr.bf16.mxu0 0
        %1512 = vmatpush1.bf16.msra.mxu0 %v569
        %1513 = vmatprep.subr.bf16.mxu0 0
        %1514 = vmatpush1.bf16.msra.mxu0 0
        %1515 = vmatprep.subr.bf16.mxu0 0
        %1516 = vmatpush1.bf16.msra.mxu0 0
        %1517 = vmatprep.subr.bf16.mxu0 0
        %1518 = vmatpush1.bf16.msra.mxu0 0
        %1519 = vmatprep.subr.bf16.mxu0 0
        %1520 = vmatpush1.bf16.msra.mxu0 0
        %1521 = vmatprep.subr.bf16.mxu0 0
        %1522 = vmatpush1.bf16.msra.mxu0 0
        %1523 = vmatprep.subr.bf16.mxu0 0
        %1524 = vmatpush1.bf16.msra.mxu0 0
        %1525 = vmatprep.subr.bf16.mxu0 0
        %1526 = vmatpush1.bf16.msra.mxu0 0
        %1527 = vmatprep.subr.bf16.mxu0 0
        %1528 = vmatpush1.bf16.msra.mxu0 0
        %1529 = vmatprep.subr.bf16.mxu0 0
        %1530 = vmatpush1.bf16.msra.mxu0 0
        %1531 = vmatprep.subr.bf16.mxu0 0
        %1532 = vmatpush1.bf16.msra.mxu0 0
        %1533 = vmatprep.subr.bf16.mxu0 0
        %1534 = vmatpush1.bf16.msra.mxu0 0
        %1535 = vmatprep.subr.bf16.mxu0 0
        %1536 = vmatpush1.bf16.msra.mxu0 0
        %1537 = vmatprep.subr.bf16.mxu0 0
        %1538 = vmatpush1.bf16.msra.mxu0 0
        %1539 = vmatprep.subr.bf16.mxu0 0
        %1540 = vmatpush1.bf16.msra.mxu0 0
        %1541 = vmatprep.mubr.bf16.mxu0 0
        %1542 = vmatmul.mubr.bf16.gmra.mrb[0].mxu0 %v1240
        %v1543 = vpop.f32.mrb[0].mxu0
        %v1544 = vadd.f32 0.0, %v1543
        %v1545 = vpop.f32.mrb[0].mxu0
        %v1546 = vpop.f32.mrb[0].mxu0
        %v1547 = vpop.f32.mrb[0].mxu0
        %1548 = vdwg.mxu0
        %1550 = vrot.lane.b32.xlu0 %v1508, 32
        %v1551 = vpop.permute.xlu0 %1550
        %v1553 = vsel %vm329, %v1551, 0
        %1555 = vmatprep.subr.bf16.mxu0 0
        %1556 = vmatpush1.bf16.msra.mxu0 %v626
        %1557 = vmatprep.subr.bf16.mxu0 0
        %1558 = vmatpush1.bf16.msra.mxu0 %v627
        %1559 = vmatprep.subr.bf16.mxu0 0
        %1560 = vmatpush1.bf16.msra.mxu0 0
        %1561 = vmatprep.subr.bf16.mxu0 0
        %1562 = vmatpush1.bf16.msra.mxu0 0
        %1563 = vmatprep.subr.bf16.mxu0 0
        %1564 = vmatpush1.bf16.msra.mxu0 0
        %1565 = vmatprep.subr.bf16.mxu0 0
        %1566 = vmatpush1.bf16.msra.mxu0 0
        %1567 = vmatprep.subr.bf16.mxu0 0
        %1568 = vmatpush1.bf16.msra.mxu0 0
        %1569 = vmatprep.subr.bf16.mxu0 0
        %1570 = vmatpush1.bf16.msra.mxu0 0
        %1571 = vmatprep.subr.bf16.mxu0 0
        %1572 = vmatpush1.bf16.msra.mxu0 0
        %1573 = vmatprep.subr.bf16.mxu0 0
        %1574 = vmatpush1.bf16.msra.mxu0 0
        %1575 = vmatprep.subr.bf16.mxu0 0
        %1576 = vmatpush1.bf16.msra.mxu0 0
        %1577 = vmatprep.subr.bf16.mxu0 0
        %1578 = vmatpush1.bf16.msra.mxu0 0
        %1579 = vmatprep.subr.bf16.mxu0 0
        %1580 = vmatpush1.bf16.msra.mxu0 0
        %1581 = vmatprep.subr.bf16.mxu0 0
        %1582 = vmatpush1.bf16.msra.mxu0 0
        %1583 = vmatprep.subr.bf16.mxu0 0
        %1584 = vmatpush1.bf16.msra.mxu0 0
        %1585 = vmatprep.subr.bf16.mxu0 0
        %1586 = vmatpush1.bf16.msra.mxu0 0
        %1587 = vmatprep.mubr.bf16.mxu0 0
        %1588 = vmatmul.mubr.bf16.gmra.mrb[0].mxu0 %v1553
        %v1589 = vpop.f32.mrb[0].mxu0
        %v1590 = vadd.f32 %v1544, %v1589
        %v1591 = vpop.f32.mrb[0].mxu0
        %v1592 = vpop.f32.mrb[0].mxu0
        %v1593 = vpop.f32.mrb[0].mxu0
        %1594 = vdwg.mxu0
        %v1595 = vadd.f32 %v1590, %v429
        %v1596 = vmul.f32 %v1595, 0.5
        %v1597 = vtanh.pop %v1596
        %v1598 = vadd.f32 %v1597, 1.0
        %v1599 = vmul.f32 %v1598, 0.5
        %v1600 = vtanh.pop %v1595
        %v1601 = vmul.f32 %v1599, %v1194
        %1603 = vrot.lane.b32.xlu0 %v1600, 64
        %v1604 = vpop.permute.xlu0 %1603
        %v1606 = vmul.f32 %v1599, %v1604
        %1608 = vrot.lane.b32.xlu0 %v1606, 32
        %v1609 = vpop.permute.xlu0 %1608
        %v1611 = vadd.f32 %v1601, %v1609
        %v1612 = vtanh.pop %v1611
        %1614 = vrot.lane.b32.xlu0 %v1612, 64
        %v1615 = vpop.permute.xlu0 %1614
        %v1617 = vmul.f32 %v1599, %v1615
        %v1618 = vsel %vm1440, %v1617, %v1193
        %v1619 = vsel %vm1440, %v1611, %v1194
        %v1620 = vpack.c.bf16 %v1618, %v1618
        %1621 = vmatprep.subr.bf16.mxu0 0
        %1622 = vmatpush1.bf16.msra.mxu0 %v716
        %1623 = vmatprep.subr.bf16.mxu0 0
        %1624 = vmatpush1.bf16.msra.mxu0 %v717
        %1625 = vmatprep.subr.bf16.mxu0 0
        %1626 = vmatpush1.bf16.msra.mxu0 0
        %1627 = vmatprep.subr.bf16.mxu0 0
        %1628 = vmatpush1.bf16.msra.mxu0 0
        %1629 = vmatprep.subr.bf16.mxu0 0
        %1630 = vmatpush1.bf16.msra.mxu0 0
        %1631 = vmatprep.subr.bf16.mxu0 0
        %1632 = vmatpush1.bf16.msra.mxu0 0
        %1633 = vmatprep.subr.bf16.mxu0 0
        %1634 = vmatpush1.bf16.msra.mxu0 0
        %1635 = vmatprep.subr.bf16.mxu0 0
        %1636 = vmatpush1.bf16.msra.mxu0 0
        %1637 = vmatprep.subr.bf16.mxu0 0
        %1638 = vmatpush1.bf16.msra.mxu0 0
        %1639 = vmatprep.subr.bf16.mxu0 0
        %1640 = vmatpush1.bf16.msra.mxu0 0
        %1641 = vmatprep.subr.bf16.mxu0 0
        %1642 = vmatpush1.bf16.msra.mxu0 0
        %1643 = vmatprep.subr.bf16.mxu0 0
        %1644 = vmatpush1.bf16.msra.mxu0 0
        %1645 = vmatprep.subr.bf16.mxu0 0
        %1646 = vmatpush1.bf16.msra.mxu0 0
        %1647 = vmatprep.subr.bf16.mxu0 0
        %1648 = vmatpush1.bf16.msra.mxu0 0
        %1649 = vmatprep.subr.bf16.mxu0 0
        %1650 = vmatpush1.bf16.msra.mxu0 0
        %1651 = vmatprep.subr.bf16.mxu0 0
        %1652 = vmatpush1.bf16.msra.mxu0 0
        %1653 = vmatprep.mubr.bf16.mxu0 0
        %1654 = vmatmul.mubr.bf16.gmra.mrb[0].mxu0 %v1359
        %v1655 = vpop.f32.mrb[0].mxu0
        %v1656 = vadd.f32 0.0, %v1655
        %v1657 = vpop.f32.mrb[0].mxu0
        %v1658 = vpop.f32.mrb[0].mxu0
        %v1659 = vpop.f32.mrb[0].mxu0
        %1660 = vdwg.mxu0
        %1662 = vrot.lane.b32.xlu0 %v1620, 32
        %v1663 = vpop.permute.xlu0 %1662
        %v1665 = vsel %vm329, %v1663, 0
        %1667 = vmatprep.subr.bf16.mxu0 0
        %1668 = vmatpush1.bf16.msra.mxu0 %v774
        %1669 = vmatprep.subr.bf16.mxu0 0
        %1670 = vmatpush1.bf16.msra.mxu0 %v775
        %1671 = vmatprep.subr.bf16.mxu0 0
        %1672 = vmatpush1.bf16.msra.mxu0 0
        %1673 = vmatprep.subr.bf16.mxu0 0
        %1674 = vmatpush1.bf16.msra.mxu0 0
        %1675 = vmatprep.subr.bf16.mxu0 0
        %1676 = vmatpush1.bf16.msra.mxu0 0
        %1677 = vmatprep.subr.bf16.mxu0 0
        %1678 = vmatpush1.bf16.msra.mxu0 0
        %1679 = vmatprep.subr.bf16.mxu0 0
        %1680 = vmatpush1.bf16.msra.mxu0 0
        %1681 = vmatprep.subr.bf16.mxu0 0
        %1682 = vmatpush1.bf16.msra.mxu0 0
        %1683 = vmatprep.subr.bf16.mxu0 0
        %1684 = vmatpush1.bf16.msra.mxu0 0
        %1685 = vmatprep.subr.bf16.mxu0 0
        %1686 = vmatpush1.bf16.msra.mxu0 0
        %1687 = vmatprep.subr.bf16.mxu0 0
        %1688 = vmatpush1.bf16.msra.mxu0 0
        %1689 = vmatprep.subr.bf16.mxu0 0
        %1690 = vmatpush1.bf16.msra.mxu0 0
        %1691 = vmatprep.subr.bf16.mxu0 0
        %1692 = vmatpush1.bf16.msra.mxu0 0
        %1693 = vmatprep.subr.bf16.mxu0 0
        %1694 = vmatpush1.bf16.msra.mxu0 0
        %1695 = vmatprep.subr.bf16.mxu0 0
        %1696 = vmatpush1.bf16.msra.mxu0 0
        %1697 = vmatprep.subr.bf16.mxu0 0
        %1698 = vmatpush1.bf16.msra.mxu0 0
        %1699 = vmatprep.mubr.bf16.mxu0 0
        %1700 = vmatmul.mubr.bf16.gmra.mrb[0].mxu0 %v1665
        %v1701 = vpop.f32.mrb[0].mxu0
        %v1702 = vadd.f32 %v1656, %v1701
        %v1703 = vpop.f32.mrb[0].mxu0
        %v1704 = vpop.f32.mrb[0].mxu0
        %v1705 = vpop.f32.mrb[0].mxu0
        %1706 = vdwg.mxu0
        %v1707 = vadd.f32 %v1702, %v437
        %v1708 = vmul.f32 %v1707, 0.5
        %v1709 = vtanh.pop %v1708
        %v1710 = vadd.f32 %v1709, 1.0
        %v1711 = vmul.f32 %v1710, 0.5
        %v1712 = vtanh.pop %v1707
        %v1713 = vmul.f32 %v1711, %v1306
        %1715 = vrot.lane.b32.xlu0 %v1712, 64
        %v1716 = vpop.permute.xlu0 %1715
        %v1718 = vmul.f32 %v1711, %v1716
        %1720 = vrot.lane.b32.xlu0 %v1718, 32
        %v1721 = vpop.permute.xlu0 %1720
        %v1723 = vadd.f32 %v1713, %v1721
        %v1724 = vtanh.pop %v1723
        %1726 = vrot.lane.b32.xlu0 %v1724, 64
        %v1727 = vpop.permute.xlu0 %1726
        %v1729 = vmul.f32 %v1711, %v1727
        %v1730 = vsel %vm1440, %v1729, %v1305
        %v1731 = vsel %vm1440, %v1723, %v1306
        %v1732 = vpack.c.bf16 %v1730, %v1730
        %v1733 = vpack.c.bf16 %v1424, %v1424
        %1735 = vrot.lane.b32.xlu0 %v1733, 32
        %v1736 = vpop.permute.xlu0 %1735
        %v1738 = vsel %vm329, %v1736, 0
        %1740 = vmatprep.subr.bf16.mxu0 0
        %1741 = vmatpush1.bf16.msra.mxu0 %v864
        %1742 = vmatprep.subr.bf16.mxu0 0
        %1743 = vmatpush1.bf16.msra.mxu0 %v865
        %1744 = vmatprep.subr.bf16.mxu0 0
        %1745 = vmatpush1.bf16.msra.mxu0 0
        %1746 = vmatprep.subr.bf16.mxu0 0
        %1747 = vmatpush1.bf16.msra.mxu0 0
        %1748 = vmatprep.subr.bf16.mxu0 0
        %1749 = vmatpush1.bf16.msra.mxu0 0
        %1750 = vmatprep.subr.bf16.mxu0 0
        %1751 = vmatpush1.bf16.msra.mxu0 0
        %1752 = vmatprep.subr.bf16.mxu0 0
        %1753 = vmatpush1.bf16.msra.mxu0 0
        %1754 = vmatprep.subr.bf16.mxu0 0
        %1755 = vmatpush1.bf16.msra.mxu0 0
        %1756 = vmatprep.subr.bf16.mxu0 0
        %1757 = vmatpush1.bf16.msra.mxu0 0
        %1758 = vmatprep.subr.bf16.mxu0 0
        %1759 = vmatpush1.bf16.msra.mxu0 0
        %1760 = vmatprep.subr.bf16.mxu0 0
        %1761 = vmatpush1.bf16.msra.mxu0 0
        %1762 = vmatprep.subr.bf16.mxu0 0
        %1763 = vmatpush1.bf16.msra.mxu0 0
        %1764 = vmatprep.subr.bf16.mxu0 0
        %1765 = vmatpush1.bf16.msra.mxu0 0
        %1766 = vmatprep.subr.bf16.mxu0 0
        %1767 = vmatpush1.bf16.msra.mxu0 0
        %1768 = vmatprep.subr.bf16.mxu0 0
        %1769 = vmatpush1.bf16.msra.mxu0 0
        %1770 = vmatprep.subr.bf16.mxu0 0
        %1771 = vmatpush1.bf16.msra.mxu0 0
        %1772 = vmatprep.mubr.bf16.mxu0 0
        %1773 = vmatmul.mubr.bf16.gmra.mrb[0].mxu0 %v1738
        %v1774 = vpop.f32.mrb[0].mxu0
        %v1775 = vadd.f32 0.0, %v1774
        %v1776 = vpop.f32.mrb[0].mxu0
        %v1777 = vpop.f32.mrb[0].mxu0
        %v1778 = vpop.f32.mrb[0].mxu0
        %1779 = vdwg.mxu0
        %1781 = vrot.lane.b32.xlu0 %v1732, 32
        %v1782 = vpop.permute.xlu0 %1781
        %v1784 = vsel %vm329, %v1782, 0
        %1786 = vmatprep.subr.bf16.mxu0 0
        %1787 = vmatpush1.bf16.msra.mxu0 %v922
        %1788 = vmatprep.subr.bf16.mxu0 0
        %1789 = vmatpush1.bf16.msra.mxu0 %v923
        %1790 = vmatprep.subr.bf16.mxu0 0
        %1791 = vmatpush1.bf16.msra.mxu0 0
        %1792 = vmatprep.subr.bf16.mxu0 0
        %1793 = vmatpush1.bf16.msra.mxu0 0
        %1794 = vmatprep.subr.bf16.mxu0 0
        %1795 = vmatpush1.bf16.msra.mxu0 0
        %1796 = vmatprep.subr.bf16.mxu0 0
        %1797 = vmatpush1.bf16.msra.mxu0 0
        %1798 = vmatprep.subr.bf16.mxu0 0
        %1799 = vmatpush1.bf16.msra.mxu0 0
        %1800 = vmatprep.subr.bf16.mxu0 0
        %1801 = vmatpush1.bf16.msra.mxu0 0
        %1802 = vmatprep.subr.bf16.mxu0 0
        %1803 = vmatpush1.bf16.msra.mxu0 0
        %1804 = vmatprep.subr.bf16.mxu0 0
        %1805 = vmatpush1.bf16.msra.mxu0 0
        %1806 = vmatprep.subr.bf16.mxu0 0
        %1807 = vmatpush1.bf16.msra.mxu0 0
        %1808 = vmatprep.subr.bf16.mxu0 0
        %1809 = vmatpush1.bf16.msra.mxu0 0
        %1810 = vmatprep.subr.bf16.mxu0 0
        %1811 = vmatpush1.bf16.msra.mxu0 0
        %1812 = vmatprep.subr.bf16.mxu0 0
        %1813 = vmatpush1.bf16.msra.mxu0 0
        %1814 = vmatprep.subr.bf16.mxu0 0
        %1815 = vmatpush1.bf16.msra.mxu0 0
        %1816 = vmatprep.subr.bf16.mxu0 0
        %1817 = vmatpush1.bf16.msra.mxu0 0
        %1818 = vmatprep.mubr.bf16.mxu0 0
        %1819 = vmatmul.mubr.bf16.gmra.mrb[0].mxu0 %v1784
        %v1820 = vpop.f32.mrb[0].mxu0
        %v1821 = vadd.f32 %v1775, %v1820
        %v1822 = vpop.f32.mrb[0].mxu0
        %v1823 = vpop.f32.mrb[0].mxu0
        %v1824 = vpop.f32.mrb[0].mxu0
        %1825 = vdwg.mxu0
        %v1826 = vadd.f32 %v1821, %v445
        %v1827 = vmul.f32 %v1826, 0.5
        %v1828 = vtanh.pop %v1827
        %v1829 = vadd.f32 %v1828, 1.0
        %v1830 = vmul.f32 %v1829, 0.5
        %v1831 = vtanh.pop %v1826
        %v1832 = vmul.f32 %v1830, %v1425
        %1834 = vrot.lane.b32.xlu0 %v1831, 64
        %v1835 = vpop.permute.xlu0 %1834
        %v1837 = vmul.f32 %v1830, %v1835
        %1839 = vrot.lane.b32.xlu0 %v1837, 32
        %v1840 = vpop.permute.xlu0 %1839
        %v1842 = vadd.f32 %v1832, %v1840
        %v1843 = vtanh.pop %v1842
        %1845 = vrot.lane.b32.xlu0 %v1843, 64
        %v1846 = vpop.permute.xlu0 %1845
        %v1848 = vmul.f32 %v1830, %v1846
        %v1849 = vsel %vm1440, %v1848, %v1424
        %v1850 = vsel %vm1440, %v1842, %v1425
        %v1851 = vsel %vm1440, %v1848, 0.0
        %1853 = vrot.lane.b32.xlu0 %v1851, 32
        %v1854 = vpop.permute.xlu0 %1853
        %s1856 = scalar_lea.vmem %s264, 16 [#allocation3]
        %1857 = vst.msk [vmem:[%s1856] sm:$0xff] %vm329, %v1854
        %s1858 = sadd.s32 %s291, 3
        %v1859 = vstv %s1858
        %vm1860 = vcmp.gt.s32.totalorder %v290, %v1859
        %v1861 = vsel %vm1860, 1, 0
        %1862 = vset.pattern.permute.xlu0 0
        %1863 = vperm.xlu0 %1862, %v1861
        %v1864 = vpop.permute.xlu0 %1863
        %vm1865 = vcmp.eq.s32.totalorder %v1864, 1
        %s1866 = scalar_lea.vmem [#allocation2], 24
        %v1867 = vld [vmem:[%s1866] sm:$0xff]
        %1868 = vmatprep.subr.bf16.mxu0 0
        %1869 = vmatpush1.bf16.msra.mxu0 %v478
        %1870 = vmatprep.subr.bf16.mxu0 0
        %1871 = vmatpush1.bf16.msra.mxu0 %v479
        %1872 = vmatprep.subr.bf16.mxu0 0
        %1873 = vmatpush1.bf16.msra.mxu0 0
        %1874 = vmatprep.subr.bf16.mxu0 0
        %1875 = vmatpush1.bf16.msra.mxu0 0
        %1876 = vmatprep.subr.bf16.mxu0 0
        %1877 = vmatpush1.bf16.msra.mxu0 0
        %1878 = vmatprep.subr.bf16.mxu0 0
        %1879 = vmatpush1.bf16.msra.mxu0 0
        %1880 = vmatprep.subr.bf16.mxu0 0
        %1881 = vmatpush1.bf16.msra.mxu0 0
        %1882 = vmatprep.subr.bf16.mxu0 0
        %1883 = vmatpush1.bf16.msra.mxu0 0
        %1884 = vmatprep.subr.bf16.mxu0 0
        %1885 = vmatpush1.bf16.msra.mxu0 0
        %1886 = vmatprep.subr.bf16.mxu0 0
        %1887 = vmatpush1.bf16.msra.mxu0 0
        %1888 = vmatprep.subr.bf16.mxu0 0
        %1889 = vmatpush1.bf16.msra.mxu0 0
        %1890 = vmatprep.subr.bf16.mxu0 0
        %1891 = vmatpush1.bf16.msra.mxu0 0
        %1892 = vmatprep.subr.bf16.mxu0 0
        %1893 = vmatpush1.bf16.msra.mxu0 0
        %1894 = vmatprep.subr.bf16.mxu0 0
        %1895 = vmatpush1.bf16.msra.mxu0 0
        %1896 = vmatprep.subr.bf16.mxu0 0
        %1897 = vmatpush1.bf16.msra.mxu0 0
        %1898 = vmatprep.subr.bf16.mxu0 0
        %1899 = vmatpush1.bf16.msra.mxu0 0
        %1900 = vmatprep.mubr.bf16.mxu0 0
        %1901 = vmatmul.mubr.bf16.gmra.mrb[0].mxu0 %v1553
        %v1902 = vpop.f32.mrb[0].mxu0
        %v1903 = vadd.f32 0.0, %v1902
        %v1904 = vpop.f32.mrb[0].mxu0
        %v1905 = vpop.f32.mrb[0].mxu0
        %v1906 = vpop.f32.mrb[0].mxu0
        %1907 = vdwg.mxu0
        %v1908 = vadd.f32 %v1867, %v1903
        %v1909 = vmul.f32 %v1908, 0.5
        %v1910 = vtanh.pop %v1909
        %v1911 = vadd.f32 %v1910, 1.0
        %v1912 = vmul.f32 %v1911, 0.5
        %v1913 = vtanh.pop %v1908
        %v1914 = vmul.f32 %v1912, %v1507
        %1916 = vrot.lane.b32.xlu0 %v1913, 64
        %v1917 = vpop.permute.xlu0 %1916
        %v1919 = vmul.f32 %v1912, %v1917
        %1921 = vrot.lane.b32.xlu0 %v1919, 32
        %v1922 = vpop.permute.xlu0 %1921
        %v1924 = vadd.f32 %v1914, %v1922
        %v1925 = vtanh.pop %v1924
        %1927 = vrot.lane.b32.xlu0 %v1925, 64
        %v1928 = vpop.permute.xlu0 %1927
        %v1930 = vmul.f32 %v1912, %v1928
        %v1931 = vsel %vm1865, %v1930, %v1506
        %v1932 = vsel %vm1865, %v1924, %v1507
        %v1933 = vpack.c.bf16 %v1931, %v1931
        %1934 = vmatprep.subr.bf16.mxu0 0
        %1935 = vmatpush1.bf16.msra.mxu0 %v568
        %1936 = vmatprep.subr.bf16.mxu0 0
        %1937 = vmatpush1.bf16.msra.mxu0 %v569
        %1938 = vmatprep.subr.bf16.mxu0 0
        %1939 = vmatpush1.bf16.msra.mxu0 0
        %1940 = vmatprep.subr.bf16.mxu0 0
        %1941 = vmatpush1.bf16.msra.mxu0 0
        %1942 = vmatprep.subr.bf16.mxu0 0
        %1943 = vmatpush1.bf16.msra.mxu0 0
        %1944 = vmatprep.subr.bf16.mxu0 0
        %1945 = vmatpush1.bf16.msra.mxu0 0
        %1946 = vmatprep.subr.bf16.mxu0 0
        %1947 = vmatpush1.bf16.msra.mxu0 0
        %1948 = vmatprep.subr.bf16.mxu0 0
        %1949 = vmatpush1.bf16.msra.mxu0 0
        %1950 = vmatprep.subr.bf16.mxu0 0
        %1951 = vmatpush1.bf16.msra.mxu0 0
        %1952 = vmatprep.subr.bf16.mxu0 0
        %1953 = vmatpush1.bf16.msra.mxu0 0
        %1954 = vmatprep.subr.bf16.mxu0 0
        %1955 = vmatpush1.bf16.msra.mxu0 0
        %1956 = vmatprep.subr.bf16.mxu0 0
        %1957 = vmatpush1.bf16.msra.mxu0 0
        %1958 = vmatprep.subr.bf16.mxu0 0
        %1959 = vmatpush1.bf16.msra.mxu0 0
        %1960 = vmatprep.subr.bf16.mxu0 0
        %1961 = vmatpush1.bf16.msra.mxu0 0
        %1962 = vmatprep.subr.bf16.mxu0 0
        %1963 = vmatpush1.bf16.msra.mxu0 0
        %1964 = vmatprep.subr.bf16.mxu0 0
        %1965 = vmatpush1.bf16.msra.mxu0 0
        %1966 = vmatprep.mubr.bf16.mxu0 0
        %1967 = vmatmul.mubr.bf16.gmra.mrb[0].mxu0 %v1665
        %v1968 = vpop.f32.mrb[0].mxu0
        %v1969 = vadd.f32 0.0, %v1968
        %v1970 = vpop.f32.mrb[0].mxu0
        %v1971 = vpop.f32.mrb[0].mxu0
        %v1972 = vpop.f32.mrb[0].mxu0
        %1973 = vdwg.mxu0
        %1975 = vrot.lane.b32.xlu0 %v1933, 32
        %v1976 = vpop.permute.xlu0 %1975
        %v1978 = vsel %vm329, %v1976, 0
        %1980 = vmatprep.subr.bf16.mxu0 0
        %1981 = vmatpush1.bf16.msra.mxu0 %v626
        %1982 = vmatprep.subr.bf16.mxu0 0
        %1983 = vmatpush1.bf16.msra.mxu0 %v627
        %1984 = vmatprep.subr.bf16.mxu0 0
        %1985 = vmatpush1.bf16.msra.mxu0 0
        %1986 = vmatprep.subr.bf16.mxu0 0
        %1987 = vmatpush1.bf16.msra.mxu0 0
        %1988 = vmatprep.subr.bf16.mxu0 0
        %1989 = vmatpush1.bf16.msra.mxu0 0
        %1990 = vmatprep.subr.bf16.mxu0 0
        %1991 = vmatpush1.bf16.msra.mxu0 0
        %1992 = vmatprep.subr.bf16.mxu0 0
        %1993 = vmatpush1.bf16.msra.mxu0 0
        %1994 = vmatprep.subr.bf16.mxu0 0
        %1995 = vmatpush1.bf16.msra.mxu0 0
        %1996 = vmatprep.subr.bf16.mxu0 0
        %1997 = vmatpush1.bf16.msra.mxu0 0
        %1998 = vmatprep.subr.bf16.mxu0 0
        %1999 = vmatpush1.bf16.msra.mxu0 0
        %2000 = vmatprep.subr.bf16.mxu0 0
        %2001 = vmatpush1.bf16.msra.mxu0 0
        %2002 = vmatprep.subr.bf16.mxu0 0
        %2003 = vmatpush1.bf16.msra.mxu0 0
        %2004 = vmatprep.subr.bf16.mxu0 0
        %2005 = vmatpush1.bf16.msra.mxu0 0
        %2006 = vmatprep.subr.bf16.mxu0 0
        %2007 = vmatpush1.bf16.msra.mxu0 0
        %2008 = vmatprep.subr.bf16.mxu0 0
        %2009 = vmatpush1.bf16.msra.mxu0 0
        %2010 = vmatprep.subr.bf16.mxu0 0
        %2011 = vmatpush1.bf16.msra.mxu0 0
        %2012 = vmatprep.mubr.bf16.mxu0 0
        %2013 = vmatmul.mubr.bf16.gmra.mrb[0].mxu0 %v1978
        %v2014 = vpop.f32.mrb[0].mxu0
        %v2015 = vadd.f32 %v1969, %v2014
        %v2016 = vpop.f32.mrb[0].mxu0
        %v2017 = vpop.f32.mrb[0].mxu0
        %v2018 = vpop.f32.mrb[0].mxu0
        %2019 = vdwg.mxu0
        %v2020 = vadd.f32 %v2015, %v429
        %v2021 = vmul.f32 %v2020, 0.5
        %v2022 = vtanh.pop %v2021
        %v2023 = vadd.f32 %v2022, 1.0
        %v2024 = vmul.f32 %v2023, 0.5
        %v2025 = vtanh.pop %v2020
        %v2026 = vmul.f32 %v2024, %v1619
        %2028 = vrot.lane.b32.xlu0 %v2025, 64
        %v2029 = vpop.permute.xlu0 %2028
        %v2031 = vmul.f32 %v2024, %v2029
        %2033 = vrot.lane.b32.xlu0 %v2031, 32
        %v2034 = vpop.permute.xlu0 %2033
        %v2036 = vadd.f32 %v2026, %v2034
        %v2037 = vtanh.pop %v2036
        %2039 = vrot.lane.b32.xlu0 %v2037, 64
        %v2040 = vpop.permute.xlu0 %2039
        %v2042 = vmul.f32 %v2024, %v2040
        %v2043 = vsel %vm1865, %v2042, %v1618
        %v2044 = vsel %vm1865, %v2036, %v1619
        %v2045 = vpack.c.bf16 %v2043, %v2043
        %2046 = vmatprep.subr.bf16.mxu0 0
        %2047 = vmatpush1.bf16.msra.mxu0 %v716
        %2048 = vmatprep.subr.bf16.mxu0 0
        %2049 = vmatpush1.bf16.msra.mxu0 %v717
        %2050 = vmatprep.subr.bf16.mxu0 0
        %2051 = vmatpush1.bf16.msra.mxu0 0
        %2052 = vmatprep.subr.bf16.mxu0 0
        %2053 = vmatpush1.bf16.msra.mxu0 0
        %2054 = vmatprep.subr.bf16.mxu0 0
        %2055 = vmatpush1.bf16.msra.mxu0 0
        %2056 = vmatprep.subr.bf16.mxu0 0
        %2057 = vmatpush1.bf16.msra.mxu0 0
        %2058 = vmatprep.subr.bf16.mxu0 0
        %2059 = vmatpush1.bf16.msra.mxu0 0
        %2060 = vmatprep.subr.bf16.mxu0 0
        %2061 = vmatpush1.bf16.msra.mxu0 0
        %2062 = vmatprep.subr.bf16.mxu0 0
        %2063 = vmatpush1.bf16.msra.mxu0 0
        %2064 = vmatprep.subr.bf16.mxu0 0
        %2065 = vmatpush1.bf16.msra.mxu0 0
        %2066 = vmatprep.subr.bf16.mxu0 0
        %2067 = vmatpush1.bf16.msra.mxu0 0
        %2068 = vmatprep.subr.bf16.mxu0 0
        %2069 = vmatpush1.bf16.msra.mxu0 0
        %2070 = vmatprep.subr.bf16.mxu0 0
        %2071 = vmatpush1.bf16.msra.mxu0 0
        %2072 = vmatprep.subr.bf16.mxu0 0
        %2073 = vmatpush1.bf16.msra.mxu0 0
        %2074 = vmatprep.subr.bf16.mxu0 0
        %2075 = vmatpush1.bf16.msra.mxu0 0
        %2076 = vmatprep.subr.bf16.mxu0 0
        %2077 = vmatpush1.bf16.msra.mxu0 0
        %2078 = vmatprep.mubr.bf16.mxu0 0
        %2079 = vmatmul.mubr.bf16.gmra.mrb[0].mxu0 %v1784
        %v2080 = vpop.f32.mrb[0].mxu0
        %v2081 = vadd.f32 0.0, %v2080
        %v2082 = vpop.f32.mrb[0].mxu0
        %v2083 = vpop.f32.mrb[0].mxu0
        %v2084 = vpop.f32.mrb[0].mxu0
        %2085 = vdwg.mxu0
        %2087 = vrot.lane.b32.xlu0 %v2045, 32
        %v2088 = vpop.permute.xlu0 %2087
        %v2090 = vsel %vm329, %v2088, 0
        %2092 = vmatprep.subr.bf16.mxu0 0
        %2093 = vmatpush1.bf16.msra.mxu0 %v774
        %2094 = vmatprep.subr.bf16.mxu0 0
        %2095 = vmatpush1.bf16.msra.mxu0 %v775
        %2096 = vmatprep.subr.bf16.mxu0 0
        %2097 = vmatpush1.bf16.msra.mxu0 0
        %2098 = vmatprep.subr.bf16.mxu0 0
        %2099 = vmatpush1.bf16.msra.mxu0 0
        %2100 = vmatprep.subr.bf16.mxu0 0
        %2101 = vmatpush1.bf16.msra.mxu0 0
        %2102 = vmatprep.subr.bf16.mxu0 0
        %2103 = vmatpush1.bf16.msra.mxu0 0
        %2104 = vmatprep.subr.bf16.mxu0 0
        %2105 = vmatpush1.bf16.msra.mxu0 0
        %2106 = vmatprep.subr.bf16.mxu0 0
        %2107 = vmatpush1.bf16.msra.mxu0 0
        %2108 = vmatprep.subr.bf16.mxu0 0
        %2109 = vmatpush1.bf16.msra.mxu0 0
        %2110 = vmatprep.subr.bf16.mxu0 0
        %2111 = vmatpush1.bf16.msra.mxu0 0
        %2112 = vmatprep.subr.bf16.mxu0 0
        %2113 = vmatpush1.bf16.msra.mxu0 0
        %2114 = vmatprep.subr.bf16.mxu0 0
        %2115 = vmatpush1.bf16.msra.mxu0 0
        %2116 = vmatprep.subr.bf16.mxu0 0
        %2117 = vmatpush1.bf16.msra.mxu0 0
        %2118 = vmatprep.subr.bf16.mxu0 0
        %2119 = vmatpush1.bf16.msra.mxu0 0
        %2120 = vmatprep.subr.bf16.mxu0 0
        %2121 = vmatpush1.bf16.msra.mxu0 0
        %2122 = vmatprep.subr.bf16.mxu0 0
        %2123 = vmatpush1.bf16.msra.mxu0 0
        %2124 = vmatprep.mubr.bf16.mxu0 0
        %2125 = vmatmul.mubr.bf16.gmra.mrb[0].mxu0 %v2090
        %v2126 = vpop.f32.mrb[0].mxu0
        %v2127 = vadd.f32 %v2081, %v2126
        %v2128 = vpop.f32.mrb[0].mxu0
        %v2129 = vpop.f32.mrb[0].mxu0
        %v2130 = vpop.f32.mrb[0].mxu0
        %2131 = vdwg.mxu0
        %v2132 = vadd.f32 %v2127, %v437
        %v2133 = vmul.f32 %v2132, 0.5
        %v2134 = vtanh.pop %v2133
        %v2135 = vadd.f32 %v2134, 1.0
        %v2136 = vmul.f32 %v2135, 0.5
        %v2137 = vtanh.pop %v2132
        %v2138 = vmul.f32 %v2136, %v1731
        %2140 = vrot.lane.b32.xlu0 %v2137, 64
        %v2141 = vpop.permute.xlu0 %2140
        %v2143 = vmul.f32 %v2136, %v2141
        %2145 = vrot.lane.b32.xlu0 %v2143, 32
        %v2146 = vpop.permute.xlu0 %2145
        %v2148 = vadd.f32 %v2138, %v2146
        %v2149 = vtanh.pop %v2148
        %2151 = vrot.lane.b32.xlu0 %v2149, 64
        %v2152 = vpop.permute.xlu0 %2151
        %v2154 = vmul.f32 %v2136, %v2152
        %v2155 = vsel %vm1865, %v2154, %v1730
        %v2156 = vsel %vm1865, %v2148, %v1731
        %v2157 = vpack.c.bf16 %v2155, %v2155
        %v2158 = vpack.c.bf16 %v1849, %v1849
        %2160 = vrot.lane.b32.xlu0 %v2158, 32
        %v2161 = vpop.permute.xlu0 %2160
        %v2163 = vsel %vm329, %v2161, 0
        %2165 = vmatprep.subr.bf16.mxu0 0
        %2166 = vmatpush1.bf16.msra.mxu0 %v864
        %2167 = vmatprep.subr.bf16.mxu0 0
        %2168 = vmatpush1.bf16.msra.mxu0 %v865
        %2169 = vmatprep.subr.bf16.mxu0 0
        %2170 = vmatpush1.bf16.msra.mxu0 0
        %2171 = vmatprep.subr.bf16.mxu0 0
        %2172 = vmatpush1.bf16.msra.mxu0 0
        %2173 = vmatprep.subr.bf16.mxu0 0
        %2174 = vmatpush1.bf16.msra.mxu0 0
        %2175 = vmatprep.subr.bf16.mxu0 0
        %2176 = vmatpush1.bf16.msra.mxu0 0
        %2177 = vmatprep.subr.bf16.mxu0 0
        %2178 = vmatpush1.bf16.msra.mxu0 0
        %2179 = vmatprep.subr.bf16.mxu0 0
        %2180 = vmatpush1.bf16.msra.mxu0 0
        %2181 = vmatprep.subr.bf16.mxu0 0
        %2182 = vmatpush1.bf16.msra.mxu0 0
        %2183 = vmatprep.subr.bf16.mxu0 0
        %2184 = vmatpush1.bf16.msra.mxu0 0
        %2185 = vmatprep.subr.bf16.mxu0 0
        %2186 = vmatpush1.bf16.msra.mxu0 0
        %2187 = vmatprep.subr.bf16.mxu0 0
        %2188 = vmatpush1.bf16.msra.mxu0 0
        %2189 = vmatprep.subr.bf16.mxu0 0
        %2190 = vmatpush1.bf16.msra.mxu0 0
        %2191 = vmatprep.subr.bf16.mxu0 0
        %2192 = vmatpush1.bf16.msra.mxu0 0
        %2193 = vmatprep.subr.bf16.mxu0 0
        %2194 = vmatpush1.bf16.msra.mxu0 0
        %2195 = vmatprep.subr.bf16.mxu0 0
        %2196 = vmatpush1.bf16.msra.mxu0 0
        %2197 = vmatprep.mubr.bf16.mxu0 0
        %2198 = vmatmul.mubr.bf16.gmra.mrb[0].mxu0 %v2163
        %v2199 = vpop.f32.mrb[0].mxu0
        %v2200 = vadd.f32 0.0, %v2199
        %v2201 = vpop.f32.mrb[0].mxu0
        %v2202 = vpop.f32.mrb[0].mxu0
        %v2203 = vpop.f32.mrb[0].mxu0
        %2204 = vdwg.mxu0
        %2206 = vrot.lane.b32.xlu0 %v2157, 32
        %v2207 = vpop.permute.xlu0 %2206
        %v2209 = vsel %vm329, %v2207, 0
        %2211 = vmatprep.subr.bf16.mxu0 0
        %2212 = vmatpush1.bf16.msra.mxu0 %v922
        %2213 = vmatprep.subr.bf16.mxu0 0
        %2214 = vmatpush1.bf16.msra.mxu0 %v923
        %2215 = vmatprep.subr.bf16.mxu0 0
        %2216 = vmatpush1.bf16.msra.mxu0 0
        %2217 = vmatprep.subr.bf16.mxu0 0
        %2218 = vmatpush1.bf16.msra.mxu0 0
        %2219 = vmatprep.subr.bf16.mxu0 0
        %2220 = vmatpush1.bf16.msra.mxu0 0
        %2221 = vmatprep.subr.bf16.mxu0 0
        %2222 = vmatpush1.bf16.msra.mxu0 0
        %2223 = vmatprep.subr.bf16.mxu0 0
        %2224 = vmatpush1.bf16.msra.mxu0 0
        %2225 = vmatprep.subr.bf16.mxu0 0
        %2226 = vmatpush1.bf16.msra.mxu0 0
        %2227 = vmatprep.subr.bf16.mxu0 0
        %2228 = vmatpush1.bf16.msra.mxu0 0
        %2229 = vmatprep.subr.bf16.mxu0 0
        %2230 = vmatpush1.bf16.msra.mxu0 0
        %2231 = vmatprep.subr.bf16.mxu0 0
        %2232 = vmatpush1.bf16.msra.mxu0 0
        %2233 = vmatprep.subr.bf16.mxu0 0
        %2234 = vmatpush1.bf16.msra.mxu0 0
        %2235 = vmatprep.subr.bf16.mxu0 0
        %2236 = vmatpush1.bf16.msra.mxu0 0
        %2237 = vmatprep.subr.bf16.mxu0 0
        %2238 = vmatpush1.bf16.msra.mxu0 0
        %2239 = vmatprep.subr.bf16.mxu0 0
        %2240 = vmatpush1.bf16.msra.mxu0 0
        %2241 = vmatprep.subr.bf16.mxu0 0
        %2242 = vmatpush1.bf16.msra.mxu0 0
        %2243 = vmatprep.mubr.bf16.mxu0 0
        %2244 = vmatmul.mubr.bf16.gmra.mrb[0].mxu0 %v2209
        %v2245 = vpop.f32.mrb[0].mxu0
        %v2246 = vadd.f32 %v2200, %v2245
        %v2247 = vpop.f32.mrb[0].mxu0
        %v2248 = vpop.f32.mrb[0].mxu0
        %v2249 = vpop.f32.mrb[0].mxu0
        %2250 = vdwg.mxu0
        %v2251 = vadd.f32 %v2246, %v445
        %v2252 = vmul.f32 %v2251, 0.5
        %v2253 = vtanh.pop %v2252
        %v2254 = vadd.f32 %v2253, 1.0
        %v2255 = vmul.f32 %v2254, 0.5
        %v2256 = vtanh.pop %v2251
        %v2257 = vmul.f32 %v2255, %v1850
        %2259 = vrot.lane.b32.xlu0 %v2256, 64
        %v2260 = vpop.permute.xlu0 %2259
        %v2262 = vmul.f32 %v2255, %v2260
        %2264 = vrot.lane.b32.xlu0 %v2262, 32
        %v2265 = vpop.permute.xlu0 %2264
        %v2267 = vadd.f32 %v2257, %v2265
        %v2268 = vtanh.pop %v2267
        %2270 = vrot.lane.b32.xlu0 %v2268, 64
        %v2271 = vpop.permute.xlu0 %2270
        %v2273 = vmul.f32 %v2255, %v2271
        %v2274 = vsel %vm1865, %v2273, %v1849
        %v2275 = vsel %vm1865, %v2267, %v1850
        %v2276 = vsel %vm1865, %v2273, 0.0
        %2278 = vrot.lane.b32.xlu0 %v2276, 32
        %v2279 = vpop.permute.xlu0 %2278
        %s2281 = scalar_lea.vmem %s264, 24 [#allocation3]
        %2282 = vst.msk [vmem:[%s2281] sm:$0xff] %vm329, %v2279
        %2284 = vrot.lane.b32.xlu0 %v1931, 32
        %v2285 = vpop.permute.xlu0 %2284
        %2287 = vst.msk [vmem:[#allocation5] sm:$0xff] %vm329, %v2285
        %2289 = vrot.lane.b32.xlu0 %v1932, 96
        %v2290 = vpop.permute.xlu0 %2289
        %2292 = vst.msk [vmem:[#allocation7] sm:$0xff] %vm329, %v2290
        %2294 = vrot.lane.b32.xlu0 %v2043, 32
        %v2295 = vpop.permute.xlu0 %2294
        %2297 = vst.msk [vmem:[%s448] sm:$0xff] %vm329, %v2295
        %2299 = vrot.lane.b32.xlu0 %v2044, 96
        %v2300 = vpop.permute.xlu0 %2299
        %2302 = vst.msk [vmem:[%s455] sm:$0xff] %vm329, %v2300
        %2304 = vrot.lane.b32.xlu0 %v2155, 32
        %v2305 = vpop.permute.xlu0 %2304
        %2307 = vst.msk [vmem:[%s450] sm:$0xff] %vm329, %v2305
        %2309 = vrot.lane.b32.xlu0 %v2156, 96
        %v2310 = vpop.permute.xlu0 %2309
        %2312 = vst.msk [vmem:[%s457] sm:$0xff] %vm329, %v2310
        %2314 = vrot.lane.b32.xlu0 %v2274, 32
        %v2315 = vpop.permute.xlu0 %2314
        %2317 = vst.msk [vmem:[%s452] sm:$0xff] %vm329, %v2315
        %2319 = vrot.lane.b32.xlu0 %v2275, 96
        %v2320 = vpop.permute.xlu0 %2319
        %2322 = vst.msk [vmem:[%s459] sm:$0xff] %vm329, %v2320
        %s2323 = sand.u32 %s141, 1
        %s2324 = scalar_lea.sflag [#allocation4], %s2323
        %s2325 = sand.u32 %s141, 1
        %s2326 = smul.addr %s2325, 32
        %s2327 = scalar_lea.vmem [#allocation3], %s2326
        // Predicated region
        $region45: #{encoder_forward.1} parent=39 // pred_check
          %p2328 = pneg %p151
        $region46: #{encoder_forward.1} parent=39 // pred_check_branch
          %2330 = sbr.rel (%p2328) target = $region48
        $region47: #{encoder_forward.1} parent=39 // pred_region
          %s2331 = smul.u32 4, %s23
          %s2333 = ssub.s32 512, 512
          %2334 = vsyncadd %s2324, %s2333
          %s2335 = smul.addr %s2331, 128
          %s2336 = scalar_lea.hbm %s5, %s2335
          %s2337 = sshll.u32 %s2327, 4
          %s2338 = int_to_ptr.vmem [resolvable:$true] %s2337
          %2343 = dma.vmem_to_hbm [thread:$0]  %s2338, 512, %s2336, %s2324, 128, 128, 8
        $region48: #{encoder_forward.1} parent=39 // pred_fallthru
          _
        // Predicated region
        $region49: #{encoder_forward.1} parent=39 // pred_check
          %p2344 = pneg %p172
        $region50: #{encoder_forward.1} parent=39 // pred_check_branch
          %2346 = sbr.rel (%p2344) target = $region52
        $region51: #{encoder_forward.1} parent=39 // pred_region
          %s2348 = ssub.s32 512, 512
          %2349 = vsyncadd [#allocation6], %s2348
          %s2350 = sshll.u32 [#allocation5], 4
          %s2351 = int_to_ptr.vmem [resolvable:$true] %s2350
          %2356 = dma.vmem_to_hbm [thread:$0]  %s2351, 512, %s6, [#allocation6], 128, 128, 8
        $region52: #{encoder_forward.1} parent=39 // pred_fallthru
          _
        // Predicated region
        $region53: #{encoder_forward.1} parent=39 // pred_check
          %p2357 = pneg %p193
        $region54: #{encoder_forward.1} parent=39 // pred_check_branch
          %2359 = sbr.rel (%p2357) target = $region56
        $region55: #{encoder_forward.1} parent=39 // pred_region
          %s2361 = ssub.s32 512, 512
          %2362 = vsyncadd [#allocation6], %s2361
          %s2363 = sshll.u32 [#allocation7], 4
          %s2364 = int_to_ptr.vmem [resolvable:$true] %s2363
          %2369 = dma.vmem_to_hbm [thread:$0]  %s2364, 512, %s7, [#allocation6], 128, 128, 8
        $region56: #{encoder_forward.1} parent=39 // pred_fallthru
          _
        // Predicated region
        $region57: #{encoder_forward.1} parent=39 // pred_check
          %p2370 = pneg %p172
        $region58: #{encoder_forward.1} parent=39 // pred_check_branch
          %2372 = sbr.rel (%p2370) target = $region60
        $region59: #{encoder_forward.1} parent=39 // pred_region
          %2373 = dma.done [#allocation6], 512
        $region60: #{encoder_forward.1} parent=39 // pred_fallthru
          _
        // Predicated region
        $region61: #{encoder_forward.1} parent=39 // pred_check
          %p2374 = pneg %p193
        $region62: #{encoder_forward.1} parent=39 // pred_check_branch
          %2376 = sbr.rel (%p2374) target = $region64
        $region63: #{encoder_forward.1} parent=39 // pred_region
          %2377 = dma.done [#allocation6], 512
        $region64: #{encoder_forward.1} parent=39 // pred_fallthru
          _
      $region40: #{encoder_forward.1} parent=5 // pred_fallthru
        _
      %p2378 = scmp.le.s32.totalorder 2, %s18
      // Predicated region
      $region65: #{encoder_forward.1} parent=5 // pred_check
        %p2379 = pneg %p2378
      $region66: #{encoder_forward.1} parent=5 // pred_check_branch
        %2381 = sbr.rel (%p2379) target = $region68
      $region67: #{encoder_forward.1} parent=5 // pred_region
        %s2382 = ssub.s32 %s18, 2
        // Predicated region
        $region69: #{encoder_forward.1} parent=67 // pred_check
          %p2383 = pneg %p157
        $region70: #{encoder_forward.1} parent=67 // pred_check_branch
          %2385 = sbr.rel (%p2383) target = $region72
        $region71: #{encoder_forward.1} parent=67 // pred_region
          %s2386 = sand.u32 %s142, 1
          %s2387 = scalar_lea.sflag [#allocation4], %s2386
          %s2388 = sand.u32 %s142, 1
          %s2389 = smul.addr %s2388, 32
          %s2390 = scalar_lea.vmem [#allocation3], %s2389
          %2391 = dma.done %s2387, 512
        $region72: #{encoder_forward.1} parent=67 // pred_fallthru
          _
      $region68: #{encoder_forward.1} parent=5 // pred_fallthru
        _
    $region6: #{encoder_forward.1} parent=1 // loop_footer
      %s22 = sadd.s32 1, %s18
    $region7: #{encoder_forward.1} parent=1 // loop_footer_branch
      %17 = sbr.rel target = $region3
    $region8: #{encoder_forward.1} parent=1 // loop_exit
      _
    %2392 = vsyncpa [#allocation4], 1
    %s2393 = scalar_lea.sflag [#allocation4], 1
    %2394 = vsyncpa %s2393, 1
    %2395 = vsyncpa [#allocation6], 1

</llo_original>
